<compile_context>
chip_gen: v5e
topology: v5e:2x2
jax: 0.10.0
libtpu: 0.0.40
codegen_flags: <defaults>
</compile_context>

<pallas_src>
import functools

import jax
import jax.numpy as jnp
from jax import lax
from jax.experimental import pallas as pl
from jax.experimental.pallas import tpu as pltpu

_VMEM_LIMIT = 64 * 1024 * 1024
_SLOPE = 0.01  # nn.LeakyReLU default negative slope


def _lrelu_f32(y):
    return jnp.where(y >= 0.0, y, _SLOPE * y)


# ----------------------------------------------------------------------------
# Kernel 1: 3x3 conv (padding=1) + bias + LeakyReLU.  One batch element/block.
#   cols_ref: (1, H*W)    int32  column index of each flattened output position
#   x_ref:    (1, Cin, L) f32    row-padded image, flattened, L = (H+2)*W + 2
#   w_ref:    (F, 9*Cin)  bf16   weights, tap-major / channel-minor
#   b_ref:    (F, 1)      f32
#   o_ref:    (1, F, H*W) f32    lane-dense output (spatial on lanes)
# ----------------------------------------------------------------------------
def _conv3x3_kernel(cols_ref, x_ref, w_ref, b_ref, o_ref, *, width):
    hw = cols_ref.shape[-1]
    col = cols_ref[...]                      # (1, HW) int32
    xf = x_ref[0]                            # (Cin, L) f32, already in VMEM

    taps = []
    for dy in range(3):
        for dx in range(3):
            s = dy * width + dx - 1          # flat shift of this tap
            t = xf[:, 1 + s: 1 + s + hw]     # (Cin, HW) static VMEM slice
            if dx == 0:                      # reads column x-1: invalid at x == 0
                t = jnp.where(col > 0, t, 0.0)
            elif dx == 2:                    # reads column x+1: invalid at x == W-1
                t = jnp.where(col < width - 1, t, 0.0)
            taps.append(t)

    xcol = jnp.concatenate(taps, axis=0).astype(jnp.bfloat16)   # (9*Cin, HW)
    acc = jnp.dot(w_ref[...], xcol, preferred_element_type=jnp.float32)
    y = acc + b_ref[...]                     # (F, HW) f32
    o_ref[0] = _lrelu_f32(y).astype(o_ref.dtype)


def conv3x3_lrelu(x, w_oihw, b):
    """x: (N, Cin, H, W) f32, w: (F, Cin, 3, 3) [OIHW], b: (F,) -> (N, F, H, W) f32."""
    n, cin, h, w = x.shape
    f = w_oihw.shape[0]
    hw = h * w
    length = (h + 2) * w + 2

    # Pad H by 1 on each side, flatten rows, add one zero at each end so every
    # tap window is an in-bounds static slice (width boundaries handled by mask).
    xp = jnp.pad(x, ((0, 0), (0, 0), (1, 1), (0, 0))).reshape(n, cin, (h + 2) * w)
    xflat = jnp.pad(xp, ((0, 0), (0, 0), (1, 1)))                       # (N, Cin, L)

    w_mat = jnp.transpose(w_oihw, (0, 2, 3, 1)).reshape(f, 9 * cin)     # tap-major, ch-minor
    w_mat = w_mat.astype(jnp.bfloat16)
    b_col = b.reshape(f, 1).astype(jnp.float32)
    col_ids = (jnp.arange(hw, dtype=jnp.int32) % w).reshape(1, hw)

    kernel = functools.partial(_conv3x3_kernel, width=w)
    y = pl.pallas_call(
        kernel,
        out_shape=jax.ShapeDtypeStruct((n, f, hw), jnp.float32),
        grid_spec=pltpu.PrefetchScalarGridSpec(
            num_scalar_prefetch=0,
            grid=(n,),
            in_specs=[
                pl.BlockSpec((1, hw), lambda i: (0, 0)),
                pl.BlockSpec((1, cin, length), lambda i: (i, 0, 0)),
                pl.BlockSpec((f, 9 * cin), lambda i: (0, 0)),
                pl.BlockSpec((f, 1), lambda i: (0, 0)),
            ],
            out_specs=pl.BlockSpec((1, f, hw), lambda i: (i, 0, 0)),
        ),
        compiler_params=pltpu.CompilerParams(
            dimension_semantics=("parallel",),
            vmem_limit_bytes=_VMEM_LIMIT),
        cost_estimate=pl.CostEstimate(
            flops=2 * n * hw * 9 * cin * f,
            transcendentals=0,
            bytes_accessed=4 * n * cin * length + 4 * n * f * hw + 2 * f * 9 * cin),
    )(col_ids, xflat, w_mat, b_col)
    # TODO(synk): for very large H*W (v7x: 64 MiB VMEM), add a spatial grid axis
    # with halo'd row blocks instead of one full-image block per batch element.
    return y.reshape(n, f, h, w)


# ----------------------------------------------------------------------------
# Kernel 2: 2x2 conv, stride 2 + bias + LeakyReLU on a space-to-depth input.
#   x_ref: (1, 4*C, TM) f32   s2d input, rows tap-major / channel-minor
#   w_ref: (F, 4*C)     bf16
#   b_ref: (F, 1)       f32
#   o_ref: (1, F, TM)   f32   lane-dense output
# ----------------------------------------------------------------------------
def _conv2x2_kernel(x_ref, w_ref, b_ref, o_ref):
    xcol = x_ref[0].astype(jnp.bfloat16)                    # (4*C, TM)
    y = jnp.dot(w_ref[...], xcol, preferred_element_type=jnp.float32) + b_ref[...]
    o_ref[0] = _lrelu_f32(y).astype(o_ref.dtype)


def _pick_tile(m):
    for t in (1024, 512, 256, 128):
        if m >= t and m % t == 0:
            return t
    return m


def conv2x2_s2_lrelu(x, w_oihw, b):
    """x: (N, C, H, W) f32, w: (F, C, 2, 2) [OIHW], b: (F,) -> (N, F, H/2, W/2) f32."""
    n, c, h, w = x.shape
    f = w_oihw.shape[0]
    h2, w2 = h // 2, w // 2
    m2 = h2 * w2

    # space-to-depth (1x data volume): (N, C, H, W) -> (N, 4*C, H2*W2),
    # rows ordered tap-major ((dy, dx) outer, channel inner) to match w_mat.
    x_s2d = (x.reshape(n, c, h2, 2, w2, 2)
               .transpose(0, 3, 5, 1, 2, 4)
               .reshape(n, 4 * c, m2))
    w_mat = jnp.transpose(w_oihw, (0, 2, 3, 1)).reshape(f, 4 * c).astype(jnp.bfloat16)
    b_col = b.reshape(f, 1).astype(jnp.float32)

    tm = _pick_tile(m2)
    y = pl.pallas_call(
        _conv2x2_kernel,
        out_shape=jax.ShapeDtypeStruct((n, f, m2), jnp.float32),
        grid_spec=pltpu.PrefetchScalarGridSpec(
            num_scalar_prefetch=0,
            grid=(n, m2 // tm),
            in_specs=[
                pl.BlockSpec((1, 4 * c, tm), lambda i, j: (i, 0, j)),
                pl.BlockSpec((f, 4 * c), lambda i, j: (0, 0)),
                pl.BlockSpec((f, 1), lambda i, j: (0, 0)),
            ],
            out_specs=pl.BlockSpec((1, f, tm), lambda i, j: (i, 0, j)),
        ),
        compiler_params=pltpu.CompilerParams(
            dimension_semantics=("parallel", "parallel"),
            vmem_limit_bytes=_VMEM_LIMIT),
        cost_estimate=pl.CostEstimate(
            flops=2 * n * m2 * 4 * c * f,
            transcendentals=0,
            bytes_accessed=4 * n * 4 * c * m2 + 4 * n * f * m2 + 2 * f * 4 * c),
    )(x_s2d, w_mat, b_col)
    # TODO(synk): fully fusing this with the preceding 3x3 kernel (keeping the
    # stage intermediate in VMEM) needs lane-strided / parity-split reads for
    # the stride-2 space-to-depth; kept as a separate lane-dense matmul call.
    return y.reshape(n, f, h2, w2)


# ----------------------------------------------------------------------------
# Encoder forward (NCHW in / NCHW out, same outputs as the PyTorch module)
# ----------------------------------------------------------------------------
def encoder_apply(params, x_nchw):
    feats = []
    h = x_nchw
    for (w1, b1, w2, b2) in params:
        h = conv3x3_lrelu(h, w1, b1)
        h = conv2x2_s2_lrelu(h, w2, b2)
        feats.append(h)
    return [x_nchw] + feats


def init_params(key, in_channels, n_feat):
    params = []
    cin = in_channels
    for _ in range(5):
        key, k1, k2, k3, k4 = jax.random.split(key, 5)
        w1 = jax.random.normal(k1, (n_feat, cin, 3, 3), jnp.float32) * (2.0 / (9 * cin)) ** 0.5
        b1 = jax.random.normal(k2, (n_feat,), jnp.float32) * 0.01
        w2 = jax.random.normal(k3, (n_feat, n_feat, 2, 2), jnp.float32) * (2.0 / (4 * n_feat)) ** 0.5
        b2 = jax.random.normal(k4, (n_feat,), jnp.float32) * 0.01
        params.append((w1, b1, w2, b2))
        cin = n_feat
    return params


# ----------------------------------------------------------------------------
# Pure-JAX f32 reference (correctness sanity check)
# ----------------------------------------------------------------------------
def encoder_ref(params, x_nchw):
    dn = ("NCHW", "OIHW", "NCHW")
    feats = []
    h = x_nchw
    for (w1, b1, w2, b2) in params:
        h = _lrelu_f32(lax.conv_general_dilated(h, w1, (1, 1), ((1, 1), (1, 1)),
                                                dimension_numbers=dn)
                       + b1.reshape(1, -1, 1, 1))
        h = _lrelu_f32(lax.conv_general_dilated(h, w2, (2, 2), "VALID",
                                                dimension_numbers=dn)
                       + b2.reshape(1, -1, 1, 1))
        feats.append(h)
    return [x_nchw] + feats


if __name__ == "__main__":
    key = jax.random.PRNGKey(0)
    k_x, k_p = jax.random.split(key)

    N, IN_CH, H, W = 2, 3, 32, 32      # 32 = 2**5: five halvings end at 1x1
    N_FEAT = 8

    x = jax.random.normal(k_x, (N, IN_CH, H, W), jnp.float32)
    params = init_params(k_p, IN_CH, N_FEAT)

    fwd = jax.jit(functools.partial(encoder_apply, params))
    outs = jax.block_until_ready(fwd(x))

    refs = encoder_ref(params, x)
    for o, r in zip(outs, refs):
        assert o.shape == r.shape, (o.shape, r.shape)
        err = float(jnp.max(jnp.abs(o - r)))
        tol = 5e-2 * max(1.0, float(jnp.max(jnp.abs(r))))   # bf16 matmul inputs
        assert err < tol, f"max abs error {err} (tol {tol})"

    print("KERNEL_OK")
</pallas_src>

<mosaic_0001>
module attributes {stable_mosaic.version = 11 : i64} {
  func.func @_conv3x3_kernel(%arg0: i32, %arg1: memref<1x1024xi32, #tpu.memory_space<vmem>>, %arg2: memref<1x3x1090xf32, #tpu.memory_space<vmem>>, %arg3: memref<8x27xbf16, #tpu.memory_space<vmem>>, %arg4: memref<8x1xf32, #tpu.memory_space<vmem>>, %arg5: memref<1x8x1024xf32, #tpu.memory_space<vmem>>) attributes {dimension_semantics = [#tpu.dimension_semantics<parallel>], iteration_bounds = array<i64: 2>, scalar_prefetch = 0 : i64, scratch_operands = 0 : i64, tpu.core_type = #tpu.core_type<tc>, window_params = [{pipeline_mode = #tpu.pipeline_mode<synchronous>, transform_indices = @transform_0, window_bounds = array<i64: 1, 1024>}, {transform_indices = @transform_1, window_bounds = array<i64: 1, 3, 1090>}, {pipeline_mode = #tpu.pipeline_mode<synchronous>, transform_indices = @transform_2, window_bounds = array<i64: 8, 27>}, {pipeline_mode = #tpu.pipeline_mode<synchronous>, transform_indices = @transform_3, window_bounds = array<i64: 8, 1>}, {transform_indices = @transform_4, window_bounds = array<i64: 1, 8, 1024>}]} {
    %c0 = arith.constant 0 : index
    %c0_0 = arith.constant 0 : index
    %0 = vector.load %arg1[%c0, %c0_0] : memref<1x1024xi32, #tpu.memory_space<vmem>>, vector<1x1024xi32>
    %c0_1 = arith.constant 0 : index
    %c0_2 = arith.constant 0 : index
    %c0_3 = arith.constant 0 : index
    %1 = vector.load %arg2[%c0_1, %c0_2, %c0_3] : memref<1x3x1090xf32, #tpu.memory_space<vmem>>, vector<1x3x1090xf32>
    %2 = vector.shape_cast %1 : vector<1x3x1090xf32> to vector<3x1090xf32>
    %3 = vector.extract_strided_slice %2 {offsets = [0, 0], sizes = [3, 1024], strides = [1, 1]} : vector<3x1090xf32> to vector<3x1024xf32>
    %c0_i32 = arith.constant 0 : i32
    %4 = vector.broadcast %c0_i32 : i32 to vector<1x1024xi32>
    %5 = arith.cmpi sgt, %0, %4 : vector<1x1024xi32>
    %cst = arith.constant 0.000000e+00 : f32
    %6 = vector.shape_cast %5 : vector<1x1024xi1> to vector<1x1024xi1>
    %7 = vector.broadcast %6 : vector<1x1024xi1> to vector<3x1024xi1>
    %8 = vector.broadcast %cst : f32 to vector<3x1024xf32>
    %9 = arith.select %7, %3, %8 : vector<3x1024xi1>, vector<3x1024xf32>
    %10 = vector.extract_strided_slice %2 {offsets = [0, 1], sizes = [3, 1024], strides = [1, 1]} : vector<3x1090xf32> to vector<3x1024xf32>
    %11 = vector.extract_strided_slice %2 {offsets = [0, 2], sizes = [3, 1024], strides = [1, 1]} : vector<3x1090xf32> to vector<3x1024xf32>
    %c31_i32 = arith.constant 31 : i32
    %12 = vector.broadcast %c31_i32 : i32 to vector<1x1024xi32>
    %13 = arith.cmpi slt, %0, %12 : vector<1x1024xi32>
    %cst_4 = arith.constant 0.000000e+00 : f32
    %14 = vector.shape_cast %13 : vector<1x1024xi1> to vector<1x1024xi1>
    %15 = vector.broadcast %14 : vector<1x1024xi1> to vector<3x1024xi1>
    %16 = vector.broadcast %cst_4 : f32 to vector<3x1024xf32>
    %17 = arith.select %15, %11, %16 : vector<3x1024xi1>, vector<3x1024xf32>
    %18 = vector.extract_strided_slice %2 {offsets = [0, 32], sizes = [3, 1024], strides = [1, 1]} : vector<3x1090xf32> to vector<3x1024xf32>
    %c0_i32_5 = arith.constant 0 : i32
    %19 = vector.broadcast %c0_i32_5 : i32 to vector<1x1024xi32>
    %20 = arith.cmpi sgt, %0, %19 : vector<1x1024xi32>
    %cst_6 = arith.constant 0.000000e+00 : f32
    %21 = vector.shape_cast %20 : vector<1x1024xi1> to vector<1x1024xi1>
    %22 = vector.broadcast %21 : vector<1x1024xi1> to vector<3x1024xi1>
    %23 = vector.broadcast %cst_6 : f32 to vector<3x1024xf32>
    %24 = arith.select %22, %18, %23 : vector<3x1024xi1>, vector<3x1024xf32>
    %25 = vector.extract_strided_slice %2 {offsets = [0, 33], sizes = [3, 1024], strides = [1, 1]} : vector<3x1090xf32> to vector<3x1024xf32>
    %26 = vector.extract_strided_slice %2 {offsets = [0, 34], sizes = [3, 1024], strides = [1, 1]} : vector<3x1090xf32> to vector<3x1024xf32>
    %c31_i32_7 = arith.constant 31 : i32
    %27 = vector.broadcast %c31_i32_7 : i32 to vector<1x1024xi32>
    %28 = arith.cmpi slt, %0, %27 : vector<1x1024xi32>
    %cst_8 = arith.constant 0.000000e+00 : f32
    %29 = vector.shape_cast %28 : vector<1x1024xi1> to vector<1x1024xi1>
    %30 = vector.broadcast %29 : vector<1x1024xi1> to vector<3x1024xi1>
    %31 = vector.broadcast %cst_8 : f32 to vector<3x1024xf32>
    %32 = arith.select %30, %26, %31 : vector<3x1024xi1>, vector<3x1024xf32>
    %33 = vector.extract_strided_slice %2 {offsets = [0, 64], sizes = [3, 1024], strides = [1, 1]} : vector<3x1090xf32> to vector<3x1024xf32>
    %c0_i32_9 = arith.constant 0 : i32
    %34 = vector.broadcast %c0_i32_9 : i32 to vector<1x1024xi32>
    %35 = arith.cmpi sgt, %0, %34 : vector<1x1024xi32>
    %cst_10 = arith.constant 0.000000e+00 : f32
    %36 = vector.shape_cast %35 : vector<1x1024xi1> to vector<1x1024xi1>
    %37 = vector.broadcast %36 : vector<1x1024xi1> to vector<3x1024xi1>
    %38 = vector.broadcast %cst_10 : f32 to vector<3x1024xf32>
    %39 = arith.select %37, %33, %38 : vector<3x1024xi1>, vector<3x1024xf32>
    %40 = vector.extract_strided_slice %2 {offsets = [0, 65], sizes = [3, 1024], strides = [1, 1]} : vector<3x1090xf32> to vector<3x1024xf32>
    %41 = vector.extract_strided_slice %2 {offsets = [0, 66], sizes = [3, 1024], strides = [1, 1]} : vector<3x1090xf32> to vector<3x1024xf32>
    %c31_i32_11 = arith.constant 31 : i32
    %42 = vector.broadcast %c31_i32_11 : i32 to vector<1x1024xi32>
    %43 = arith.cmpi slt, %0, %42 : vector<1x1024xi32>
    %cst_12 = arith.constant 0.000000e+00 : f32
    %44 = vector.shape_cast %43 : vector<1x1024xi1> to vector<1x1024xi1>
    %45 = vector.broadcast %44 : vector<1x1024xi1> to vector<3x1024xi1>
    %46 = vector.broadcast %cst_12 : f32 to vector<3x1024xf32>
    %47 = arith.select %45, %41, %46 : vector<3x1024xi1>, vector<3x1024xf32>
    %48 = tpu.concatenate %9, %10, %17, %24, %25, %32, %39, %40, %47 in 0 : vector<3x1024xf32>, vector<3x1024xf32>, vector<3x1024xf32>, vector<3x1024xf32>, vector<3x1024xf32>, vector<3x1024xf32>, vector<3x1024xf32>, vector<3x1024xf32>, vector<3x1024xf32> -> vector<27x1024xf32>
    %49 = arith.truncf %48 : vector<27x1024xf32> to vector<27x1024xbf16>
    %c0_13 = arith.constant 0 : index
    %c0_14 = arith.constant 0 : index
    %50 = vector.load %arg3[%c0_13, %c0_14] : memref<8x27xbf16, #tpu.memory_space<vmem>>, vector<8x27xbf16>
    %cst_15 = arith.constant dense<0.000000e+00> : vector<8x1024xf32>
    %51 = tpu.matmul %50, %49, %cst_15 {dimension_numbers = #tpu.dot_dimension_numbers<[1], [0], [0], [1], [0, 0, 1, 1], [], []>} : vector<8x27xbf16>, vector<27x1024xbf16>, vector<8x1024xf32> -> vector<8x1024xf32>
    %c0_16 = arith.constant 0 : index
    %c0_17 = arith.constant 0 : index
    %52 = vector.load %arg4[%c0_16, %c0_17] : memref<8x1xf32, #tpu.memory_space<vmem>>, vector<8x1xf32>
    %53 = vector.broadcast %52 : vector<8x1xf32> to vector<8x1024xf32>
    %54 = arith.addf %51, %53 : vector<8x1024xf32>
    %cst_18 = arith.constant 0.000000e+00 : f32
    %55 = vector.broadcast %cst_18 : f32 to vector<8x1024xf32>
    %56 = arith.cmpf oge, %54, %55 : vector<8x1024xf32>
    %cst_19 = arith.constant 0.00999999977 : f32
    %57 = vector.broadcast %cst_19 : f32 to vector<8x1024xf32>
    %58 = arith.mulf %57, %54 : vector<8x1024xf32>
    %59 = arith.select %56, %54, %58 : vector<8x1024xi1>, vector<8x1024xf32>
    %c0_20 = arith.constant 0 : index
    %c0_21 = arith.constant 0 : index
    %c0_22 = arith.constant 0 : index
    %60 = vector.load %arg5[%c0_20, %c0_21, %c0_22] : memref<1x8x1024xf32, #tpu.memory_space<vmem>>, vector<1x8x1024xf32>
    %61 = vector.shape_cast %60 : vector<1x8x1024xf32> to vector<8x1024xf32>
    %62 = vector.shape_cast %59 : vector<8x1024xf32> to vector<1x8x1024xf32>
    tpu.vector_store %arg5[%c0_20, %c0_21, %c0_22], %62 {strides = array<i32>} : memref<1x8x1024xf32, #tpu.memory_space<vmem>>, vector<1x8x1024xf32>,
    return
  }
  func.func @transform_0(%arg0: i32) -> (i32, i32) {
    %c0_i32 = arith.constant 0 : i32
    %c0_i32_0 = arith.constant 0 : i32
    %c0_i32_1 = arith.constant 0 : i32
    return %c0_i32, %c0_i32_0 : i32, i32
  }
  func.func @transform_1(%arg0: i32) -> (i32, i32, i32) {
    %c0_i32 = arith.constant 0 : i32
    %c0_i32_0 = arith.constant 0 : i32
    %c0_i32_1 = arith.constant 0 : i32
    return %arg0, %c0_i32, %c0_i32_0 : i32, i32, i32
  }
  func.func @transform_2(%arg0: i32) -> (i32, i32) {
    %c0_i32 = arith.constant 0 : i32
    %c0_i32_0 = arith.constant 0 : i32
    %c0_i32_1 = arith.constant 0 : i32
    return %c0_i32, %c0_i32_0 : i32, i32
  }
  func.func @transform_3(%arg0: i32) -> (i32, i32) {
    %c0_i32 = arith.constant 0 : i32
    %c0_i32_0 = arith.constant 0 : i32
    %c0_i32_1 = arith.constant 0 : i32
    return %c0_i32, %c0_i32_0 : i32, i32
  }
  func.func @transform_4(%arg0: i32) -> (i32, i32, i32) {
    %c0_i32 = arith.constant 0 : i32
    %c0_i32_0 = arith.constant 0 : i32
    %c0_i32_1 = arith.constant 0 : i32
    return %arg0, %c0_i32, %c0_i32_0 : i32, i32, i32
  }
}

module attributes {stable_mosaic.version = 11 : i64} {
  func.func @_conv2x2_kernel(%arg0: i32, %arg1: i32, %arg2: memref<1x32x256xf32, #tpu.memory_space<vmem>>, %arg3: memref<8x32xbf16, #tpu.memory_space<vmem>>, %arg4: memref<8x1xf32, #tpu.memory_space<vmem>>, %arg5: memref<1x8x256xf32, #tpu.memory_space<vmem>>) attributes {dimension_semantics = [#tpu.dimension_semantics<parallel>, #tpu.dimension_semantics<parallel>], iteration_bounds = array<i64: 2, 1>, scalar_prefetch = 0 : i64, scratch_operands = 0 : i64, tpu.core_type = #tpu.core_type<tc>, window_params = [{transform_indices = @transform_0, window_bounds = array<i64: 1, 32, 256>}, {pipeline_mode = #tpu.pipeline_mode<synchronous>, transform_indices = @transform_1, window_bounds = array<i64: 8, 32>}, {pipeline_mode = #tpu.pipeline_mode<synchronous>, transform_indices = @transform_2, window_bounds = array<i64: 8, 1>}, {transform_indices = @transform_3, window_bounds = array<i64: 1, 8, 256>}]} {
    %c0 = arith.constant 0 : index
    %c0_0 = arith.constant 0 : index
    %c0_1 = arith.constant 0 : index
    %0 = vector.load %arg2[%c0, %c0_0, %c0_1] : memref<1x32x256xf32, #tpu.memory_space<vmem>>, vector<1x32x256xf32>
    %1 = vector.shape_cast %0 : vector<1x32x256xf32> to vector<32x256xf32>
    %2 = arith.truncf %1 : vector<32x256xf32> to vector<32x256xbf16>
    %c0_2 = arith.constant 0 : index
    %c0_3 = arith.constant 0 : index
    %3 = vector.load %arg3[%c0_2, %c0_3] : memref<8x32xbf16, #tpu.memory_space<vmem>>, vector<8x32xbf16>
    %cst = arith.constant dense<0.000000e+00> : vector<8x256xf32>
    %4 = tpu.matmul %3, %2, %cst {dimension_numbers = #tpu.dot_dimension_numbers<[1], [0], [0], [1], [0, 0, 1, 1], [], []>} : vector<8x32xbf16>, vector<32x256xbf16>, vector<8x256xf32> -> vector<8x256xf32>
    %c0_4 = arith.constant 0 : index
    %c0_5 = arith.constant 0 : index
    %5 = vector.load %arg4[%c0_4, %c0_5] : memref<8x1xf32, #tpu.memory_space<vmem>>, vector<8x1xf32>
    %6 = vector.broadcast %5 : vector<8x1xf32> to vector<8x256xf32>
    %7 = arith.addf %4, %6 : vector<8x256xf32>
    %cst_6 = arith.constant 0.000000e+00 : f32
    %8 = vector.broadcast %cst_6 : f32 to vector<8x256xf32>
    %9 = arith.cmpf oge, %7, %8 : vector<8x256xf32>
    %cst_7 = arith.constant 0.00999999977 : f32
    %10 = vector.broadcast %cst_7 : f32 to vector<8x256xf32>
    %11 = arith.mulf %10, %7 : vector<8x256xf32>
    %12 = arith.select %9, %7, %11 : vector<8x256xi1>, vector<8x256xf32>
    %c0_8 = arith.constant 0 : index
    %c0_9 = arith.constant 0 : index
    %c0_10 = arith.constant 0 : index
    %13 = vector.load %arg5[%c0_8, %c0_9, %c0_10] : memref<1x8x256xf32, #tpu.memory_space<vmem>>, vector<1x8x256xf32>
    %14 = vector.shape_cast %13 : vector<1x8x256xf32> to vector<8x256xf32>
    %15 = vector.shape_cast %12 : vector<8x256xf32> to vector<1x8x256xf32>
    tpu.vector_store %arg5[%c0_8, %c0_9, %c0_10], %15 {strides = array<i32>} : memref<1x8x256xf32, #tpu.memory_space<vmem>>, vector<1x8x256xf32>,
    return
  }
  func.func @transform_0(%arg0: i32, %arg1: i32) -> (i32, i32, i32) {
    %c0_i32 = arith.constant 0 : i32
    %c0_i32_0 = arith.constant 0 : i32
    return %arg0, %c0_i32, %arg1 : i32, i32, i32
  }
  func.func @transform_1(%arg0: i32, %arg1: i32) -> (i32, i32) {
    %c0_i32 = arith.constant 0 : i32
    %c0_i32_0 = arith.constant 0 : i32
    %c0_i32_1 = arith.constant 0 : i32
    return %c0_i32, %c0_i32_0 : i32, i32
  }
  func.func @transform_2(%arg0: i32, %arg1: i32) -> (i32, i32) {
    %c0_i32 = arith.constant 0 : i32
    %c0_i32_0 = arith.constant 0 : i32
    %c0_i32_1 = arith.constant 0 : i32
    return %c0_i32, %c0_i32_0 : i32, i32
  }
  func.func @transform_3(%arg0: i32, %arg1: i32) -> (i32, i32, i32) {
    %c0_i32 = arith.constant 0 : i32
    %c0_i32_0 = arith.constant 0 : i32
    return %arg0, %c0_i32, %arg1 : i32, i32, i32
  }
}

module attributes {stable_mosaic.version = 11 : i64} {
  func.func @_conv3x3_kernel(%arg0: i32, %arg1: memref<1x256xi32, #tpu.memory_space<vmem>>, %arg2: memref<1x8x290xf32, #tpu.memory_space<vmem>>, %arg3: memref<8x72xbf16, #tpu.memory_space<vmem>>, %arg4: memref<8x1xf32, #tpu.memory_space<vmem>>, %arg5: memref<1x8x256xf32, #tpu.memory_space<vmem>>) attributes {dimension_semantics = [#tpu.dimension_semantics<parallel>], iteration_bounds = array<i64: 2>, scalar_prefetch = 0 : i64, scratch_operands = 0 : i64, tpu.core_type = #tpu.core_type<tc>, window_params = [{pipeline_mode = #tpu.pipeline_mode<synchronous>, transform_indices = @transform_0, window_bounds = array<i64: 1, 256>}, {transform_indices = @transform_1, window_bounds = array<i64: 1, 8, 290>}, {pipeline_mode = #tpu.pipeline_mode<synchronous>, transform_indices = @transform_2, window_bounds = array<i64: 8, 72>}, {pipeline_mode = #tpu.pipeline_mode<synchronous>, transform_indices = @transform_3, window_bounds = array<i64: 8, 1>}, {transform_indices = @transform_4, window_bounds = array<i64: 1, 8, 256>}]} {
    %c0 = arith.constant 0 : index
    %c0_0 = arith.constant 0 : index
    %0 = vector.load %arg1[%c0, %c0_0] : memref<1x256xi32, #tpu.memory_space<vmem>>, vector<1x256xi32>
    %c0_1 = arith.constant 0 : index
    %c0_2 = arith.constant 0 : index
    %c0_3 = arith.constant 0 : index
    %1 = vector.load %arg2[%c0_1, %c0_2, %c0_3] : memref<1x8x290xf32, #tpu.memory_space<vmem>>, vector<1x8x290xf32>
    %2 = vector.shape_cast %1 : vector<1x8x290xf32> to vector<8x290xf32>
    %3 = vector.extract_strided_slice %2 {offsets = [0, 0], sizes = [8, 256], strides = [1, 1]} : vector<8x290xf32> to vector<8x256xf32>
    %c0_i32 = arith.constant 0 : i32
    %4 = vector.broadcast %c0_i32 : i32 to vector<1x256xi32>
    %5 = arith.cmpi sgt, %0, %4 : vector<1x256xi32>
    %cst = arith.constant 0.000000e+00 : f32
    %6 = vector.shape_cast %5 : vector<1x256xi1> to vector<1x256xi1>
    %7 = vector.broadcast %6 : vector<1x256xi1> to vector<8x256xi1>
    %8 = vector.broadcast %cst : f32 to vector<8x256xf32>
    %9 = arith.select %7, %3, %8 : vector<8x256xi1>, vector<8x256xf32>
    %10 = vector.extract_strided_slice %2 {offsets = [0, 1], sizes = [8, 256], strides = [1, 1]} : vector<8x290xf32> to vector<8x256xf32>
    %11 = vector.extract_strided_slice %2 {offsets = [0, 2], sizes = [8, 256], strides = [1, 1]} : vector<8x290xf32> to vector<8x256xf32>
    %c15_i32 = arith.constant 15 : i32
    %12 = vector.broadcast %c15_i32 : i32 to vector<1x256xi32>
    %13 = arith.cmpi slt, %0, %12 : vector<1x256xi32>
    %cst_4 = arith.constant 0.000000e+00 : f32
    %14 = vector.shape_cast %13 : vector<1x256xi1> to vector<1x256xi1>
    %15 = vector.broadcast %14 : vector<1x256xi1> to vector<8x256xi1>
    %16 = vector.broadcast %cst_4 : f32 to vector<8x256xf32>
    %17 = arith.select %15, %11, %16 : vector<8x256xi1>, vector<8x256xf32>
    %18 = vector.extract_strided_slice %2 {offsets = [0, 16], sizes = [8, 256], strides = [1, 1]} : vector<8x290xf32> to vector<8x256xf32>
    %c0_i32_5 = arith.constant 0 : i32
    %19 = vector.broadcast %c0_i32_5 : i32 to vector<1x256xi32>
    %20 = arith.cmpi sgt, %0, %19 : vector<1x256xi32>
    %cst_6 = arith.constant 0.000000e+00 : f32
    %21 = vector.shape_cast %20 : vector<1x256xi1> to vector<1x256xi1>
    %22 = vector.broadcast %21 : vector<1x256xi1> to vector<8x256xi1>
    %23 = vector.broadcast %cst_6 : f32 to vector<8x256xf32>
    %24 = arith.select %22, %18, %23 : vector<8x256xi1>, vector<8x256xf32>
    %25 = vector.extract_strided_slice %2 {offsets = [0, 17], sizes = [8, 256], strides = [1, 1]} : vector<8x290xf32> to vector<8x256xf32>
    %26 = vector.extract_strided_slice %2 {offsets = [0, 18], sizes = [8, 256], strides = [1, 1]} : vector<8x290xf32> to vector<8x256xf32>
    %c15_i32_7 = arith.constant 15 : i32
    %27 = vector.broadcast %c15_i32_7 : i32 to vector<1x256xi32>
    %28 = arith.cmpi slt, %0, %27 : vector<1x256xi32>
    %cst_8 = arith.constant 0.000000e+00 : f32
    %29 = vector.shape_cast %28 : vector<1x256xi1> to vector<1x256xi1>
    %30 = vector.broadcast %29 : vector<1x256xi1> to vector<8x256xi1>
    %31 = vector.broadcast %cst_8 : f32 to vector<8x256xf32>
    %32 = arith.select %30, %26, %31 : vector<8x256xi1>, vector<8x256xf32>
    %33 = vector.extract_strided_slice %2 {offsets = [0, 32], sizes = [8, 256], strides = [1, 1]} : vector<8x290xf32> to vector<8x256xf32>
    %c0_i32_9 = arith.constant 0 : i32
    %34 = vector.broadcast %c0_i32_9 : i32 to vector<1x256xi32>
    %35 = arith.cmpi sgt, %0, %34 : vector<1x256xi32>
    %cst_10 = arith.constant 0.000000e+00 : f32
    %36 = vector.shape_cast %35 : vector<1x256xi1> to vector<1x256xi1>
    %37 = vector.broadcast %36 : vector<1x256xi1> to vector<8x256xi1>
    %38 = vector.broadcast %cst_10 : f32 to vector<8x256xf32>
    %39 = arith.select %37, %33, %38 : vector<8x256xi1>, vector<8x256xf32>
    %40 = vector.extract_strided_slice %2 {offsets = [0, 33], sizes = [8, 256], strides = [1, 1]} : vector<8x290xf32> to vector<8x256xf32>
    %41 = vector.extract_strided_slice %2 {offsets = [0, 34], sizes = [8, 256], strides = [1, 1]} : vector<8x290xf32> to vector<8x256xf32>
    %c15_i32_11 = arith.constant 15 : i32
    %42 = vector.broadcast %c15_i32_11 : i32 to vector<1x256xi32>
    %43 = arith.cmpi slt, %0, %42 : vector<1x256xi32>
    %cst_12 = arith.constant 0.000000e+00 : f32
    %44 = vector.shape_cast %43 : vector<1x256xi1> to vector<1x256xi1>
    %45 = vector.broadcast %44 : vector<1x256xi1> to vector<8x256xi1>
    %46 = vector.broadcast %cst_12 : f32 to vector<8x256xf32>
    %47 = arith.select %45, %41, %46 : vector<8x256xi1>, vector<8x256xf32>
    %48 = tpu.concatenate %9, %10, %17, %24, %25, %32, %39, %40, %47 in 0 : vector<8x256xf32>, vector<8x256xf32>, vector<8x256xf32>, vector<8x256xf32>, vector<8x256xf32>, vector<8x256xf32>, vector<8x256xf32>, vector<8x256xf32>, vector<8x256xf32> -> vector<72x256xf32>
    %49 = arith.truncf %48 : vector<72x256xf32> to vector<72x256xbf16>
    %c0_13 = arith.constant 0 : index
    %c0_14 = arith.constant 0 : index
    %50 = vector.load %arg3[%c0_13, %c0_14] : memref<8x72xbf16, #tpu.memory_space<vmem>>, vector<8x72xbf16>
    %cst_15 = arith.constant dense<0.000000e+00> : vector<8x256xf32>
    %51 = tpu.matmul %50, %49, %cst_15 {dimension_numbers = #tpu.dot_dimension_numbers<[1], [0], [0], [1], [0, 0, 1, 1], [], []>} : vector<8x72xbf16>, vector<72x256xbf16>, vector<8x256xf32> -> vector<8x256xf32>
    %c0_16 = arith.constant 0 : index
    %c0_17 = arith.constant 0 : index
    %52 = vector.load %arg4[%c0_16, %c0_17] : memref<8x1xf32, #tpu.memory_space<vmem>>, vector<8x1xf32>
    %53 = vector.broadcast %52 : vector<8x1xf32> to vector<8x256xf32>
    %54 = arith.addf %51, %53 : vector<8x256xf32>
    %cst_18 = arith.constant 0.000000e+00 : f32
    %55 = vector.broadcast %cst_18 : f32 to vector<8x256xf32>
    %56 = arith.cmpf oge, %54, %55 : vector<8x256xf32>
    %cst_19 = arith.constant 0.00999999977 : f32
    %57 = vector.broadcast %cst_19 : f32 to vector<8x256xf32>
    %58 = arith.mulf %57, %54 : vector<8x256xf32>
    %59 = arith.select %56, %54, %58 : vector<8x256xi1>, vector<8x256xf32>
    %c0_20 = arith.constant 0 : index
    %c0_21 = arith.constant 0 : index
    %c0_22 = arith.constant 0 : index
    %60 = vector.load %arg5[%c0_20, %c0_21, %c0_22] : memref<1x8x256xf32, #tpu.memory_space<vmem>>, vector<1x8x256xf32>
    %61 = vector.shape_cast %60 : vector<1x8x256xf32> to vector<8x256xf32>
    %62 = vector.shape_cast %59 : vector<8x256xf32> to vector<1x8x256xf32>
    tpu.vector_store %arg5[%c0_20, %c0_21, %c0_22], %62 {strides = array<i32>} : memref<1x8x256xf32, #tpu.memory_space<vmem>>, vector<1x8x256xf32>,
    return
  }
  func.func @transform_0(%arg0: i32) -> (i32, i32) {
    %c0_i32 = arith.constant 0 : i32
    %c0_i32_0 = arith.constant 0 : i32
    %c0_i32_1 = arith.constant 0 : i32
    return %c0_i32, %c0_i32_0 : i32, i32
  }
  func.func @transform_1(%arg0: i32) -> (i32, i32, i32) {
    %c0_i32 = arith.constant 0 : i32
    %c0_i32_0 = arith.constant 0 : i32
    %c0_i32_1 = arith.constant 0 : i32
    return %arg0, %c0_i32, %c0_i32_0 : i32, i32, i32
  }
  func.func @transform_2(%arg0: i32) -> (i32, i32) {
    %c0_i32 = arith.constant 0 : i32
    %c0_i32_0 = arith.constant 0 : i32
    %c0_i32_1 = arith.constant 0 : i32
    return %c0_i32, %c0_i32_0 : i32, i32
  }
  func.func @transform_3(%arg0: i32) -> (i32, i32) {
    %c0_i32 = arith.constant 0 : i32
    %c0_i32_0 = arith.constant 0 : i32
    %c0_i32_1 = arith.constant 0 : i32
    return %c0_i32, %c0_i32_0 : i32, i32
  }
  func.func @transform_4(%arg0: i32) -> (i32, i32, i32) {
    %c0_i32 = arith.constant 0 : i32
    %c0_i32_0 = arith.constant 0 : i32
    %c0_i32_1 = arith.constant 0 : i32
    return %arg0, %c0_i32, %c0_i32_0 : i32, i32, i32
  }
}

module attributes {stable_mosaic.version = 11 : i64} {
  func.func @_conv2x2_kernel(%arg0: i32, %arg1: i32, %arg2: memref<1x32x64xf32, #tpu.memory_space<vmem>>, %arg3: memref<8x32xbf16, #tpu.memory_space<vmem>>, %arg4: memref<8x1xf32, #tpu.memory_space<vmem>>, %arg5: memref<1x8x64xf32, #tpu.memory_space<vmem>>) attributes {dimension_semantics = [#tpu.dimension_semantics<parallel>, #tpu.dimension_semantics<parallel>], iteration_bounds = array<i64: 2, 1>, scalar_prefetch = 0 : i64, scratch_operands = 0 : i64, tpu.core_type = #tpu.core_type<tc>, window_params = [{transform_indices = @transform_0, window_bounds = array<i64: 1, 32, 64>}, {pipeline_mode = #tpu.pipeline_mode<synchronous>, transform_indices = @transform_1, window_bounds = array<i64: 8, 32>}, {pipeline_mode = #tpu.pipeline_mode<synchronous>, transform_indices = @transform_2, window_bounds = array<i64: 8, 1>}, {transform_indices = @transform_3, window_bounds = array<i64: 1, 8, 64>}]} {
    %c0 = arith.constant 0 : index
    %c0_0 = arith.constant 0 : index
    %c0_1 = arith.constant 0 : index
    %0 = vector.load %arg2[%c0, %c0_0, %c0_1] : memref<1x32x64xf32, #tpu.memory_space<vmem>>, vector<1x32x64xf32>
    %1 = vector.shape_cast %0 : vector<1x32x64xf32> to vector<32x64xf32>
    %2 = arith.truncf %1 : vector<32x64xf32> to vector<32x64xbf16>
    %c0_2 = arith.constant 0 : index
    %c0_3 = arith.constant 0 : index
    %3 = vector.load %arg3[%c0_2, %c0_3] : memref<8x32xbf16, #tpu.memory_space<vmem>>, vector<8x32xbf16>
    %cst = arith.constant dense<0.000000e+00> : vector<8x64xf32>
    %4 = tpu.matmul %3, %2, %cst {dimension_numbers = #tpu.dot_dimension_numbers<[1], [0], [0], [1], [0, 0, 1, 1], [], []>} : vector<8x32xbf16>, vector<32x64xbf16>, vector<8x64xf32> -> vector<8x64xf32>
    %c0_4 = arith.constant 0 : index
    %c0_5 = arith.constant 0 : index
    %5 = vector.load %arg4[%c0_4, %c0_5] : memref<8x1xf32, #tpu.memory_space<vmem>>, vector<8x1xf32>
    %6 = vector.broadcast %5 : vector<8x1xf32> to vector<8x64xf32>
    %7 = arith.addf %4, %6 : vector<8x64xf32>
    %cst_6 = arith.constant 0.000000e+00 : f32
    %8 = vector.broadcast %cst_6 : f32 to vector<8x64xf32>
    %9 = arith.cmpf oge, %7, %8 : vector<8x64xf32>
    %cst_7 = arith.constant 0.00999999977 : f32
    %10 = vector.broadcast %cst_7 : f32 to vector<8x64xf32>
    %11 = arith.mulf %10, %7 : vector<8x64xf32>
    %12 = arith.select %9, %7, %11 : vector<8x64xi1>, vector<8x64xf32>
    %c0_8 = arith.constant 0 : index
    %c0_9 = arith.constant 0 : index
    %c0_10 = arith.constant 0 : index
    %13 = vector.load %arg5[%c0_8, %c0_9, %c0_10] : memref<1x8x64xf32, #tpu.memory_space<vmem>>, vector<1x8x64xf32>
    %14 = vector.shape_cast %13 : vector<1x8x64xf32> to vector<8x64xf32>
    %15 = vector.shape_cast %12 : vector<8x64xf32> to vector<1x8x64xf32>
    tpu.vector_store %arg5[%c0_8, %c0_9, %c0_10], %15 {strides = array<i32>} : memref<1x8x64xf32, #tpu.memory_space<vmem>>, vector<1x8x64xf32>,
    return
  }
  func.func @transform_0(%arg0: i32, %arg1: i32) -> (i32, i32, i32) {
    %c0_i32 = arith.constant 0 : i32
    %c0_i32_0 = arith.constant 0 : i32
    return %arg0, %c0_i32, %arg1 : i32, i32, i32
  }
  func.func @transform_1(%arg0: i32, %arg1: i32) -> (i32, i32) {
    %c0_i32 = arith.constant 0 : i32
    %c0_i32_0 = arith.constant 0 : i32
    %c0_i32_1 = arith.constant 0 : i32
    return %c0_i32, %c0_i32_0 : i32, i32
  }
  func.func @transform_2(%arg0: i32, %arg1: i32) -> (i32, i32) {
    %c0_i32 = arith.constant 0 : i32
    %c0_i32_0 = arith.constant 0 : i32
    %c0_i32_1 = arith.constant 0 : i32
    return %c0_i32, %c0_i32_0 : i32, i32
  }
  func.func @transform_3(%arg0: i32, %arg1: i32) -> (i32, i32, i32) {
    %c0_i32 = arith.constant 0 : i32
    %c0_i32_0 = arith.constant 0 : i32
    return %arg0, %c0_i32, %arg1 : i32, i32, i32
  }
}

module attributes {stable_mosaic.version = 11 : i64} {
  func.func @_conv3x3_kernel(%arg0: i32, %arg1: memref<1x64xi32, #tpu.memory_space<vmem>>, %arg2: memref<1x8x82xf32, #tpu.memory_space<vmem>>, %arg3: memref<8x72xbf16, #tpu.memory_space<vmem>>, %arg4: memref<8x1xf32, #tpu.memory_space<vmem>>, %arg5: memref<1x8x64xf32, #tpu.memory_space<vmem>>) attributes {dimension_semantics = [#tpu.dimension_semantics<parallel>], iteration_bounds = array<i64: 2>, scalar_prefetch = 0 : i64, scratch_operands = 0 : i64, tpu.core_type = #tpu.core_type<tc>, window_params = [{pipeline_mode = #tpu.pipeline_mode<synchronous>, transform_indices = @transform_0, window_bounds = array<i64: 1, 64>}, {transform_indices = @transform_1, window_bounds = array<i64: 1, 8, 82>}, {pipeline_mode = #tpu.pipeline_mode<synchronous>, transform_indices = @transform_2, window_bounds = array<i64: 8, 72>}, {pipeline_mode = #tpu.pipeline_mode<synchronous>, transform_indices = @transform_3, window_bounds = array<i64: 8, 1>}, {transform_indices = @transform_4, window_bounds = array<i64: 1, 8, 64>}]} {
    %c0 = arith.constant 0 : index
    %c0_0 = arith.constant 0 : index
    %0 = vector.load %arg1[%c0, %c0_0] : memref<1x64xi32, #tpu.memory_space<vmem>>, vector<1x64xi32>
    %c0_1 = arith.constant 0 : index
    %c0_2 = arith.constant 0 : index
    %c0_3 = arith.constant 0 : index
    %1 = vector.load %arg2[%c0_1, %c0_2, %c0_3] : memref<1x8x82xf32, #tpu.memory_space<vmem>>, vector<1x8x82xf32>
    %2 = vector.shape_cast %1 : vector<1x8x82xf32> to vector<8x82xf32>
    %3 = vector.extract_strided_slice %2 {offsets = [0, 0], sizes = [8, 64], strides = [1, 1]} : vector<8x82xf32> to vector<8x64xf32>
    %c0_i32 = arith.constant 0 : i32
    %4 = vector.broadcast %c0_i32 : i32 to vector<1x64xi32>
    %5 = arith.cmpi sgt, %0, %4 : vector<1x64xi32>
    %cst = arith.constant 0.000000e+00 : f32
    %6 = vector.shape_cast %5 : vector<1x64xi1> to vector<1x64xi1>
    %7 = vector.broadcast %6 : vector<1x64xi1> to vector<8x64xi1>
    %8 = vector.broadcast %cst : f32 to vector<8x64xf32>
    %9 = arith.select %7, %3, %8 : vector<8x64xi1>, vector<8x64xf32>
    %10 = vector.extract_strided_slice %2 {offsets = [0, 1], sizes = [8, 64], strides = [1, 1]} : vector<8x82xf32> to vector<8x64xf32>
    %11 = vector.extract_strided_slice %2 {offsets = [0, 2], sizes = [8, 64], strides = [1, 1]} : vector<8x82xf32> to vector<8x64xf32>
    %c7_i32 = arith.constant 7 : i32
    %12 = vector.broadcast %c7_i32 : i32 to vector<1x64xi32>
    %13 = arith.cmpi slt, %0, %12 : vector<1x64xi32>
    %cst_4 = arith.constant 0.000000e+00 : f32
    %14 = vector.shape_cast %13 : vector<1x64xi1> to vector<1x64xi1>
    %15 = vector.broadcast %14 : vector<1x64xi1> to vector<8x64xi1>
    %16 = vector.broadcast %cst_4 : f32 to vector<8x64xf32>
    %17 = arith.select %15, %11, %16 : vector<8x64xi1>, vector<8x64xf32>
    %18 = vector.extract_strided_slice %2 {offsets = [0, 8], sizes = [8, 64], strides = [1, 1]} : vector<8x82xf32> to vector<8x64xf32>
    %c0_i32_5 = arith.constant 0 : i32
    %19 = vector.broadcast %c0_i32_5 : i32 to vector<1x64xi32>
    %20 = arith.cmpi sgt, %0, %19 : vector<1x64xi32>
    %cst_6 = arith.constant 0.000000e+00 : f32
    %21 = vector.shape_cast %20 : vector<1x64xi1> to vector<1x64xi1>
    %22 = vector.broadcast %21 : vector<1x64xi1> to vector<8x64xi1>
    %23 = vector.broadcast %cst_6 : f32 to vector<8x64xf32>
    %24 = arith.select %22, %18, %23 : vector<8x64xi1>, vector<8x64xf32>
    %25 = vector.extract_strided_slice %2 {offsets = [0, 9], sizes = [8, 64], strides = [1, 1]} : vector<8x82xf32> to vector<8x64xf32>
    %26 = vector.extract_strided_slice %2 {offsets = [0, 10], sizes = [8, 64], strides = [1, 1]} : vector<8x82xf32> to vector<8x64xf32>
    %c7_i32_7 = arith.constant 7 : i32
    %27 = vector.broadcast %c7_i32_7 : i32 to vector<1x64xi32>
    %28 = arith.cmpi slt, %0, %27 : vector<1x64xi32>
    %cst_8 = arith.constant 0.000000e+00 : f32
    %29 = vector.shape_cast %28 : vector<1x64xi1> to vector<1x64xi1>
    %30 = vector.broadcast %29 : vector<1x64xi1> to vector<8x64xi1>
    %31 = vector.broadcast %cst_8 : f32 to vector<8x64xf32>
    %32 = arith.select %30, %26, %31 : vector<8x64xi1>, vector<8x64xf32>
    %33 = vector.extract_strided_slice %2 {offsets = [0, 16], sizes = [8, 64], strides = [1, 1]} : vector<8x82xf32> to vector<8x64xf32>
    %c0_i32_9 = arith.constant 0 : i32
    %34 = vector.broadcast %c0_i32_9 : i32 to vector<1x64xi32>
    %35 = arith.cmpi sgt, %0, %34 : vector<1x64xi32>
    %cst_10 = arith.constant 0.000000e+00 : f32
    %36 = vector.shape_cast %35 : vector<1x64xi1> to vector<1x64xi1>
    %37 = vector.broadcast %36 : vector<1x64xi1> to vector<8x64xi1>
    %38 = vector.broadcast %cst_10 : f32 to vector<8x64xf32>
    %39 = arith.select %37, %33, %38 : vector<8x64xi1>, vector<8x64xf32>
    %40 = vector.extract_strided_slice %2 {offsets = [0, 17], sizes = [8, 64], strides = [1, 1]} : vector<8x82xf32> to vector<8x64xf32>
    %41 = vector.extract_strided_slice %2 {offsets = [0, 18], sizes = [8, 64], strides = [1, 1]} : vector<8x82xf32> to vector<8x64xf32>
    %c7_i32_11 = arith.constant 7 : i32
    %42 = vector.broadcast %c7_i32_11 : i32 to vector<1x64xi32>
    %43 = arith.cmpi slt, %0, %42 : vector<1x64xi32>
    %cst_12 = arith.constant 0.000000e+00 : f32
    %44 = vector.shape_cast %43 : vector<1x64xi1> to vector<1x64xi1>
    %45 = vector.broadcast %44 : vector<1x64xi1> to vector<8x64xi1>
    %46 = vector.broadcast %cst_12 : f32 to vector<8x64xf32>
    %47 = arith.select %45, %41, %46 : vector<8x64xi1>, vector<8x64xf32>
    %48 = tpu.concatenate %9, %10, %17, %24, %25, %32, %39, %40, %47 in 0 : vector<8x64xf32>, vector<8x64xf32>, vector<8x64xf32>, vector<8x64xf32>, vector<8x64xf32>, vector<8x64xf32>, vector<8x64xf32>, vector<8x64xf32>, vector<8x64xf32> -> vector<72x64xf32>
    %49 = arith.truncf %48 : vector<72x64xf32> to vector<72x64xbf16>
    %c0_13 = arith.constant 0 : index
    %c0_14 = arith.constant 0 : index
    %50 = vector.load %arg3[%c0_13, %c0_14] : memref<8x72xbf16, #tpu.memory_space<vmem>>, vector<8x72xbf16>
    %cst_15 = arith.constant dense<0.000000e+00> : vector<8x64xf32>
    %51 = tpu.matmul %50, %49, %cst_15 {dimension_numbers = #tpu.dot_dimension_numbers<[1], [0], [0], [1], [0, 0, 1, 1], [], []>} : vector<8x72xbf16>, vector<72x64xbf16>, vector<8x64xf32> -> vector<8x64xf32>
    %c0_16 = arith.constant 0 : index
    %c0_17 = arith.constant 0 : index
    %52 = vector.load %arg4[%c0_16, %c0_17] : memref<8x1xf32, #tpu.memory_space<vmem>>, vector<8x1xf32>
    %53 = vector.broadcast %52 : vector<8x1xf32> to vector<8x64xf32>
    %54 = arith.addf %51, %53 : vector<8x64xf32>
    %cst_18 = arith.constant 0.000000e+00 : f32
    %55 = vector.broadcast %cst_18 : f32 to vector<8x64xf32>
    %56 = arith.cmpf oge, %54, %55 : vector<8x64xf32>
    %cst_19 = arith.constant 0.00999999977 : f32
    %57 = vector.broadcast %cst_19 : f32 to vector<8x64xf32>
    %58 = arith.mulf %57, %54 : vector<8x64xf32>
    %59 = arith.select %56, %54, %58 : vector<8x64xi1>, vector<8x64xf32>
    %c0_20 = arith.constant 0 : index
    %c0_21 = arith.constant 0 : index
    %c0_22 = arith.constant 0 : index
    %60 = vector.load %arg5[%c0_20, %c0_21, %c0_22] : memref<1x8x64xf32, #tpu.memory_space<vmem>>, vector<1x8x64xf32>
    %61 = vector.shape_cast %60 : vector<1x8x64xf32> to vector<8x64xf32>
    %62 = vector.shape_cast %59 : vector<8x64xf32> to vector<1x8x64xf32>
    tpu.vector_store %arg5[%c0_20, %c0_21, %c0_22], %62 {strides = array<i32>} : memref<1x8x64xf32, #tpu.memory_space<vmem>>, vector<1x8x64xf32>,
    return
  }
  func.func @transform_0(%arg0: i32) -> (i32, i32) {
    %c0_i32 = arith.constant 0 : i32
    %c0_i32_0 = arith.constant 0 : i32
    %c0_i32_1 = arith.constant 0 : i32
    return %c0_i32, %c0_i32_0 : i32, i32
  }
  func.func @transform_1(%arg0: i32) -> (i32, i32, i32) {
    %c0_i32 = arith.constant 0 : i32
    %c0_i32_0 = arith.constant 0 : i32
    %c0_i32_1 = arith.constant 0 : i32
    return %arg0, %c0_i32, %c0_i32_0 : i32, i32, i32
  }
  func.func @transform_2(%arg0: i32) -> (i32, i32) {
    %c0_i32 = arith.constant 0 : i32
    %c0_i32_0 = arith.constant 0 : i32
    %c0_i32_1 = arith.constant 0 : i32
    return %c0_i32, %c0_i32_0 : i32, i32
  }
  func.func @transform_3(%arg0: i32) -> (i32, i32) {
    %c0_i32 = arith.constant 0 : i32
    %c0_i32_0 = arith.constant 0 : i32
    %c0_i32_1 = arith.constant 0 : i32
    return %c0_i32, %c0_i32_0 : i32, i32
  }
  func.func @transform_4(%arg0: i32) -> (i32, i32, i32) {
    %c0_i32 = arith.constant 0 : i32
    %c0_i32_0 = arith.constant 0 : i32
    %c0_i32_1 = arith.constant 0 : i32
    return %arg0, %c0_i32, %c0_i32_0 : i32, i32, i32
  }
}

module attributes {stable_mosaic.version = 11 : i64} {
  func.func @_conv2x2_kernel(%arg0: i32, %arg1: i32, %arg2: memref<1x32x16xf32, #tpu.memory_space<vmem>>, %arg3: memref<8x32xbf16, #tpu.memory_space<vmem>>, %arg4: memref<8x1xf32, #tpu.memory_space<vmem>>, %arg5: memref<1x8x16xf32, #tpu.memory_space<vmem>>) attributes {dimension_semantics = [#tpu.dimension_semantics<parallel>, #tpu.dimension_semantics<parallel>], iteration_bounds = array<i64: 2, 1>, scalar_prefetch = 0 : i64, scratch_operands = 0 : i64, tpu.core_type = #tpu.core_type<tc>, window_params = [{transform_indices = @transform_0, window_bounds = array<i64: 1, 32, 16>}, {pipeline_mode = #tpu.pipeline_mode<synchronous>, transform_indices = @transform_1, window_bounds = array<i64: 8, 32>}, {pipeline_mode = #tpu.pipeline_mode<synchronous>, transform_indices = @transform_2, window_bounds = array<i64: 8, 1>}, {transform_indices = @transform_3, window_bounds = array<i64: 1, 8, 16>}]} {
    %c0 = arith.constant 0 : index
    %c0_0 = arith.constant 0 : index
    %c0_1 = arith.constant 0 : index
    %0 = vector.load %arg2[%c0, %c0_0, %c0_1] : memref<1x32x16xf32, #tpu.memory_space<vmem>>, vector<1x32x16xf32>
    %1 = vector.shape_cast %0 : vector<1x32x16xf32> to vector<32x16xf32>
    %2 = arith.truncf %1 : vector<32x16xf32> to vector<32x16xbf16>
    %c0_2 = arith.constant 0 : index
    %c0_3 = arith.constant 0 : index
    %3 = vector.load %arg3[%c0_2, %c0_3] : memref<8x32xbf16, #tpu.memory_space<vmem>>, vector<8x32xbf16>
    %cst = arith.constant dense<0.000000e+00> : vector<8x16xf32>
    %4 = tpu.matmul %3, %2, %cst {dimension_numbers = #tpu.dot_dimension_numbers<[1], [0], [0], [1], [0, 0, 1, 1], [], []>} : vector<8x32xbf16>, vector<32x16xbf16>, vector<8x16xf32> -> vector<8x16xf32>
    %c0_4 = arith.constant 0 : index
    %c0_5 = arith.constant 0 : index
    %5 = vector.load %arg4[%c0_4, %c0_5] : memref<8x1xf32, #tpu.memory_space<vmem>>, vector<8x1xf32>
    %6 = vector.broadcast %5 : vector<8x1xf32> to vector<8x16xf32>
    %7 = arith.addf %4, %6 : vector<8x16xf32>
    %cst_6 = arith.constant 0.000000e+00 : f32
    %8 = vector.broadcast %cst_6 : f32 to vector<8x16xf32>
    %9 = arith.cmpf oge, %7, %8 : vector<8x16xf32>
    %cst_7 = arith.constant 0.00999999977 : f32
    %10 = vector.broadcast %cst_7 : f32 to vector<8x16xf32>
    %11 = arith.mulf %10, %7 : vector<8x16xf32>
    %12 = arith.select %9, %7, %11 : vector<8x16xi1>, vector<8x16xf32>
    %c0_8 = arith.constant 0 : index
    %c0_9 = arith.constant 0 : index
    %c0_10 = arith.constant 0 : index
    %13 = vector.load %arg5[%c0_8, %c0_9, %c0_10] : memref<1x8x16xf32, #tpu.memory_space<vmem>>, vector<1x8x16xf32>
    %14 = vector.shape_cast %13 : vector<1x8x16xf32> to vector<8x16xf32>
    %15 = vector.shape_cast %12 : vector<8x16xf32> to vector<1x8x16xf32>
    tpu.vector_store %arg5[%c0_8, %c0_9, %c0_10], %15 {strides = array<i32>} : memref<1x8x16xf32, #tpu.memory_space<vmem>>, vector<1x8x16xf32>,
    return
  }
  func.func @transform_0(%arg0: i32, %arg1: i32) -> (i32, i32, i32) {
    %c0_i32 = arith.constant 0 : i32
    %c0_i32_0 = arith.constant 0 : i32
    return %arg0, %c0_i32, %arg1 : i32, i32, i32
  }
  func.func @transform_1(%arg0: i32, %arg1: i32) -> (i32, i32) {
    %c0_i32 = arith.constant 0 : i32
    %c0_i32_0 = arith.constant 0 : i32
    %c0_i32_1 = arith.constant 0 : i32
    return %c0_i32, %c0_i32_0 : i32, i32
  }
  func.func @transform_2(%arg0: i32, %arg1: i32) -> (i32, i32) {
    %c0_i32 = arith.constant 0 : i32
    %c0_i32_0 = arith.constant 0 : i32
    %c0_i32_1 = arith.constant 0 : i32
    return %c0_i32, %c0_i32_0 : i32, i32
  }
  func.func @transform_3(%arg0: i32, %arg1: i32) -> (i32, i32, i32) {
    %c0_i32 = arith.constant 0 : i32
    %c0_i32_0 = arith.constant 0 : i32
    return %arg0, %c0_i32, %arg1 : i32, i32, i32
  }
}

module attributes {stable_mosaic.version = 11 : i64} {
  func.func @_conv3x3_kernel(%arg0: i32, %arg1: memref<1x16xi32, #tpu.memory_space<vmem>>, %arg2: memref<1x8x26xf32, #tpu.memory_space<vmem>>, %arg3: memref<8x72xbf16, #tpu.memory_space<vmem>>, %arg4: memref<8x1xf32, #tpu.memory_space<vmem>>, %arg5: memref<1x8x16xf32, #tpu.memory_space<vmem>>) attributes {dimension_semantics = [#tpu.dimension_semantics<parallel>], iteration_bounds = array<i64: 2>, scalar_prefetch = 0 : i64, scratch_operands = 0 : i64, tpu.core_type = #tpu.core_type<tc>, window_params = [{pipeline_mode = #tpu.pipeline_mode<synchronous>, transform_indices = @transform_0, window_bounds = array<i64: 1, 16>}, {transform_indices = @transform_1, window_bounds = array<i64: 1, 8, 26>}, {pipeline_mode = #tpu.pipeline_mode<synchronous>, transform_indices = @transform_2, window_bounds = array<i64: 8, 72>}, {pipeline_mode = #tpu.pipeline_mode<synchronous>, transform_indices = @transform_3, window_bounds = array<i64: 8, 1>}, {transform_indices = @transform_4, window_bounds = array<i64: 1, 8, 16>}]} {
    %c0 = arith.constant 0 : index
    %c0_0 = arith.constant 0 : index
    %0 = vector.load %arg1[%c0, %c0_0] : memref<1x16xi32, #tpu.memory_space<vmem>>, vector<1x16xi32>
    %c0_1 = arith.constant 0 : index
    %c0_2 = arith.constant 0 : index
    %c0_3 = arith.constant 0 : index
    %1 = vector.load %arg2[%c0_1, %c0_2, %c0_3] : memref<1x8x26xf32, #tpu.memory_space<vmem>>, vector<1x8x26xf32>
    %2 = vector.shape_cast %1 : vector<1x8x26xf32> to vector<8x26xf32>
    %3 = vector.extract_strided_slice %2 {offsets = [0, 0], sizes = [8, 16], strides = [1, 1]} : vector<8x26xf32> to vector<8x16xf32>
    %c0_i32 = arith.constant 0 : i32
    %4 = vector.broadcast %c0_i32 : i32 to vector<1x16xi32>
    %5 = arith.cmpi sgt, %0, %4 : vector<1x16xi32>
    %cst = arith.constant 0.000000e+00 : f32
    %6 = vector.shape_cast %5 : vector<1x16xi1> to vector<1x16xi1>
    %7 = vector.broadcast %6 : vector<1x16xi1> to vector<8x16xi1>
    %8 = vector.broadcast %cst : f32 to vector<8x16xf32>
    %9 = arith.select %7, %3, %8 : vector<8x16xi1>, vector<8x16xf32>
    %10 = vector.extract_strided_slice %2 {offsets = [0, 1], sizes = [8, 16], strides = [1, 1]} : vector<8x26xf32> to vector<8x16xf32>
    %11 = vector.extract_strided_slice %2 {offsets = [0, 2], sizes = [8, 16], strides = [1, 1]} : vector<8x26xf32> to vector<8x16xf32>
    %c3_i32 = arith.constant 3 : i32
    %12 = vector.broadcast %c3_i32 : i32 to vector<1x16xi32>
    %13 = arith.cmpi slt, %0, %12 : vector<1x16xi32>
    %cst_4 = arith.constant 0.000000e+00 : f32
    %14 = vector.shape_cast %13 : vector<1x16xi1> to vector<1x16xi1>
    %15 = vector.broadcast %14 : vector<1x16xi1> to vector<8x16xi1>
    %16 = vector.broadcast %cst_4 : f32 to vector<8x16xf32>
    %17 = arith.select %15, %11, %16 : vector<8x16xi1>, vector<8x16xf32>
    %18 = vector.extract_strided_slice %2 {offsets = [0, 4], sizes = [8, 16], strides = [1, 1]} : vector<8x26xf32> to vector<8x16xf32>
    %c0_i32_5 = arith.constant 0 : i32
    %19 = vector.broadcast %c0_i32_5 : i32 to vector<1x16xi32>
    %20 = arith.cmpi sgt, %0, %19 : vector<1x16xi32>
    %cst_6 = arith.constant 0.000000e+00 : f32
    %21 = vector.shape_cast %20 : vector<1x16xi1> to vector<1x16xi1>
    %22 = vector.broadcast %21 : vector<1x16xi1> to vector<8x16xi1>
    %23 = vector.broadcast %cst_6 : f32 to vector<8x16xf32>
    %24 = arith.select %22, %18, %23 : vector<8x16xi1>, vector<8x16xf32>
    %25 = vector.extract_strided_slice %2 {offsets = [0, 5], sizes = [8, 16], strides = [1, 1]} : vector<8x26xf32> to vector<8x16xf32>
    %26 = vector.extract_strided_slice %2 {offsets = [0, 6], sizes = [8, 16], strides = [1, 1]} : vector<8x26xf32> to vector<8x16xf32>
    %c3_i32_7 = arith.constant 3 : i32
    %27 = vector.broadcast %c3_i32_7 : i32 to vector<1x16xi32>
    %28 = arith.cmpi slt, %0, %27 : vector<1x16xi32>
    %cst_8 = arith.constant 0.000000e+00 : f32
    %29 = vector.shape_cast %28 : vector<1x16xi1> to vector<1x16xi1>
    %30 = vector.broadcast %29 : vector<1x16xi1> to vector<8x16xi1>
    %31 = vector.broadcast %cst_8 : f32 to vector<8x16xf32>
    %32 = arith.select %30, %26, %31 : vector<8x16xi1>, vector<8x16xf32>
    %33 = vector.extract_strided_slice %2 {offsets = [0, 8], sizes = [8, 16], strides = [1, 1]} : vector<8x26xf32> to vector<8x16xf32>
    %c0_i32_9 = arith.constant 0 : i32
    %34 = vector.broadcast %c0_i32_9 : i32 to vector<1x16xi32>
    %35 = arith.cmpi sgt, %0, %34 : vector<1x16xi32>
    %cst_10 = arith.constant 0.000000e+00 : f32
    %36 = vector.shape_cast %35 : vector<1x16xi1> to vector<1x16xi1>
    %37 = vector.broadcast %36 : vector<1x16xi1> to vector<8x16xi1>
    %38 = vector.broadcast %cst_10 : f32 to vector<8x16xf32>
    %39 = arith.select %37, %33, %38 : vector<8x16xi1>, vector<8x16xf32>
    %40 = vector.extract_strided_slice %2 {offsets = [0, 9], sizes = [8, 16], strides = [1, 1]} : vector<8x26xf32> to vector<8x16xf32>
    %41 = vector.extract_strided_slice %2 {offsets = [0, 10], sizes = [8, 16], strides = [1, 1]} : vector<8x26xf32> to vector<8x16xf32>
    %c3_i32_11 = arith.constant 3 : i32
    %42 = vector.broadcast %c3_i32_11 : i32 to vector<1x16xi32>
    %43 = arith.cmpi slt, %0, %42 : vector<1x16xi32>
    %cst_12 = arith.constant 0.000000e+00 : f32
    %44 = vector.shape_cast %43 : vector<1x16xi1> to vector<1x16xi1>
    %45 = vector.broadcast %44 : vector<1x16xi1> to vector<8x16xi1>
    %46 = vector.broadcast %cst_12 : f32 to vector<8x16xf32>
    %47 = arith.select %45, %41, %46 : vector<8x16xi1>, vector<8x16xf32>
    %48 = tpu.concatenate %9, %10, %17, %24, %25, %32, %39, %40, %47 in 0 : vector<8x16xf32>, vector<8x16xf32>, vector<8x16xf32>, vector<8x16xf32>, vector<8x16xf32>, vector<8x16xf32>, vector<8x16xf32>, vector<8x16xf32>, vector<8x16xf32> -> vector<72x16xf32>
    %49 = arith.truncf %48 : vector<72x16xf32> to vector<72x16xbf16>
    %c0_13 = arith.constant 0 : index
    %c0_14 = arith.constant 0 : index
    %50 = vector.load %arg3[%c0_13, %c0_14] : memref<8x72xbf16, #tpu.memory_space<vmem>>, vector<8x72xbf16>
    %cst_15 = arith.constant dense<0.000000e+00> : vector<8x16xf32>
    %51 = tpu.matmul %50, %49, %cst_15 {dimension_numbers = #tpu.dot_dimension_numbers<[1], [0], [0], [1], [0, 0, 1, 1], [], []>} : vector<8x72xbf16>, vector<72x16xbf16>, vector<8x16xf32> -> vector<8x16xf32>
    %c0_16 = arith.constant 0 : index
    %c0_17 = arith.constant 0 : index
    %52 = vector.load %arg4[%c0_16, %c0_17] : memref<8x1xf32, #tpu.memory_space<vmem>>, vector<8x1xf32>
    %53 = vector.broadcast %52 : vector<8x1xf32> to vector<8x16xf32>
    %54 = arith.addf %51, %53 : vector<8x16xf32>
    %cst_18 = arith.constant 0.000000e+00 : f32
    %55 = vector.broadcast %cst_18 : f32 to vector<8x16xf32>
    %56 = arith.cmpf oge, %54, %55 : vector<8x16xf32>
    %cst_19 = arith.constant 0.00999999977 : f32
    %57 = vector.broadcast %cst_19 : f32 to vector<8x16xf32>
    %58 = arith.mulf %57, %54 : vector<8x16xf32>
    %59 = arith.select %56, %54, %58 : vector<8x16xi1>, vector<8x16xf32>
    %c0_20 = arith.constant 0 : index
    %c0_21 = arith.constant 0 : index
    %c0_22 = arith.constant 0 : index
    %60 = vector.load %arg5[%c0_20, %c0_21, %c0_22] : memref<1x8x16xf32, #tpu.memory_space<vmem>>, vector<1x8x16xf32>
    %61 = vector.shape_cast %60 : vector<1x8x16xf32> to vector<8x16xf32>
    %62 = vector.shape_cast %59 : vector<8x16xf32> to vector<1x8x16xf32>
    tpu.vector_store %arg5[%c0_20, %c0_21, %c0_22], %62 {strides = array<i32>} : memref<1x8x16xf32, #tpu.memory_space<vmem>>, vector<1x8x16xf32>,
    return
  }
  func.func @transform_0(%arg0: i32) -> (i32, i32) {
    %c0_i32 = arith.constant 0 : i32
    %c0_i32_0 = arith.constant 0 : i32
    %c0_i32_1 = arith.constant 0 : i32
    return %c0_i32, %c0_i32_0 : i32, i32
  }
  func.func @transform_1(%arg0: i32) -> (i32, i32, i32) {
    %c0_i32 = arith.constant 0 : i32
    %c0_i32_0 = arith.constant 0 : i32
    %c0_i32_1 = arith.constant 0 : i32
    return %arg0, %c0_i32, %c0_i32_0 : i32, i32, i32
  }
  func.func @transform_2(%arg0: i32) -> (i32, i32) {
    %c0_i32 = arith.constant 0 : i32
    %c0_i32_0 = arith.constant 0 : i32
    %c0_i32_1 = arith.constant 0 : i32
    return %c0_i32, %c0_i32_0 : i32, i32
  }
  func.func @transform_3(%arg0: i32) -> (i32, i32) {
    %c0_i32 = arith.constant 0 : i32
    %c0_i32_0 = arith.constant 0 : i32
    %c0_i32_1 = arith.constant 0 : i32
    return %c0_i32, %c0_i32_0 : i32, i32
  }
  func.func @transform_4(%arg0: i32) -> (i32, i32, i32) {
    %c0_i32 = arith.constant 0 : i32
    %c0_i32_0 = arith.constant 0 : i32
    %c0_i32_1 = arith.constant 0 : i32
    return %arg0, %c0_i32, %c0_i32_0 : i32, i32, i32
  }
}

module attributes {stable_mosaic.version = 11 : i64} {
  func.func @_conv2x2_kernel(%arg0: i32, %arg1: i32, %arg2: memref<1x32x4xf32, #tpu.memory_space<vmem>>, %arg3: memref<8x32xbf16, #tpu.memory_space<vmem>>, %arg4: memref<8x1xf32, #tpu.memory_space<vmem>>, %arg5: memref<1x8x4xf32, #tpu.memory_space<vmem>>) attributes {dimension_semantics = [#tpu.dimension_semantics<parallel>, #tpu.dimension_semantics<parallel>], iteration_bounds = array<i64: 2, 1>, scalar_prefetch = 0 : i64, scratch_operands = 0 : i64, tpu.core_type = #tpu.core_type<tc>, window_params = [{transform_indices = @transform_0, window_bounds = array<i64: 1, 32, 4>}, {pipeline_mode = #tpu.pipeline_mode<synchronous>, transform_indices = @transform_1, window_bounds = array<i64: 8, 32>}, {pipeline_mode = #tpu.pipeline_mode<synchronous>, transform_indices = @transform_2, window_bounds = array<i64: 8, 1>}, {transform_indices = @transform_3, window_bounds = array<i64: 1, 8, 4>}]} {
    %c0 = arith.constant 0 : index
    %c0_0 = arith.constant 0 : index
    %c0_1 = arith.constant 0 : index
    %0 = vector.load %arg2[%c0, %c0_0, %c0_1] : memref<1x32x4xf32, #tpu.memory_space<vmem>>, vector<1x32x4xf32>
    %1 = vector.shape_cast %0 : vector<1x32x4xf32> to vector<32x4xf32>
    %2 = arith.truncf %1 : vector<32x4xf32> to vector<32x4xbf16>
    %c0_2 = arith.constant 0 : index
    %c0_3 = arith.constant 0 : index
    %3 = vector.load %arg3[%c0_2, %c0_3] : memref<8x32xbf16, #tpu.memory_space<vmem>>, vector<8x32xbf16>
    %cst = arith.constant dense<0.000000e+00> : vector<8x4xf32>
    %4 = tpu.matmul %3, %2, %cst {dimension_numbers = #tpu.dot_dimension_numbers<[1], [0], [0], [1], [0, 0, 1, 1], [], []>} : vector<8x32xbf16>, vector<32x4xbf16>, vector<8x4xf32> -> vector<8x4xf32>
    %c0_4 = arith.constant 0 : index
    %c0_5 = arith.constant 0 : index
    %5 = vector.load %arg4[%c0_4, %c0_5] : memref<8x1xf32, #tpu.memory_space<vmem>>, vector<8x1xf32>
    %6 = vector.broadcast %5 : vector<8x1xf32> to vector<8x4xf32>
    %7 = arith.addf %4, %6 : vector<8x4xf32>
    %cst_6 = arith.constant 0.000000e+00 : f32
    %8 = vector.broadcast %cst_6 : f32 to vector<8x4xf32>
    %9 = arith.cmpf oge, %7, %8 : vector<8x4xf32>
    %cst_7 = arith.constant 0.00999999977 : f32
    %10 = vector.broadcast %cst_7 : f32 to vector<8x4xf32>
    %11 = arith.mulf %10, %7 : vector<8x4xf32>
    %12 = arith.select %9, %7, %11 : vector<8x4xi1>, vector<8x4xf32>
    %c0_8 = arith.constant 0 : index
    %c0_9 = arith.constant 0 : index
    %c0_10 = arith.constant 0 : index
    %13 = vector.load %arg5[%c0_8, %c0_9, %c0_10] : memref<1x8x4xf32, #tpu.memory_space<vmem>>, vector<1x8x4xf32>
    %14 = vector.shape_cast %13 : vector<1x8x4xf32> to vector<8x4xf32>
    %15 = vector.shape_cast %12 : vector<8x4xf32> to vector<1x8x4xf32>
    tpu.vector_store %arg5[%c0_8, %c0_9, %c0_10], %15 {strides = array<i32>} : memref<1x8x4xf32, #tpu.memory_space<vmem>>, vector<1x8x4xf32>,
    return
  }
  func.func @transform_0(%arg0: i32, %arg1: i32) -> (i32, i32, i32) {
    %c0_i32 = arith.constant 0 : i32
    %c0_i32_0 = arith.constant 0 : i32
    return %arg0, %c0_i32, %arg1 : i32, i32, i32
  }
  func.func @transform_1(%arg0: i32, %arg1: i32) -> (i32, i32) {
    %c0_i32 = arith.constant 0 : i32
    %c0_i32_0 = arith.constant 0 : i32
    %c0_i32_1 = arith.constant 0 : i32
    return %c0_i32, %c0_i32_0 : i32, i32
  }
  func.func @transform_2(%arg0: i32, %arg1: i32) -> (i32, i32) {
    %c0_i32 = arith.constant 0 : i32
    %c0_i32_0 = arith.constant 0 : i32
    %c0_i32_1 = arith.constant 0 : i32
    return %c0_i32, %c0_i32_0 : i32, i32
  }
  func.func @transform_3(%arg0: i32, %arg1: i32) -> (i32, i32, i32) {
    %c0_i32 = arith.constant 0 : i32
    %c0_i32_0 = arith.constant 0 : i32
    return %arg0, %c0_i32, %arg1 : i32, i32, i32
  }
}

module attributes {stable_mosaic.version = 11 : i64} {
  func.func @_conv3x3_kernel(%arg0: i32, %arg1: memref<1x4xi32, #tpu.memory_space<vmem>>, %arg2: memref<1x8x10xf32, #tpu.memory_space<vmem>>, %arg3: memref<8x72xbf16, #tpu.memory_space<vmem>>, %arg4: memref<8x1xf32, #tpu.memory_space<vmem>>, %arg5: memref<1x8x4xf32, #tpu.memory_space<vmem>>) attributes {dimension_semantics = [#tpu.dimension_semantics<parallel>], iteration_bounds = array<i64: 2>, scalar_prefetch = 0 : i64, scratch_operands = 0 : i64, tpu.core_type = #tpu.core_type<tc>, window_params = [{pipeline_mode = #tpu.pipeline_mode<synchronous>, transform_indices = @transform_0, window_bounds = array<i64: 1, 4>}, {transform_indices = @transform_1, window_bounds = array<i64: 1, 8, 10>}, {pipeline_mode = #tpu.pipeline_mode<synchronous>, transform_indices = @transform_2, window_bounds = array<i64: 8, 72>}, {pipeline_mode = #tpu.pipeline_mode<synchronous>, transform_indices = @transform_3, window_bounds = array<i64: 8, 1>}, {transform_indices = @transform_4, window_bounds = array<i64: 1, 8, 4>}]} {
    %c0 = arith.constant 0 : index
    %c0_0 = arith.constant 0 : index
    %0 = vector.load %arg1[%c0, %c0_0] : memref<1x4xi32, #tpu.memory_space<vmem>>, vector<1x4xi32>
    %c0_1 = arith.constant 0 : index
    %c0_2 = arith.constant 0 : index
    %c0_3 = arith.constant 0 : index
    %1 = vector.load %arg2[%c0_1, %c0_2, %c0_3] : memref<1x8x10xf32, #tpu.memory_space<vmem>>, vector<1x8x10xf32>
    %2 = vector.shape_cast %1 : vector<1x8x10xf32> to vector<8x10xf32>
    %3 = vector.extract_strided_slice %2 {offsets = [0, 0], sizes = [8, 4], strides = [1, 1]} : vector<8x10xf32> to vector<8x4xf32>
    %c0_i32 = arith.constant 0 : i32
    %4 = vector.broadcast %c0_i32 : i32 to vector<1x4xi32>
    %5 = arith.cmpi sgt, %0, %4 : vector<1x4xi32>
    %cst = arith.constant 0.000000e+00 : f32
    %6 = vector.shape_cast %5 : vector<1x4xi1> to vector<1x4xi1>
    %7 = vector.broadcast %6 : vector<1x4xi1> to vector<8x4xi1>
    %8 = vector.broadcast %cst : f32 to vector<8x4xf32>
    %9 = arith.select %7, %3, %8 : vector<8x4xi1>, vector<8x4xf32>
    %10 = vector.extract_strided_slice %2 {offsets = [0, 1], sizes = [8, 4], strides = [1, 1]} : vector<8x10xf32> to vector<8x4xf32>
    %11 = vector.extract_strided_slice %2 {offsets = [0, 2], sizes = [8, 4], strides = [1, 1]} : vector<8x10xf32> to vector<8x4xf32>
    %c1_i32 = arith.constant 1 : i32
    %12 = vector.broadcast %c1_i32 : i32 to vector<1x4xi32>
    %13 = arith.cmpi slt, %0, %12 : vector<1x4xi32>
    %cst_4 = arith.constant 0.000000e+00 : f32
    %14 = vector.shape_cast %13 : vector<1x4xi1> to vector<1x4xi1>
    %15 = vector.broadcast %14 : vector<1x4xi1> to vector<8x4xi1>
    %16 = vector.broadcast %cst_4 : f32 to vector<8x4xf32>
    %17 = arith.select %15, %11, %16 : vector<8x4xi1>, vector<8x4xf32>
    %18 = vector.extract_strided_slice %2 {offsets = [0, 2], sizes = [8, 4], strides = [1, 1]} : vector<8x10xf32> to vector<8x4xf32>
    %c0_i32_5 = arith.constant 0 : i32
    %19 = vector.broadcast %c0_i32_5 : i32 to vector<1x4xi32>
    %20 = arith.cmpi sgt, %0, %19 : vector<1x4xi32>
    %cst_6 = arith.constant 0.000000e+00 : f32
    %21 = vector.shape_cast %20 : vector<1x4xi1> to vector<1x4xi1>
    %22 = vector.broadcast %21 : vector<1x4xi1> to vector<8x4xi1>
    %23 = vector.broadcast %cst_6 : f32 to vector<8x4xf32>
    %24 = arith.select %22, %18, %23 : vector<8x4xi1>, vector<8x4xf32>
    %25 = vector.extract_strided_slice %2 {offsets = [0, 3], sizes = [8, 4], strides = [1, 1]} : vector<8x10xf32> to vector<8x4xf32>
    %26 = vector.extract_strided_slice %2 {offsets = [0, 4], sizes = [8, 4], strides = [1, 1]} : vector<8x10xf32> to vector<8x4xf32>
    %c1_i32_7 = arith.constant 1 : i32
    %27 = vector.broadcast %c1_i32_7 : i32 to vector<1x4xi32>
    %28 = arith.cmpi slt, %0, %27 : vector<1x4xi32>
    %cst_8 = arith.constant 0.000000e+00 : f32
    %29 = vector.shape_cast %28 : vector<1x4xi1> to vector<1x4xi1>
    %30 = vector.broadcast %29 : vector<1x4xi1> to vector<8x4xi1>
    %31 = vector.broadcast %cst_8 : f32 to vector<8x4xf32>
    %32 = arith.select %30, %26, %31 : vector<8x4xi1>, vector<8x4xf32>
    %33 = vector.extract_strided_slice %2 {offsets = [0, 4], sizes = [8, 4], strides = [1, 1]} : vector<8x10xf32> to vector<8x4xf32>
    %c0_i32_9 = arith.constant 0 : i32
    %34 = vector.broadcast %c0_i32_9 : i32 to vector<1x4xi32>
    %35 = arith.cmpi sgt, %0, %34 : vector<1x4xi32>
    %cst_10 = arith.constant 0.000000e+00 : f32
    %36 = vector.shape_cast %35 : vector<1x4xi1> to vector<1x4xi1>
    %37 = vector.broadcast %36 : vector<1x4xi1> to vector<8x4xi1>
    %38 = vector.broadcast %cst_10 : f32 to vector<8x4xf32>
    %39 = arith.select %37, %33, %38 : vector<8x4xi1>, vector<8x4xf32>
    %40 = vector.extract_strided_slice %2 {offsets = [0, 5], sizes = [8, 4], strides = [1, 1]} : vector<8x10xf32> to vector<8x4xf32>
    %41 = vector.extract_strided_slice %2 {offsets = [0, 6], sizes = [8, 4], strides = [1, 1]} : vector<8x10xf32> to vector<8x4xf32>
    %c1_i32_11 = arith.constant 1 : i32
    %42 = vector.broadcast %c1_i32_11 : i32 to vector<1x4xi32>
    %43 = arith.cmpi slt, %0, %42 : vector<1x4xi32>
    %cst_12 = arith.constant 0.000000e+00 : f32
    %44 = vector.shape_cast %43 : vector<1x4xi1> to vector<1x4xi1>
    %45 = vector.broadcast %44 : vector<1x4xi1> to vector<8x4xi1>
    %46 = vector.broadcast %cst_12 : f32 to vector<8x4xf32>
    %47 = arith.select %45, %41, %46 : vector<8x4xi1>, vector<8x4xf32>
    %48 = tpu.concatenate %9, %10, %17, %24, %25, %32, %39, %40, %47 in 0 : vector<8x4xf32>, vector<8x4xf32>, vector<8x4xf32>, vector<8x4xf32>, vector<8x4xf32>, vector<8x4xf32>, vector<8x4xf32>, vector<8x4xf32>, vector<8x4xf32> -> vector<72x4xf32>
    %49 = arith.truncf %48 : vector<72x4xf32> to vector<72x4xbf16>
    %c0_13 = arith.constant 0 : index
    %c0_14 = arith.constant 0 : index
    %50 = vector.load %arg3[%c0_13, %c0_14] : memref<8x72xbf16, #tpu.memory_space<vmem>>, vector<8x72xbf16>
    %cst_15 = arith.constant dense<0.000000e+00> : vector<8x4xf32>
    %51 = tpu.matmul %50, %49, %cst_15 {dimension_numbers = #tpu.dot_dimension_numbers<[1], [0], [0], [1], [0, 0, 1, 1], [], []>} : vector<8x72xbf16>, vector<72x4xbf16>, vector<8x4xf32> -> vector<8x4xf32>
    %c0_16 = arith.constant 0 : index
    %c0_17 = arith.constant 0 : index
    %52 = vector.load %arg4[%c0_16, %c0_17] : memref<8x1xf32, #tpu.memory_space<vmem>>, vector<8x1xf32>
    %53 = vector.broadcast %52 : vector<8x1xf32> to vector<8x4xf32>
    %54 = arith.addf %51, %53 : vector<8x4xf32>
    %cst_18 = arith.constant 0.000000e+00 : f32
    %55 = vector.broadcast %cst_18 : f32 to vector<8x4xf32>
    %56 = arith.cmpf oge, %54, %55 : vector<8x4xf32>
    %cst_19 = arith.constant 0.00999999977 : f32
    %57 = vector.broadcast %cst_19 : f32 to vector<8x4xf32>
    %58 = arith.mulf %57, %54 : vector<8x4xf32>
    %59 = arith.select %56, %54, %58 : vector<8x4xi1>, vector<8x4xf32>
    %c0_20 = arith.constant 0 : index
    %c0_21 = arith.constant 0 : index
    %c0_22 = arith.constant 0 : index
    %60 = vector.load %arg5[%c0_20, %c0_21, %c0_22] : memref<1x8x4xf32, #tpu.memory_space<vmem>>, vector<1x8x4xf32>
    %61 = vector.shape_cast %60 : vector<1x8x4xf32> to vector<8x4xf32>
    %62 = vector.shape_cast %59 : vector<8x4xf32> to vector<1x8x4xf32>
    tpu.vector_store %arg5[%c0_20, %c0_21, %c0_22], %62 {strides = array<i32>} : memref<1x8x4xf32, #tpu.memory_space<vmem>>, vector<1x8x4xf32>,
    return
  }
  func.func @transform_0(%arg0: i32) -> (i32, i32) {
    %c0_i32 = arith.constant 0 : i32
    %c0_i32_0 = arith.constant 0 : i32
    %c0_i32_1 = arith.constant 0 : i32
    return %c0_i32, %c0_i32_0 : i32, i32
  }
  func.func @transform_1(%arg0: i32) -> (i32, i32, i32) {
    %c0_i32 = arith.constant 0 : i32
    %c0_i32_0 = arith.constant 0 : i32
    %c0_i32_1 = arith.constant 0 : i32
    return %arg0, %c0_i32, %c0_i32_0 : i32, i32, i32
  }
  func.func @transform_2(%arg0: i32) -> (i32, i32) {
    %c0_i32 = arith.constant 0 : i32
    %c0_i32_0 = arith.constant 0 : i32
    %c0_i32_1 = arith.constant 0 : i32
    return %c0_i32, %c0_i32_0 : i32, i32
  }
  func.func @transform_3(%arg0: i32) -> (i32, i32) {
    %c0_i32 = arith.constant 0 : i32
    %c0_i32_0 = arith.constant 0 : i32
    %c0_i32_1 = arith.constant 0 : i32
    return %c0_i32, %c0_i32_0 : i32, i32
  }
  func.func @transform_4(%arg0: i32) -> (i32, i32, i32) {
    %c0_i32 = arith.constant 0 : i32
    %c0_i32_0 = arith.constant 0 : i32
    %c0_i32_1 = arith.constant 0 : i32
    return %arg0, %c0_i32, %c0_i32_0 : i32, i32, i32
  }
}

module attributes {stable_mosaic.version = 11 : i64} {
  func.func @_conv2x2_kernel(%arg0: i32, %arg1: i32, %arg2: memref<1x32x1xf32, #tpu.memory_space<vmem>>, %arg3: memref<8x32xbf16, #tpu.memory_space<vmem>>, %arg4: memref<8x1xf32, #tpu.memory_space<vmem>>, %arg5: memref<1x8x1xf32, #tpu.memory_space<vmem>>) attributes {dimension_semantics = [#tpu.dimension_semantics<parallel>, #tpu.dimension_semantics<parallel>], iteration_bounds = array<i64: 2, 1>, scalar_prefetch = 0 : i64, scratch_operands = 0 : i64, tpu.core_type = #tpu.core_type<tc>, window_params = [{transform_indices = @transform_0, window_bounds = array<i64: 1, 32, 1>}, {pipeline_mode = #tpu.pipeline_mode<synchronous>, transform_indices = @transform_1, window_bounds = array<i64: 8, 32>}, {pipeline_mode = #tpu.pipeline_mode<synchronous>, transform_indices = @transform_2, window_bounds = array<i64: 8, 1>}, {transform_indices = @transform_3, window_bounds = array<i64: 1, 8, 1>}]} {
    %c0 = arith.constant 0 : index
    %c0_0 = arith.constant 0 : index
    %c0_1 = arith.constant 0 : index
    %0 = vector.load %arg2[%c0, %c0_0, %c0_1] : memref<1x32x1xf32, #tpu.memory_space<vmem>>, vector<1x32x1xf32>
    %1 = vector.shape_cast %0 : vector<1x32x1xf32> to vector<32x1xf32>
    %2 = arith.truncf %1 : vector<32x1xf32> to vector<32x1xbf16>
    %c0_2 = arith.constant 0 : index
    %c0_3 = arith.constant 0 : index
    %3 = vector.load %arg3[%c0_2, %c0_3] : memref<8x32xbf16, #tpu.memory_space<vmem>>, vector<8x32xbf16>
    %cst = arith.constant dense<0.000000e+00> : vector<8x1xf32>
    %4 = tpu.matmul %3, %2, %cst {dimension_numbers = #tpu.dot_dimension_numbers<[1], [0], [0], [1], [0, 0, 1, 1], [], []>} : vector<8x32xbf16>, vector<32x1xbf16>, vector<8x1xf32> -> vector<8x1xf32>
    %c0_4 = arith.constant 0 : index
    %c0_5 = arith.constant 0 : index
    %5 = vector.load %arg4[%c0_4, %c0_5] : memref<8x1xf32, #tpu.memory_space<vmem>>, vector<8x1xf32>
    %6 = arith.addf %4, %5 : vector<8x1xf32>
    %cst_6 = arith.constant 0.000000e+00 : f32
    %7 = vector.broadcast %cst_6 : f32 to vector<8x1xf32>
    %8 = arith.cmpf oge, %6, %7 : vector<8x1xf32>
    %cst_7 = arith.constant 0.00999999977 : f32
    %9 = vector.broadcast %cst_7 : f32 to vector<8x1xf32>
    %10 = arith.mulf %9, %6 : vector<8x1xf32>
    %11 = arith.select %8, %6, %10 : vector<8x1xi1>, vector<8x1xf32>
    %c0_8 = arith.constant 0 : index
    %c0_9 = arith.constant 0 : index
    %c0_10 = arith.constant 0 : index
    %12 = vector.load %arg5[%c0_8, %c0_9, %c0_10] : memref<1x8x1xf32, #tpu.memory_space<vmem>>, vector<1x8x1xf32>
    %13 = vector.shape_cast %12 : vector<1x8x1xf32> to vector<8x1xf32>
    %14 = vector.shape_cast %11 : vector<8x1xf32> to vector<1x8x1xf32>
    tpu.vector_store %arg5[%c0_8, %c0_9, %c0_10], %14 {strides = array<i32>} : memref<1x8x1xf32, #tpu.memory_space<vmem>>, vector<1x8x1xf32>,
    return
  }
  func.func @transform_0(%arg0: i32, %arg1: i32) -> (i32, i32, i32) {
    %c0_i32 = arith.constant 0 : i32
    %c0_i32_0 = arith.constant 0 : i32
    return %arg0, %c0_i32, %arg1 : i32, i32, i32
  }
  func.func @transform_1(%arg0: i32, %arg1: i32) -> (i32, i32) {
    %c0_i32 = arith.constant 0 : i32
    %c0_i32_0 = arith.constant 0 : i32
    %c0_i32_1 = arith.constant 0 : i32
    return %c0_i32, %c0_i32_0 : i32, i32
  }
  func.func @transform_2(%arg0: i32, %arg1: i32) -> (i32, i32) {
    %c0_i32 = arith.constant 0 : i32
    %c0_i32_0 = arith.constant 0 : i32
    %c0_i32_1 = arith.constant 0 : i32
    return %c0_i32, %c0_i32_0 : i32, i32
  }
  func.func @transform_3(%arg0: i32, %arg1: i32) -> (i32, i32, i32) {
    %c0_i32 = arith.constant 0 : i32
    %c0_i32_0 = arith.constant 0 : i32
    return %arg0, %c0_i32, %arg1 : i32, i32, i32
  }
}

</mosaic_0001>

<llo_original>
// kernel: encoder_apply.11
$region0: #{encoder_apply.11}
  #allocation0 [shape = 'u32[]', space=smem, size = 0x4, offset = 0x4, fixed_abs, tag = 'smem constant byte address 0x4 - core index']
  #allocation1 [shape = 'u32[72,128]{1,0:T(1,128)}', space=vmem, size = 0x9000, scoped, tag = 'internal scratch']
  %s0 = inlined_call_operand.vmem [shape: f32[2,32,256], index: 0, kind: input, shape index: {}]
  %s1 = inlined_call_operand.vmem [shape: bf16[8,32], index: 1, kind: input, shape index: {}]
  %s2 = inlined_call_operand.vmem [shape: f32[8,1], index: 2, kind: input, shape index: {}]
  %s3 = inlined_call_operand.vmem [shape: f32[2,8,256], index: 3, kind: output, shape index: {}]
  %s4 = sld [smem:[#allocation0]]
  $region45: #{encoder_apply.11} parent=0
    _
  %s6 = ssub.s32 1, %s4
  %s7 = scalar_select 0, %s6, %s4
  loop: start=0, step=1, limit=4
  $region2: #{encoder_apply.11} parent=0 // loop_pre_header
    _
  $region3: #{encoder_apply.11} parent=0 // loop_header
    %s9 = sphi 0, %s13
    %p10 = scmp.ge.s32.totalorder %s9, 4
    %s16 = sphi 0, %s28
    %s17 = sphi 0, %s24
    %s18 = sphi 0, %s16
    %s19 = sphi 0, %s17
    %s20 = sphi 0, %s18
    %s21 = sphi 0, %s19
    %s33 = sphi 0, %s35
    %s36 = sphi 0, %s33
    %s37 = sphi 0, %s36
    %s53 = sphi 0, %s37
    %s57 = sphi 0, %s57
    %s59 = sphi 0, %s57
    %s60 = sphi 0, %s59
    %s74 = sphi 0, %s60
    %s78 = sphi 0, %s78
    %s80 = sphi 0, %s78
    %s81 = sphi 0, %s80
    %s95 = sphi 0, %s81
    %s103 = sphi 0, %s105
    %s106 = sphi 0, %s103
    %s107 = sphi 0, %s106
    %s123 = sphi 0, %s107
  $region4: #{encoder_apply.11} parent=0 // loop_header_branch
    %12 = sbr.rel (%p10) target = $region8
  $region5: #{encoder_apply.11} parent=0 // loop_body
    %s14 = ssub.s32 %s9, 1
    %s15 = ssub.s32 %s9, 2
    %s22 = sadd.s32 1, %s17
    %p23 = scmp.ge.s32.totalorder %s22, 1
    %s24 = scalar_select %p23, 0, %s22
    %s25 = sadd.s32 1, %s16
    %s26 = scalar_select %p23, %s25, %s16
    %p27 = scmp.ge.s32.totalorder %s26, 2
    %s28 = scalar_select %p27, 0, %s26
    %s29 = ssub.s32 %s16, %s28
    %s30 = ssub.s32 %s17, %s24
    %s31 = sor.u32 %s29, %s30
    %p32 = scmp.eq.s32.totalorder %s31, 0
    %s34 = sadd.s32 %s33, 1
    %s35 = scalar_select %p32, %s33, %s34
    %p38 = pneg %p32
    %p39 = scmp.eq.s32.totalorder %s9, 1
    %p40 = por %p38, %p39
    %p41 = scmp.ne.s32.totalorder %s33, %s36
    %p42 = scmp.eq.s32.totalorder %s9, 0
    %p43 = por %p41, %p42
    %p44 = scmp.ne.s32.totalorder %s33, %s36
    %p45 = scmp.eq.s32.totalorder %s14, 1
    %p46 = por %p44, %p45
    %p47 = scmp.ne.s32.totalorder %s36, %s37
    %p48 = scmp.eq.s32.totalorder %s14, 0
    %p49 = por %p47, %p48
    %p50 = scmp.ne.s32.totalorder %s36, %s37
    %p51 = scmp.eq.s32.totalorder %s15, 1
    %p52 = por %p50, %p51
    %p54 = scmp.ne.s32.totalorder %s37, %s53
    %p55 = scmp.eq.s32.totalorder %s15, 0
    %p56 = por %p54, %p55
    %s58 = sadd.s32 %s57, 1
    %p61 = scmp.eq.s32.totalorder %s9, 1
    %p62 = scmp.ne.s32.totalorder %s57, %s59
    %p63 = scmp.eq.s32.totalorder %s9, 0
    %p64 = por %p62, %p63
    %p65 = scmp.ne.s32.totalorder %s57, %s59
    %p66 = scmp.eq.s32.totalorder %s14, 1
    %p67 = por %p65, %p66
    %p68 = scmp.ne.s32.totalorder %s59, %s60
    %p69 = scmp.eq.s32.totalorder %s14, 0
    %p70 = por %p68, %p69
    %p71 = scmp.ne.s32.totalorder %s59, %s60
    %p72 = scmp.eq.s32.totalorder %s15, 1
    %p73 = por %p71, %p72
    %p75 = scmp.ne.s32.totalorder %s60, %s74
    %p76 = scmp.eq.s32.totalorder %s15, 0
    %p77 = por %p75, %p76
    %s79 = sadd.s32 %s78, 1
    %p82 = scmp.eq.s32.totalorder %s9, 1
    %p83 = scmp.ne.s32.totalorder %s78, %s80
    %p84 = scmp.eq.s32.totalorder %s9, 0
    %p85 = por %p83, %p84
    %p86 = scmp.ne.s32.totalorder %s78, %s80
    %p87 = scmp.eq.s32.totalorder %s14, 1
    %p88 = por %p86, %p87
    %p89 = scmp.ne.s32.totalorder %s80, %s81
    %p90 = scmp.eq.s32.totalorder %s14, 0
    %p91 = por %p89, %p90
    %p92 = scmp.ne.s32.totalorder %s80, %s81
    %p93 = scmp.eq.s32.totalorder %s15, 1
    %p94 = por %p92, %p93
    %p96 = scmp.ne.s32.totalorder %s81, %s95
    %p97 = scmp.eq.s32.totalorder %s15, 0
    %p98 = por %p96, %p97
    %s99 = ssub.s32 %s16, %s28
    %s100 = ssub.s32 %s17, %s24
    %s101 = sor.u32 %s99, %s100
    %p102 = scmp.eq.s32.totalorder %s101, 0
    %s104 = sadd.s32 %s103, 1
    %s105 = scalar_select %p102, %s103, %s104
    %p108 = pneg %p102
    %p109 = scmp.eq.s32.totalorder %s9, 1
    %p110 = por %p108, %p109
    %p111 = scmp.ne.s32.totalorder %s103, %s106
    %p112 = scmp.eq.s32.totalorder %s9, 0
    %p113 = por %p111, %p112
    %p114 = scmp.ne.s32.totalorder %s103, %s106
    %p115 = scmp.eq.s32.totalorder %s14, 1
    %p116 = por %p114, %p115
    %p117 = scmp.ne.s32.totalorder %s106, %s107
    %p118 = scmp.eq.s32.totalorder %s14, 0
    %p119 = por %p117, %p118
    %p120 = scmp.ne.s32.totalorder %s106, %s107
    %p121 = scmp.eq.s32.totalorder %s15, 1
    %p122 = por %p120, %p121
    %p124 = scmp.ne.s32.totalorder %s107, %s123
    %p125 = scmp.eq.s32.totalorder %s15, 0
    %p126 = por %p124, %p125
    %p127 = scmp.le.s32.totalorder 1, %s9
    %p128 = scmp.lt.s32.totalorder %s9, 3
    %p129 = pnand %p127, %p128
    %p130 = pneg %p129
    // Predicated region
    $region9: #{encoder_apply.11} parent=5 // pred_check
      _
    $region10: #{encoder_apply.11} parent=5 // pred_check_branch
      %132 = sbr.rel (%p129) target = $region12
    $region11: #{encoder_apply.11} parent=5 // pred_region
      %s133 = ssub.s32 %s9, 1
      // Predicated region
      $region13: #{encoder_apply.11} parent=11 // pred_check
        %p134 = pneg %p70
      $region14: #{encoder_apply.11} parent=11 // pred_check_branch
        %136 = sbr.rel (%p134) target = $region16
      $region15: #{encoder_apply.11} parent=11 // pred_region
        _
      $region16: #{encoder_apply.11} parent=11 // pred_fallthru
        _
      // Predicated region
      $region17: #{encoder_apply.11} parent=11 // pred_check
        %p137 = pneg %p91
      $region18: #{encoder_apply.11} parent=11 // pred_check_branch
        %139 = sbr.rel (%p137) target = $region20
      $region19: #{encoder_apply.11} parent=11 // pred_region
        _
      $region20: #{encoder_apply.11} parent=11 // pred_fallthru
        _
    $region12: #{encoder_apply.11} parent=5 // pred_fallthru
      _
    %p140 = scmp.lt.s32.totalorder %s9, 2
    // Predicated region
    $region21: #{encoder_apply.11} parent=5 // pred_check
      %p141 = pneg %p140
    $region22: #{encoder_apply.11} parent=5 // pred_check_branch
      %143 = sbr.rel (%p141) target = $region24
    $region23: #{encoder_apply.11} parent=5 // pred_region
      // Predicated region
      $region25: #{encoder_apply.11} parent=23 // pred_check
        %p144 = pneg %p43
      $region26: #{encoder_apply.11} parent=23 // pred_check_branch
        %146 = sbr.rel (%p144) target = $region28
      $region27: #{encoder_apply.11} parent=23 // pred_region
        %s147 = smul.u32 2, %s17
        %p148 = scmp.lt.s32.totalorder %s16, 1
        %s149 = scalar_select %p148, %s16, 1
        %p150 = scmp.lt.s32.totalorder %s147, 1
        %s151 = scalar_select %p150, %s147, 1
        %s152 = smul.addr %s149, 8
        %s153 = sadd.s32 %s151, %s152
        %s154 = smul.addr %s153, 8
        %s155 = scalar_lea.vmem %s0, %s154
        %s156 = smul.u32 2, %s17
      $region28: #{encoder_apply.11} parent=23 // pred_fallthru
        _
    $region24: #{encoder_apply.11} parent=5 // pred_fallthru
      _
    %p157 = scmp.le.s32.totalorder 1, %s9
    %p158 = scmp.lt.s32.totalorder %s9, 3
    %p159 = pnand %p157, %p158
    %p160 = pneg %p159
    // Predicated region
    $region29: #{encoder_apply.11} parent=5 // pred_check
      _
    $region30: #{encoder_apply.11} parent=5 // pred_check_branch
      %162 = sbr.rel (%p159) target = $region32
    $region31: #{encoder_apply.11} parent=5 // pred_region
      %s163 = ssub.s32 %s9, 1
      %s164 = smul.u32 2, %s19
      %p165 = scmp.lt.s32.totalorder %s18, 1
      %s166 = scalar_select %p165, %s18, 1
      %p167 = scmp.lt.s32.totalorder %s164, 1
      %s168 = scalar_select %p167, %s164, 1
      %s169 = smul.addr %s166, 8
      %s170 = sadd.s32 %s168, %s169
      %s171 = smul.addr %s170, 8
      %s172 = scalar_lea.vmem %s0, %s171
      %p173 = pneg %p49
      %p174 = pneg %p46
      %p175 = pneg %p70
      %p176 = pneg %p67
      %p177 = pneg %p91
      %p178 = pneg %p88
      %p179 = pneg %p119
      %p180 = pneg %p116
      %s181 = smul.u32 2, %s19
      %p182 = scmp.lt.s32.totalorder %s18, 1
      %s183 = scalar_select %p182, %s18, 1
      %p184 = scmp.lt.s32.totalorder %s181, 1
      %s185 = scalar_select %p184, %s181, 1
      %s186 = smul.addr %s183, 2
      %s187 = sadd.s32 %s185, %s186
      %s188 = smul.addr %s187, 8
      %s189 = scalar_lea.vmem %s3, %s188
      %s190 = smul.u32 2, %s19
      %p191 = scmp.lt.s32.totalorder %s18, 1
      %s192 = scalar_select %p191, %s18, 1
      %p193 = scmp.lt.s32.totalorder %s190, 1
      %s194 = scalar_select %p193, %s190, 1
      %s195 = smul.addr %s192, 8
      %s196 = sadd.s32 %s194, %s195
      %s197 = smul.addr %s196, 8
      %s198 = scalar_lea.vmem %s0, %s197
      %s199 = smul.u32 2, %s19
      %s200 = smul.u32 2, %s19
      %p201 = scmp.lt.s32.totalorder %s18, 1
      %s202 = scalar_select %p201, %s18, 1
      %p203 = scmp.lt.s32.totalorder %s200, 1
      %s204 = scalar_select %p203, %s200, 1
      %s205 = smul.addr %s202, 2
      %s206 = sadd.s32 %s204, %s205
      %s207 = smul.addr %s206, 8
      %s208 = scalar_lea.vmem %s3, %s207
      %s209 = smul.u32 2, %s19
      %v211 = vld [vmem:[%s198] sm:$0xff]
      %v212 = vld [vmem:[%s198 + $0x8] sm:$0xff]
      %v213 = vld [vmem:[%s198 + $0x10] sm:$0xff]
      %v214 = vld [vmem:[%s198 + $0x18] sm:$0xff]
      %v215 = vld [vmem:[%s198 + $0x20] sm:$0xff]
      %v216 = vld [vmem:[%s198 + $0x28] sm:$0xff]
      %v217 = vld [vmem:[%s198 + $0x30] sm:$0xff]
      %v218 = vld [vmem:[%s198 + $0x38] sm:$0xff]
      %v219 = vpack.c.bf16 %v213, %v211
      %v220 = vpack.c.bf16 %v214, %v212
      %v221 = vpack.c.bf16 %v217, %v215
      %v222 = vpack.c.bf16 %v218, %v216
      %v223 = vld [vmem:[%s1] sm:$0xf]
      %v224 = vld [vmem:[%s2] sm:$0xff]
      %226 = vset.pattern.permute.xlu0 0
      %227 = vperm.xlu0 %226, %v224
      %v228 = vpop.permute.xlu0 %227
      %vm230 = vcmask 261120
      %v232 = vsel %vm230, %v223, 0
      %234 = vmatpush.bf16.msra.mxu0 0
      %235 = vmatpush.bf16.msra.mxu0 0
      %236 = vmatpush.bf16.msra.mxu0 0
      %237 = vmatpush.bf16.msra.mxu0 0
      %238 = vmatpush.bf16.msra.mxu0 0
      %239 = vmatpush.bf16.msra.mxu0 0
      %240 = vmatpush.bf16.msra.mxu0 %v221
      %241 = vmatpush.bf16.msra.mxu0 %v219
      %242 = vmatmul.bf16.gmra.mxu0 %v232
      %v243 = vpop.f32.mrf.mxu0
      %v244 = vadd.f32 %v228, %v243
      %v245 = vpop.f32.mrf.mxu0
      %246 = vdwg.mxu0
      %247 = vmatpush.bf16.msra.mxu0 0
      %248 = vmatpush.bf16.msra.mxu0 0
      %249 = vmatpush.bf16.msra.mxu0 0
      %250 = vmatpush.bf16.msra.mxu0 0
      %251 = vmatpush.bf16.msra.mxu0 0
      %252 = vmatpush.bf16.msra.mxu0 0
      %253 = vmatpush.bf16.msra.mxu0 %v222
      %254 = vmatpush.bf16.msra.mxu0 %v220
      %255 = vmatmul.bf16.gmra.mxu0 %v232
      %v256 = vpop.f32.mrf.mxu0
      %v257 = vadd.f32 %v228, %v256
      %v258 = vpop.f32.mrf.mxu0
      %259 = vdwg.mxu0
      %vm260 = vcmp.ge.f32.partialorder %v244, 0.0
      %vm261 = vcmp.ge.f32.partialorder %v257, 0.0
      %v262 = vmul.f32 %v244, 0.01
      %v263 = vmul.f32 %v257, 0.01
      %v264 = vsel %vm260, %v244, %v262
      %v265 = vsel %vm261, %v257, %v263
      %266 = vst [vmem:[%s208] sm:$0xff] %v264
      %267 = vst [vmem:[%s208 + $0x8] sm:$0xff] %v265
      %s268 = smul.u32 2, %s19
      %p269 = scmp.lt.s32.totalorder %s18, 1
      %s270 = scalar_select %p269, %s18, 1
      %p271 = scmp.lt.s32.totalorder %s268, 1
      %s272 = scalar_select %p271, %s268, 1
      %s273 = smul.addr %s270, 2
      %s274 = sadd.s32 %s272, %s273
      %s275 = smul.addr %s274, 8
      %s276 = scalar_lea.vmem %s3, %s275
      // Predicated region
      $region33: #{encoder_apply.11} parent=31 // pred_check
        %p277 = pneg %p116
      $region34: #{encoder_apply.11} parent=31 // pred_check_branch
        %279 = sbr.rel (%p277) target = $region36
      $region35: #{encoder_apply.11} parent=31 // pred_region
        %s280 = smul.u32 2, %s19
      $region36: #{encoder_apply.11} parent=31 // pred_fallthru
        _
    $region32: #{encoder_apply.11} parent=5 // pred_fallthru
      _
    %p281 = scmp.le.s32.totalorder 2, %s9
    // Predicated region
    $region37: #{encoder_apply.11} parent=5 // pred_check
      %p282 = pneg %p281
    $region38: #{encoder_apply.11} parent=5 // pred_check_branch
      %284 = sbr.rel (%p282) target = $region40
    $region39: #{encoder_apply.11} parent=5 // pred_region
      %s285 = ssub.s32 %s9, 2
      // Predicated region
      $region41: #{encoder_apply.11} parent=39 // pred_check
        %p286 = pneg %p122
      $region42: #{encoder_apply.11} parent=39 // pred_check_branch
        %288 = sbr.rel (%p286) target = $region44
      $region43: #{encoder_apply.11} parent=39 // pred_region
        %s289 = smul.u32 2, %s21
        %p290 = scmp.lt.s32.totalorder %s20, 1
        %s291 = scalar_select %p290, %s20, 1
        %p292 = scmp.lt.s32.totalorder %s289, 1
        %s293 = scalar_select %p292, %s289, 1
        %s294 = smul.addr %s291, 2
        %s295 = sadd.s32 %s293, %s294
        %s296 = smul.addr %s295, 8
        %s297 = scalar_lea.vmem %s3, %s296
      $region44: #{encoder_apply.11} parent=39 // pred_fallthru
        _
    $region40: #{encoder_apply.11} parent=5 // pred_fallthru
      _
  $region6: #{encoder_apply.11} parent=0 // loop_footer
    %s13 = sadd.s32 1, %s9
  $region7: #{encoder_apply.11} parent=0 // loop_footer_branch
    %8 = sbr.rel target = $region3
  $region8: #{encoder_apply.11} parent=0 // loop_exit
    _

// kernel: encoder_apply.10
$region0: #{encoder_apply.10}
  #allocation0 [shape = 'u32[]', space=smem, size = 0x4, offset = 0x4, fixed_abs, tag = 'smem constant byte address 0x4 - core index']
  #allocation1 [shape = 'u32[72,128]{1,0:T(1,128)}', space=vmem, size = 0x9000, scoped, tag = 'internal scratch']
  %s0 = inlined_call_operand.vmem [shape: s32[1,1024], index: 0, kind: input, shape index: {}]
  %s1 = inlined_call_operand.vmem [shape: f32[2,3,1090], index: 1, kind: input, shape index: {}]
  %s2 = inlined_call_operand.vmem [shape: bf16[8,27], index: 2, kind: input, shape index: {}]
  %s3 = inlined_call_operand.vmem [shape: f32[8,1], index: 3, kind: input, shape index: {}]
  %s4 = inlined_call_operand.vmem [shape: f32[2,8,1024], index: 4, kind: output, shape index: {}]
  %s5 = sld [smem:[#allocation0]]
  $region49: #{encoder_apply.10} parent=0
    _
  %s7 = ssub.s32 1, %s5
  %s8 = scalar_select 0, %s7, %s5
  loop: start=0, step=1, limit=4
  $region2: #{encoder_apply.10} parent=0 // loop_pre_header
    _
  $region3: #{encoder_apply.10} parent=0 // loop_header
    %s10 = sphi 0, %s14
    %p11 = scmp.ge.s32.totalorder %s10, 4
    %s18 = sphi 0, %s18
    %s20 = sphi 0, %s18
    %s21 = sphi 0, %s20
    %s35 = sphi 0, %s21
    %s41 = sphi 0, %s43
    %s44 = sphi 0, %s41
    %s45 = sphi 0, %s44
    %s61 = sphi 0, %s45
    %s65 = sphi 0, %s65
    %s67 = sphi 0, %s65
    %s68 = sphi 0, %s67
    %s82 = sphi 0, %s68
    %s86 = sphi 0, %s86
    %s88 = sphi 0, %s86
    %s89 = sphi 0, %s88
    %s103 = sphi 0, %s89
    %s109 = sphi 0, %s111
    %s112 = sphi 0, %s109
    %s113 = sphi 0, %s112
    %s129 = sphi 0, %s113
  $region4: #{encoder_apply.10} parent=0 // loop_header_branch
    %13 = sbr.rel (%p11) target = $region8
  $region5: #{encoder_apply.10} parent=0 // loop_body
    %s15 = ssub.s32 %s10, 1
    %s16 = ssub.s32 %s10, 2
    %s17 = sadd.s32 %s10, 1
    %s19 = sadd.s32 %s18, 1
    %p22 = scmp.eq.s32.totalorder %s10, 1
    %p23 = scmp.ne.s32.totalorder %s18, %s20
    %p24 = scmp.eq.s32.totalorder %s10, 0
    %p25 = por %p23, %p24
    %p26 = scmp.ne.s32.totalorder %s18, %s20
    %p27 = scmp.eq.s32.totalorder %s15, 1
    %p28 = por %p26, %p27
    %p29 = scmp.ne.s32.totalorder %s20, %s21
    %p30 = scmp.eq.s32.totalorder %s15, 0
    %p31 = por %p29, %p30
    %p32 = scmp.ne.s32.totalorder %s20, %s21
    %p33 = scmp.eq.s32.totalorder %s16, 1
    %p34 = por %p32, %p33
    %p36 = scmp.ne.s32.totalorder %s21, %s35
    %p37 = scmp.eq.s32.totalorder %s16, 0
    %p38 = por %p36, %p37
    %s39 = ssub.s32 %s10, %s17
    %p40 = scmp.eq.s32.totalorder %s39, 0
    %s42 = sadd.s32 %s41, 1
    %s43 = scalar_select %p40, %s41, %s42
    %p46 = pneg %p40
    %p47 = scmp.eq.s32.totalorder %s10, 1
    %p48 = por %p46, %p47
    %p49 = scmp.ne.s32.totalorder %s41, %s44
    %p50 = scmp.eq.s32.totalorder %s10, 0
    %p51 = por %p49, %p50
    %p52 = scmp.ne.s32.totalorder %s41, %s44
    %p53 = scmp.eq.s32.totalorder %s15, 1
    %p54 = por %p52, %p53
    %p55 = scmp.ne.s32.totalorder %s44, %s45
    %p56 = scmp.eq.s32.totalorder %s15, 0
    %p57 = por %p55, %p56
    %p58 = scmp.ne.s32.totalorder %s44, %s45
    %p59 = scmp.eq.s32.totalorder %s16, 1
    %p60 = por %p58, %p59
    %p62 = scmp.ne.s32.totalorder %s45, %s61
    %p63 = scmp.eq.s32.totalorder %s16, 0
    %p64 = por %p62, %p63
    %s66 = sadd.s32 %s65, 1
    %p69 = scmp.eq.s32.totalorder %s10, 1
    %p70 = scmp.ne.s32.totalorder %s65, %s67
    %p71 = scmp.eq.s32.totalorder %s10, 0
    %p72 = por %p70, %p71
    %p73 = scmp.ne.s32.totalorder %s65, %s67
    %p74 = scmp.eq.s32.totalorder %s15, 1
    %p75 = por %p73, %p74
    %p76 = scmp.ne.s32.totalorder %s67, %s68
    %p77 = scmp.eq.s32.totalorder %s15, 0
    %p78 = por %p76, %p77
    %p79 = scmp.ne.s32.totalorder %s67, %s68
    %p80 = scmp.eq.s32.totalorder %s16, 1
    %p81 = por %p79, %p80
    %p83 = scmp.ne.s32.totalorder %s68, %s82
    %p84 = scmp.eq.s32.totalorder %s16, 0
    %p85 = por %p83, %p84
    %s87 = sadd.s32 %s86, 1
    %p90 = scmp.eq.s32.totalorder %s10, 1
    %p91 = scmp.ne.s32.totalorder %s86, %s88
    %p92 = scmp.eq.s32.totalorder %s10, 0
    %p93 = por %p91, %p92
    %p94 = scmp.ne.s32.totalorder %s86, %s88
    %p95 = scmp.eq.s32.totalorder %s15, 1
    %p96 = por %p94, %p95
    %p97 = scmp.ne.s32.totalorder %s88, %s89
    %p98 = scmp.eq.s32.totalorder %s15, 0
    %p99 = por %p97, %p98
    %p100 = scmp.ne.s32.totalorder %s88, %s89
    %p101 = scmp.eq.s32.totalorder %s16, 1
    %p102 = por %p100, %p101
    %p104 = scmp.ne.s32.totalorder %s89, %s103
    %p105 = scmp.eq.s32.totalorder %s16, 0
    %p106 = por %p104, %p105
    %s107 = ssub.s32 %s10, %s17
    %p108 = scmp.eq.s32.totalorder %s107, 0
    %s110 = sadd.s32 %s109, 1
    %s111 = scalar_select %p108, %s109, %s110
    %p114 = pneg %p108
    %p115 = scmp.eq.s32.totalorder %s10, 1
    %p116 = por %p114, %p115
    %p117 = scmp.ne.s32.totalorder %s109, %s112
    %p118 = scmp.eq.s32.totalorder %s10, 0
    %p119 = por %p117, %p118
    %p120 = scmp.ne.s32.totalorder %s109, %s112
    %p121 = scmp.eq.s32.totalorder %s15, 1
    %p122 = por %p120, %p121
    %p123 = scmp.ne.s32.totalorder %s112, %s113
    %p124 = scmp.eq.s32.totalorder %s15, 0
    %p125 = por %p123, %p124
    %p126 = scmp.ne.s32.totalorder %s112, %s113
    %p127 = scmp.eq.s32.totalorder %s16, 1
    %p128 = por %p126, %p127
    %p130 = scmp.ne.s32.totalorder %s113, %s129
    %p131 = scmp.eq.s32.totalorder %s16, 0
    %p132 = por %p130, %p131
    %p133 = scmp.le.s32.totalorder 1, %s10
    %p134 = scmp.lt.s32.totalorder %s10, 3
    %p135 = pnand %p133, %p134
    %p136 = pneg %p135
    // Predicated region
    $region9: #{encoder_apply.10} parent=5 // pred_check
      _
    $region10: #{encoder_apply.10} parent=5 // pred_check_branch
      %138 = sbr.rel (%p135) target = $region12
    $region11: #{encoder_apply.10} parent=5 // pred_region
      %s139 = ssub.s32 %s10, 1
      // Predicated region
      $region13: #{encoder_apply.10} parent=11 // pred_check
        %p140 = pneg %p31
      $region14: #{encoder_apply.10} parent=11 // pred_check_branch
        %142 = sbr.rel (%p140) target = $region16
      $region15: #{encoder_apply.10} parent=11 // pred_region
        _
      $region16: #{encoder_apply.10} parent=11 // pred_fallthru
        _
      // Predicated region
      $region17: #{encoder_apply.10} parent=11 // pred_check
        %p143 = pneg %p78
      $region18: #{encoder_apply.10} parent=11 // pred_check_branch
        %145 = sbr.rel (%p143) target = $region20
      $region19: #{encoder_apply.10} parent=11 // pred_region
        _
      $region20: #{encoder_apply.10} parent=11 // pred_fallthru
        _
      // Predicated region
      $region21: #{encoder_apply.10} parent=11 // pred_check
        %p146 = pneg %p99
      $region22: #{encoder_apply.10} parent=11 // pred_check_branch
        %148 = sbr.rel (%p146) target = $region24
      $region23: #{encoder_apply.10} parent=11 // pred_region
        _
      $region24: #{encoder_apply.10} parent=11 // pred_fallthru
        _
    $region12: #{encoder_apply.10} parent=5 // pred_fallthru
      _
    %p149 = scmp.lt.s32.totalorder %s10, 2
    // Predicated region
    $region25: #{encoder_apply.10} parent=5 // pred_check
      %p150 = pneg %p149
    $region26: #{encoder_apply.10} parent=5 // pred_check_branch
      %152 = sbr.rel (%p150) target = $region28
    $region27: #{encoder_apply.10} parent=5 // pred_region
      // Predicated region
      $region29: #{encoder_apply.10} parent=27 // pred_check
        %p153 = pneg %p51
      $region30: #{encoder_apply.10} parent=27 // pred_check_branch
        %155 = sbr.rel (%p153) target = $region32
      $region31: #{encoder_apply.10} parent=27 // pred_region
        %p156 = scmp.lt.s32.totalorder %s10, 1
        %s157 = scalar_select %p156, %s10, 1
        %s158 = smul.addr %s157, 9
        %s159 = smul.addr %s158, 4
        %s160 = scalar_lea.vmem %s1, %s159
      $region32: #{encoder_apply.10} parent=27 // pred_fallthru
        _
    $region28: #{encoder_apply.10} parent=5 // pred_fallthru
      _
    %p161 = scmp.le.s32.totalorder 1, %s10
    %p162 = scmp.lt.s32.totalorder %s10, 3
    %p163 = pnand %p161, %p162
    %p164 = pneg %p163
    // Predicated region
    $region33: #{encoder_apply.10} parent=5 // pred_check
      _
    $region34: #{encoder_apply.10} parent=5 // pred_check_branch
      %166 = sbr.rel (%p163) target = $region36
    $region35: #{encoder_apply.10} parent=5 // pred_region
      %s167 = ssub.s32 %s10, 1
      %p168 = pneg %p31
      %p169 = pneg %p28
      %p170 = scmp.lt.s32.totalorder %s15, 1
      %s171 = scalar_select %p170, %s15, 1
      %s172 = smul.addr %s171, 9
      %s173 = smul.addr %s172, 4
      %s174 = scalar_lea.vmem %s1, %s173
      %p175 = pneg %p57
      %p176 = pneg %p54
      %p177 = pneg %p78
      %p178 = pneg %p75
      %p179 = pneg %p99
      %p180 = pneg %p96
      %p181 = pneg %p125
      %p182 = pneg %p122
      %p183 = scmp.lt.s32.totalorder %s15, 1
      %s184 = scalar_select %p183, %s15, 1
      %s185 = smul.addr %s184, 8
      %s186 = smul.addr %s185, 8
      %s187 = scalar_lea.vmem %s4, %s186
      %p188 = scmp.lt.s32.totalorder %s15, 1
      %s189 = scalar_select %p188, %s15, 1
      %s190 = smul.addr %s189, 9
      %s191 = smul.addr %s190, 4
      %s192 = scalar_lea.vmem %s1, %s191
      %p193 = scmp.lt.s32.totalorder %s15, 1
      %s194 = scalar_select %p193, %s15, 1
      %s195 = smul.addr %s194, 8
      %s196 = smul.addr %s195, 8
      %s197 = scalar_lea.vmem %s4, %s196
      %v199 = vld [vmem:[%s0] sm:$0xff]
      %v200 = vld [vmem:[%s192] sm:$0x77]
      %v201 = vld [vmem:[%s192 + $0x8] sm:$0x77]
      %v202 = vld [vmem:[%s192 + $0x10] sm:$0x77]
      %v203 = vld [vmem:[%s192 + $0x18] sm:$0x77]
      %v204 = vld [vmem:[%s192 + $0x20] sm:$0x7]
      %vm205 = vcmp.gt.s32.totalorder %v199, 0
      %v206 = vsel %vm205, 1, 0
      %v207 = vperm.slane %v206, 0
      %v208 = vperm.slane %v206, 1
      %v209 = vperm.slane %v206, 2
      %v210 = vperm.slane %v206, 3
      %v211 = vperm.slane %v206, 4
      %v212 = vperm.slane %v206, 5
      %v213 = vperm.slane %v206, 6
      %v214 = vperm.slane %v206, 7
      %vm215 = vcmp.eq.s32.totalorder %v207, 1
      %vm216 = vcmp.eq.s32.totalorder %v208, 1
      %vm217 = vcmp.eq.s32.totalorder %v209, 1
      %vm218 = vcmp.eq.s32.totalorder %v210, 1
      %vm219 = vcmp.eq.s32.totalorder %v211, 1
      %vm220 = vcmp.eq.s32.totalorder %v212, 1
      %vm221 = vcmp.eq.s32.totalorder %v213, 1
      %vm222 = vcmp.eq.s32.totalorder %v214, 1
      %227 = vst [vmem:[#allocation1] ss:$2 sm:$0xff] %v200
      %s228 = scalar_lea.vmem [#allocation1], 16
      %229 = vst [vmem:[%s228] ss:$2 sm:$0xff] %v201
      %s230 = scalar_lea.vmem [#allocation1], 32
      %231 = vst [vmem:[%s230] ss:$2 sm:$0xff] %v202
      %s232 = scalar_lea.vmem [#allocation1], 48
      %233 = vst [vmem:[%s232] ss:$2 sm:$0xff] %v203
      %v234 = vld.sshfl [vmem:[#allocation1] sm:$0xff pattern:$0x75316420]
      %v235 = vld.sshfl [vmem:[#allocation1 + $0x8] sm:$0xff pattern:$0x75316420]
      %v236 = vld.sshfl [vmem:[#allocation1 + $0x10] sm:$0xff pattern:$0x75316420]
      %v237 = vld.sshfl [vmem:[#allocation1 + $0x18] sm:$0xff pattern:$0x75316420]
      %v238 = vld.sshfl [vmem:[#allocation1 + $0x20] sm:$0xff pattern:$0x75316420]
      %v239 = vld.sshfl [vmem:[#allocation1 + $0x28] sm:$0xff pattern:$0x75316420]
      %v240 = vld.sshfl [vmem:[#allocation1 + $0x30] sm:$0xff pattern:$0x75316420]
      %v241 = vld.sshfl [vmem:[#allocation1 + $0x38] sm:$0xff pattern:$0x75316420]
      %v250 = vsel %vm215, %v234, 0.0
      %v251 = vsel %vm216, %v235, 0.0
      %v252 = vsel %vm217, %v236, 0.0
      %v253 = vsel %vm218, %v237, 0.0
      %v254 = vsel %vm219, %v238, 0.0
      %v255 = vsel %vm220, %v239, 0.0
      %v256 = vsel %vm221, %v240, 0.0
      %v257 = vsel %vm222, %v241, 0.0
      %vm258 = vcmp.lt.s32.totalorder %v199, 31
      %v259 = vsel %vm258, 1, 0
      %v260 = vperm.slane %v259, 0
      %v261 = vperm.slane %v259, 1
      %v262 = vperm.slane %v259, 2
      %v263 = vperm.slane %v259, 3
      %v264 = vperm.slane %v259, 4
      %v265 = vperm.slane %v259, 5
      %v266 = vperm.slane %v259, 6
      %v267 = vperm.slane %v259, 7
      %vm268 = vcmp.eq.s32.totalorder %v260, 1
      %vm269 = vcmp.eq.s32.totalorder %v261, 1
      %vm270 = vcmp.eq.s32.totalorder %v262, 1
      %vm271 = vcmp.eq.s32.totalorder %v263, 1
      %vm272 = vcmp.eq.s32.totalorder %v264, 1
      %vm273 = vcmp.eq.s32.totalorder %v265, 1
      %vm274 = vcmp.eq.s32.totalorder %v266, 1
      %vm275 = vcmp.eq.s32.totalorder %v267, 1
      %277 = vst [vmem:[#allocation1] ss:$2 sm:$0xff] %v200
      %s278 = scalar_lea.vmem [#allocation1], 16
      %279 = vst [vmem:[%s278] ss:$2 sm:$0xff] %v201
      %s280 = scalar_lea.vmem [#allocation1], 32
      %281 = vst [vmem:[%s280] ss:$2 sm:$0xff] %v202
      %s282 = scalar_lea.vmem [#allocation1], 48
      %283 = vst [vmem:[%s282] ss:$2 sm:$0xff] %v203
      %v284 = vld.sshfl [vmem:[#allocation1] sm:$0xff pattern:$0x75316420]
      %v285 = vld.sshfl [vmem:[#allocation1 + $0x8] sm:$0xff pattern:$0x75316420]
      %v286 = vld.sshfl [vmem:[#allocation1 + $0x10] sm:$0xff pattern:$0x75316420]
      %v287 = vld.sshfl [vmem:[#allocation1 + $0x18] sm:$0xff pattern:$0x75316420]
      %v288 = vld.sshfl [vmem:[#allocation1 + $0x20] sm:$0xff pattern:$0x75316420]
      %v289 = vld.sshfl [vmem:[#allocation1 + $0x28] sm:$0xff pattern:$0x75316420]
      %v290 = vld.sshfl [vmem:[#allocation1 + $0x30] sm:$0xff pattern:$0x75316420]
      %v291 = vld.sshfl [vmem:[#allocation1 + $0x38] sm:$0xff pattern:$0x75316420]
      %292 = vst [vmem:[#allocation1] ss:$2 sm:$0xff] %v204
      %v293 = vld.sshfl [vmem:[#allocation1] sm:$0xff pattern:$0x75316420]
      %294 = vrot.lane.b32.xlu0 %v284, 126
      %v295 = vpop.permute.xlu0 %294
      %296 = vrot.lane.b32.xlu0 %v285, 126
      %v297 = vpop.permute.xlu0 %296
      %298 = vrot.lane.b32.xlu0 %v286, 126
      %v299 = vpop.permute.xlu0 %298
      %300 = vrot.lane.b32.xlu0 %v287, 126
      %v301 = vpop.permute.xlu0 %300
      %302 = vrot.lane.b32.xlu0 %v288, 126
      %v303 = vpop.permute.xlu0 %302
      %304 = vrot.lane.b32.xlu0 %v289, 126
      %v305 = vpop.permute.xlu0 %304
      %306 = vrot.lane.b32.xlu0 %v290, 126
      %v307 = vpop.permute.xlu0 %306
      %308 = vrot.lane.b32.xlu0 %v291, 126
      %v309 = vpop.permute.xlu0 %308
      %310 = vrot.lane.b32.xlu0 %v293, 126
      %v311 = vpop.permute.xlu0 %310
      %vm312 = vcmask 1031168
      %v313 = vsel %vm312, %v295, %v297
      %v314 = vsel %vm312, %v297, %v299
      %v315 = vsel %vm312, %v299, %v301
      %v316 = vsel %vm312, %v301, %v303
      %v317 = vsel %vm312, %v303, %v305
      %v318 = vsel %vm312, %v305, %v307
      %v319 = vsel %vm312, %v307, %v309
      %v320 = vsel %vm312, %v309, %v311
      %v329 = vsel %vm268, %v313, 0.0
      %v330 = vsel %vm269, %v314, 0.0
      %v331 = vsel %vm270, %v315, 0.0
      %v332 = vsel %vm271, %v316, 0.0
      %v333 = vsel %vm272, %v317, 0.0
      %v334 = vsel %vm273, %v318, 0.0
      %v335 = vsel %vm274, %v319, 0.0
      %v336 = vsel %vm275, %v320, 0.0
      %337 = vst [vmem:[#allocation1] ss:$2 sm:$0xff] %v200
      %s338 = scalar_lea.vmem [#allocation1], 16
      %339 = vst [vmem:[%s338] ss:$2 sm:$0xff] %v201
      %s340 = scalar_lea.vmem [#allocation1], 32
      %341 = vst [vmem:[%s340] ss:$2 sm:$0xff] %v202
      %s342 = scalar_lea.vmem [#allocation1], 48
      %343 = vst [vmem:[%s342] ss:$2 sm:$0xff] %v203
      %v344 = vld.sshfl [vmem:[#allocation1] sm:$0xff pattern:$0x75316420]
      %v345 = vld.sshfl [vmem:[#allocation1 + $0x8] sm:$0xff pattern:$0x75316420]
      %v346 = vld.sshfl [vmem:[#allocation1 + $0x10] sm:$0xff pattern:$0x75316420]
      %v347 = vld.sshfl [vmem:[#allocation1 + $0x18] sm:$0xff pattern:$0x75316420]
      %v348 = vld.sshfl [vmem:[#allocation1 + $0x20] sm:$0xff pattern:$0x75316420]
      %v349 = vld.sshfl [vmem:[#allocation1 + $0x28] sm:$0xff pattern:$0x75316420]
      %v350 = vld.sshfl [vmem:[#allocation1 + $0x30] sm:$0xff pattern:$0x75316420]
      %v351 = vld.sshfl [vmem:[#allocation1 + $0x38] sm:$0xff pattern:$0x75316420]
      %352 = vst [vmem:[#allocation1] ss:$2 sm:$0xff] %v204
      %v353 = vld.sshfl [vmem:[#allocation1] sm:$0xff pattern:$0x75316420]
      %354 = vrot.lane.b32.xlu0 %v344, 96
      %v355 = vpop.permute.xlu0 %354
      %356 = vrot.lane.b32.xlu0 %v345, 96
      %v357 = vpop.permute.xlu0 %356
      %358 = vrot.lane.b32.xlu0 %v346, 96
      %v359 = vpop.permute.xlu0 %358
      %360 = vrot.lane.b32.xlu0 %v347, 96
      %v361 = vpop.permute.xlu0 %360
      %362 = vrot.lane.b32.xlu0 %v348, 96
      %v363 = vpop.permute.xlu0 %362
      %364 = vrot.lane.b32.xlu0 %v349, 96
      %v365 = vpop.permute.xlu0 %364
      %366 = vrot.lane.b32.xlu0 %v350, 96
      %v367 = vpop.permute.xlu0 %366
      %368 = vrot.lane.b32.xlu0 %v351, 96
      %v369 = vpop.permute.xlu0 %368
      %370 = vrot.lane.b32.xlu0 %v353, 96
      %v371 = vpop.permute.xlu0 %370
      %vm372 = vcmask 785408
      %v373 = vsel %vm372, %v355, %v357
      %v374 = vsel %vm372, %v357, %v359
      %v375 = vsel %vm372, %v359, %v361
      %v376 = vsel %vm372, %v361, %v363
      %v377 = vsel %vm372, %v363, %v365
      %v378 = vsel %vm372, %v365, %v367
      %v379 = vsel %vm372, %v367, %v369
      %v380 = vsel %vm372, %v369, %v371
      %v389 = vsel %vm215, %v373, 0.0
      %v390 = vsel %vm216, %v374, 0.0
      %v391 = vsel %vm217, %v375, 0.0
      %v392 = vsel %vm218, %v376, 0.0
      %v393 = vsel %vm219, %v377, 0.0
      %v394 = vsel %vm220, %v378, 0.0
      %v395 = vsel %vm221, %v379, 0.0
      %v396 = vsel %vm222, %v380, 0.0
      %397 = vst [vmem:[#allocation1] ss:$2 sm:$0xff] %v200
      %s398 = scalar_lea.vmem [#allocation1], 16
      %399 = vst [vmem:[%s398] ss:$2 sm:$0xff] %v201
      %s400 = scalar_lea.vmem [#allocation1], 32
      %401 = vst [vmem:[%s400] ss:$2 sm:$0xff] %v202
      %s402 = scalar_lea.vmem [#allocation1], 48
      %403 = vst [vmem:[%s402] ss:$2 sm:$0xff] %v203
      %v404 = vld.sshfl [vmem:[#allocation1] sm:$0xff pattern:$0x75316420]
      %v405 = vld.sshfl [vmem:[#allocation1 + $0x8] sm:$0xff pattern:$0x75316420]
      %v406 = vld.sshfl [vmem:[#allocation1 + $0x10] sm:$0xff pattern:$0x75316420]
      %v407 = vld.sshfl [vmem:[#allocation1 + $0x18] sm:$0xff pattern:$0x75316420]
      %v408 = vld.sshfl [vmem:[#allocation1 + $0x20] sm:$0xff pattern:$0x75316420]
      %v409 = vld.sshfl [vmem:[#allocation1 + $0x28] sm:$0xff pattern:$0x75316420]
      %v410 = vld.sshfl [vmem:[#allocation1 + $0x30] sm:$0xff pattern:$0x75316420]
      %v411 = vld.sshfl [vmem:[#allocation1 + $0x38] sm:$0xff pattern:$0x75316420]
      %412 = vst [vmem:[#allocation1] ss:$2 sm:$0xff] %v204
      %v413 = vld.sshfl [vmem:[#allocation1] sm:$0xff pattern:$0x75316420]
      %414 = vrot.lane.b32.xlu0 %v404, 94
      %v415 = vpop.permute.xlu0 %414
      %416 = vrot.lane.b32.xlu0 %v405, 94
      %v417 = vpop.permute.xlu0 %416
      %418 = vrot.lane.b32.xlu0 %v406, 94
      %v419 = vpop.permute.xlu0 %418
      %420 = vrot.lane.b32.xlu0 %v407, 94
      %v421 = vpop.permute.xlu0 %420
      %422 = vrot.lane.b32.xlu0 %v408, 94
      %v423 = vpop.permute.xlu0 %422
      %424 = vrot.lane.b32.xlu0 %v409, 94
      %v425 = vpop.permute.xlu0 %424
      %426 = vrot.lane.b32.xlu0 %v410, 94
      %v427 = vpop.permute.xlu0 %426
      %428 = vrot.lane.b32.xlu0 %v411, 94
      %v429 = vpop.permute.xlu0 %428
      %430 = vrot.lane.b32.xlu0 %v413, 94
      %v431 = vpop.permute.xlu0 %430
      %vm432 = vcmask 769024
      %v433 = vsel %vm432, %v415, %v417
      %v434 = vsel %vm432, %v417, %v419
      %v435 = vsel %vm432, %v419, %v421
      %v436 = vsel %vm432, %v421, %v423
      %v437 = vsel %vm432, %v423, %v425
      %v438 = vsel %vm432, %v425, %v427
      %v439 = vsel %vm432, %v427, %v429
      %v440 = vsel %vm432, %v429, %v431
      %v449 = vsel %vm268, %v433, 0.0
      %v450 = vsel %vm269, %v434, 0.0
      %v451 = vsel %vm270, %v435, 0.0
      %v452 = vsel %vm271, %v436, 0.0
      %v453 = vsel %vm272, %v437, 0.0
      %v454 = vsel %vm273, %v438, 0.0
      %v455 = vsel %vm274, %v439, 0.0
      %v456 = vsel %vm275, %v440, 0.0
      %457 = vst [vmem:[#allocation1] ss:$2 sm:$0xff] %v200
      %s458 = scalar_lea.vmem [#allocation1], 16
      %459 = vst [vmem:[%s458] ss:$2 sm:$0xff] %v201
      %s460 = scalar_lea.vmem [#allocation1], 32
      %461 = vst [vmem:[%s460] ss:$2 sm:$0xff] %v202
      %s462 = scalar_lea.vmem [#allocation1], 48
      %463 = vst [vmem:[%s462] ss:$2 sm:$0xff] %v203
      %v464 = vld.sshfl [vmem:[#allocation1] sm:$0xff pattern:$0x75316420]
      %v465 = vld.sshfl [vmem:[#allocation1 + $0x8] sm:$0xff pattern:$0x75316420]
      %v466 = vld.sshfl [vmem:[#allocation1 + $0x10] sm:$0xff pattern:$0x75316420]
      %v467 = vld.sshfl [vmem:[#allocation1 + $0x18] sm:$0xff pattern:$0x75316420]
      %v468 = vld.sshfl [vmem:[#allocation1 + $0x20] sm:$0xff pattern:$0x75316420]
      %v469 = vld.sshfl [vmem:[#allocation1 + $0x28] sm:$0xff pattern:$0x75316420]
      %v470 = vld.sshfl [vmem:[#allocation1 + $0x30] sm:$0xff pattern:$0x75316420]
      %v471 = vld.sshfl [vmem:[#allocation1 + $0x38] sm:$0xff pattern:$0x75316420]
      %472 = vst [vmem:[#allocation1] ss:$2 sm:$0xff] %v204
      %v473 = vld.sshfl [vmem:[#allocation1] sm:$0xff pattern:$0x75316420]
      %474 = vrot.lane.b32.xlu0 %v464, 64
      %v475 = vpop.permute.xlu0 %474
      %476 = vrot.lane.b32.xlu0 %v465, 64
      %v477 = vpop.permute.xlu0 %476
      %478 = vrot.lane.b32.xlu0 %v466, 64
      %v479 = vpop.permute.xlu0 %478
      %480 = vrot.lane.b32.xlu0 %v467, 64
      %v481 = vpop.permute.xlu0 %480
      %482 = vrot.lane.b32.xlu0 %v468, 64
      %v483 = vpop.permute.xlu0 %482
      %484 = vrot.lane.b32.xlu0 %v469, 64
      %v485 = vpop.permute.xlu0 %484
      %486 = vrot.lane.b32.xlu0 %v470, 64
      %v487 = vpop.permute.xlu0 %486
      %488 = vrot.lane.b32.xlu0 %v471, 64
      %v489 = vpop.permute.xlu0 %488
      %490 = vrot.lane.b32.xlu0 %v473, 64
      %v491 = vpop.permute.xlu0 %490
      %vm492 = vcmask 523264
      %v493 = vsel %vm492, %v475, %v477
      %v494 = vsel %vm492, %v477, %v479
      %v495 = vsel %vm492, %v479, %v481
      %v496 = vsel %vm492, %v481, %v483
      %v497 = vsel %vm492, %v483, %v485
      %v498 = vsel %vm492, %v485, %v487
      %v499 = vsel %vm492, %v487, %v489
      %v500 = vsel %vm492, %v489, %v491
      %v509 = vsel %vm215, %v493, 0.0
      %v510 = vsel %vm216, %v494, 0.0
      %v511 = vsel %vm217, %v495, 0.0
      %v512 = vsel %vm218, %v496, 0.0
      %v513 = vsel %vm219, %v497, 0.0
      %v514 = vsel %vm220, %v498, 0.0
      %v515 = vsel %vm221, %v499, 0.0
      %v516 = vsel %vm222, %v500, 0.0
      %517 = vst [vmem:[#allocation1] ss:$2 sm:$0xff] %v200
      %s518 = scalar_lea.vmem [#allocation1], 16
      %519 = vst [vmem:[%s518] ss:$2 sm:$0xff] %v201
      %s520 = scalar_lea.vmem [#allocation1], 32
      %521 = vst [vmem:[%s520] ss:$2 sm:$0xff] %v202
      %s522 = scalar_lea.vmem [#allocation1], 48
      %523 = vst [vmem:[%s522] ss:$2 sm:$0xff] %v203
      %v524 = vld.sshfl [vmem:[#allocation1] sm:$0xff pattern:$0x75316420]
      %v525 = vld.sshfl [vmem:[#allocation1 + $0x8] sm:$0xff pattern:$0x75316420]
      %v526 = vld.sshfl [vmem:[#allocation1 + $0x10] sm:$0xff pattern:$0x75316420]
      %v527 = vld.sshfl [vmem:[#allocation1 + $0x18] sm:$0xff pattern:$0x75316420]
      %v528 = vld.sshfl [vmem:[#allocation1 + $0x20] sm:$0xff pattern:$0x75316420]
      %v529 = vld.sshfl [vmem:[#allocation1 + $0x28] sm:$0xff pattern:$0x75316420]
      %v530 = vld.sshfl [vmem:[#allocation1 + $0x30] sm:$0xff pattern:$0x75316420]
      %v531 = vld.sshfl [vmem:[#allocation1 + $0x38] sm:$0xff pattern:$0x75316420]
      %532 = vst [vmem:[#allocation1] ss:$2 sm:$0xff] %v204
      %v533 = vld.sshfl [vmem:[#allocation1] sm:$0xff pattern:$0x75316420]
      %534 = vrot.lane.b32.xlu0 %v524, 62
      %v535 = vpop.permute.xlu0 %534
      %536 = vrot.lane.b32.xlu0 %v525, 62
      %v537 = vpop.permute.xlu0 %536
      %538 = vrot.lane.b32.xlu0 %v526, 62
      %v539 = vpop.permute.xlu0 %538
      %540 = vrot.lane.b32.xlu0 %v527, 62
      %v541 = vpop.permute.xlu0 %540
      %542 = vrot.lane.b32.xlu0 %v528, 62
      %v543 = vpop.permute.xlu0 %542
      %544 = vrot.lane.b32.xlu0 %v529, 62
      %v545 = vpop.permute.xlu0 %544
      %546 = vrot.lane.b32.xlu0 %v530, 62
      %v547 = vpop.permute.xlu0 %546
      %548 = vrot.lane.b32.xlu0 %v531, 62
      %v549 = vpop.permute.xlu0 %548
      %550 = vrot.lane.b32.xlu0 %v533, 62
      %v551 = vpop.permute.xlu0 %550
      %vm552 = vcmask 506880
      %v553 = vsel %vm552, %v535, %v537
      %v554 = vsel %vm552, %v537, %v539
      %v555 = vsel %vm552, %v539, %v541
      %v556 = vsel %vm552, %v541, %v543
      %v557 = vsel %vm552, %v543, %v545
      %v558 = vsel %vm552, %v545, %v547
      %v559 = vsel %vm552, %v547, %v549
      %v560 = vsel %vm552, %v549, %v551
      %v569 = vsel %vm268, %v553, 0.0
      %v570 = vsel %vm269, %v554, 0.0
      %v571 = vsel %vm270, %v555, 0.0
      %v572 = vsel %vm271, %v556, 0.0
      %v573 = vsel %vm272, %v557, 0.0
      %v574 = vsel %vm273, %v558, 0.0
      %v575 = vsel %vm274, %v559, 0.0
      %v576 = vsel %vm275, %v560, 0.0
      %577 = vst [vmem:[#allocation1] ss:$2 sm:$0xff] %v200
      %s578 = scalar_lea.vmem [#allocation1], 16
      %579 = vst [vmem:[%s578] ss:$2 sm:$0xff] %v201
      %s580 = scalar_lea.vmem [#allocation1], 32
      %581 = vst [vmem:[%s580] ss:$2 sm:$0xff] %v202
      %s582 = scalar_lea.vmem [#allocation1], 48
      %583 = vst [vmem:[%s582] ss:$2 sm:$0xff] %v203
      %v584 = vld.sshfl [vmem:[#allocation1] sm:$0xff pattern:$0x75316420]
      %v585 = vld.sshfl [vmem:[#allocation1 + $0x8] sm:$0xff pattern:$0x75316420]
      %v586 = vld.sshfl [vmem:[#allocation1 + $0x10] sm:$0xff pattern:$0x75316420]
      %v587 = vld.sshfl [vmem:[#allocation1 + $0x18] sm:$0xff pattern:$0x75316420]
      %v588 = vld.sshfl [vmem:[#allocation1 + $0x20] sm:$0xff pattern:$0x75316420]
      %v589 = vld.sshfl [vmem:[#allocation1 + $0x28] sm:$0xff pattern:$0x75316420]
      %v590 = vld.sshfl [vmem:[#allocation1 + $0x30] sm:$0xff pattern:$0x75316420]
      %v591 = vld.sshfl [vmem:[#allocation1 + $0x38] sm:$0xff pattern:$0x75316420]
      %592 = vst [vmem:[#allocation1] ss:$2 sm:$0xff] %v204
      %v593 = vld.sshfl [vmem:[#allocation1] sm:$0xff pattern:$0x75316420]
      %v594 = vrot.slane %v584, 5
      %v595 = vrot.slane %v585, 5
      %v596 = vrot.slane %v586, 5
      %v597 = vrot.slane %v587, 5
      %v598 = vrot.slane %v588, 5
      %v599 = vrot.slane %v589, 5
      %v600 = vrot.slane %v590, 5
      %v601 = vrot.slane %v591, 5
      %v602 = vrot.slane %v593, 5
      %603 = vrot.lane.b32.xlu0 %v594, 127
      %v604 = vpop.permute.xlu0 %603
      %605 = vrot.lane.b32.xlu0 %v595, 127
      %v606 = vpop.permute.xlu0 %605
      %607 = vrot.lane.b32.xlu0 %v596, 127
      %v608 = vpop.permute.xlu0 %607
      %609 = vrot.lane.b32.xlu0 %v597, 127
      %v610 = vpop.permute.xlu0 %609
      %611 = vrot.lane.b32.xlu0 %v598, 127
      %v612 = vpop.permute.xlu0 %611
      %613 = vrot.lane.b32.xlu0 %v599, 127
      %v614 = vpop.permute.xlu0 %613
      %615 = vrot.lane.b32.xlu0 %v600, 127
      %v616 = vpop.permute.xlu0 %615
      %617 = vrot.lane.b32.xlu0 %v601, 127
      %v618 = vpop.permute.xlu0 %617
      %619 = vrot.lane.b32.xlu0 %v602, 127
      %v620 = vpop.permute.xlu0 %619
      %vm621 = vcmask 1039360
      %v622 = vsel %vm621, %v604, %v606
      %v623 = vsel %vm621, %v606, %v608
      %v624 = vsel %vm621, %v608, %v610
      %v625 = vsel %vm621, %v610, %v612
      %v626 = vsel %vm621, %v612, %v614
      %v627 = vsel %vm621, %v614, %v616
      %v628 = vsel %vm621, %v616, %v618
      %v629 = vsel %vm621, %v618, %v620
      %v646 = vrot.slane %v329, 2
      %v647 = vrot.slane %v330, 2
      %v648 = vrot.slane %v331, 2
      %v649 = vrot.slane %v332, 2
      %v650 = vrot.slane %v333, 2
      %v651 = vrot.slane %v334, 2
      %v652 = vrot.slane %v335, 2
      %v653 = vrot.slane %v336, 2
      %v670 = vrot.slane %v389, 7
      %v671 = vrot.slane %v390, 7
      %v672 = vrot.slane %v391, 7
      %v673 = vrot.slane %v392, 7
      %v674 = vrot.slane %v393, 7
      %v675 = vrot.slane %v394, 7
      %v676 = vrot.slane %v395, 7
      %v677 = vrot.slane %v396, 7
      %s686 = scalar_lea.vmem [#allocation1], 1
      %687 = vst [vmem:[%s686] ss:$2 sm:$0xff] %v200
      %s688 = scalar_lea.vmem [#allocation1], 17
      %689 = vst [vmem:[%s688] ss:$2 sm:$0xff] %v201
      %s690 = scalar_lea.vmem [#allocation1], 33
      %691 = vst [vmem:[%s690] ss:$2 sm:$0xff] %v202
      %s692 = scalar_lea.vmem [#allocation1], 49
      %693 = vst [vmem:[%s692] ss:$2 sm:$0xff] %v203
      %v694 = vld.sshfl [vmem:[#allocation1] sm:$0xff pattern:$0x75316420]
      %v695 = vld.sshfl [vmem:[#allocation1 + $0x8] sm:$0xff pattern:$0x75316420]
      %v696 = vld.sshfl [vmem:[#allocation1 + $0x10] sm:$0xff pattern:$0x75316420]
      %v697 = vld.sshfl [vmem:[#allocation1 + $0x18] sm:$0xff pattern:$0x75316420]
      %v698 = vld.sshfl [vmem:[#allocation1 + $0x20] sm:$0xff pattern:$0x75316420]
      %v699 = vld.sshfl [vmem:[#allocation1 + $0x28] sm:$0xff pattern:$0x75316420]
      %v700 = vld.sshfl [vmem:[#allocation1 + $0x30] sm:$0xff pattern:$0x75316420]
      %v701 = vld.sshfl [vmem:[#allocation1 + $0x38] sm:$0xff pattern:$0x75316420]
      %702 = vst [vmem:[%s686] ss:$2 sm:$0xff] %v204
      %v703 = vld.sshfl [vmem:[#allocation1] sm:$0xff pattern:$0x75316420]
      %704 = vrot.lane.b32.xlu0 %v694, 95
      %v705 = vpop.permute.xlu0 %704
      %706 = vrot.lane.b32.xlu0 %v695, 95
      %v707 = vpop.permute.xlu0 %706
      %708 = vrot.lane.b32.xlu0 %v696, 95
      %v709 = vpop.permute.xlu0 %708
      %710 = vrot.lane.b32.xlu0 %v697, 95
      %v711 = vpop.permute.xlu0 %710
      %712 = vrot.lane.b32.xlu0 %v698, 95
      %v713 = vpop.permute.xlu0 %712
      %714 = vrot.lane.b32.xlu0 %v699, 95
      %v715 = vpop.permute.xlu0 %714
      %716 = vrot.lane.b32.xlu0 %v700, 95
      %v717 = vpop.permute.xlu0 %716
      %718 = vrot.lane.b32.xlu0 %v701, 95
      %v719 = vpop.permute.xlu0 %718
      %720 = vrot.lane.b32.xlu0 %v703, 95
      %v721 = vpop.permute.xlu0 %720
      %vm722 = vcmask 777216
      %v723 = vsel %vm722, %v705, %v707
      %v724 = vsel %vm722, %v707, %v709
      %v725 = vsel %vm722, %v709, %v711
      %v726 = vsel %vm722, %v711, %v713
      %v727 = vsel %vm722, %v713, %v715
      %v728 = vsel %vm722, %v715, %v717
      %v729 = vsel %vm722, %v717, %v719
      %v730 = vsel %vm722, %v719, %v721
      %v747 = vrot.slane %v449, 1
      %v748 = vrot.slane %v450, 1
      %v749 = vrot.slane %v451, 1
      %v750 = vrot.slane %v452, 1
      %v751 = vrot.slane %v453, 1
      %v752 = vrot.slane %v454, 1
      %v753 = vrot.slane %v455, 1
      %v754 = vrot.slane %v456, 1
      %v771 = vrot.slane %v509, 6
      %v772 = vrot.slane %v510, 6
      %v773 = vrot.slane %v511, 6
      %v774 = vrot.slane %v512, 6
      %v775 = vrot.slane %v513, 6
      %v776 = vrot.slane %v514, 6
      %v777 = vrot.slane %v515, 6
      %v778 = vrot.slane %v516, 6
      %787 = vst [vmem:[#allocation1] ss:$2 sm:$0xff] %v200
      %s788 = scalar_lea.vmem [#allocation1], 16
      %789 = vst [vmem:[%s788] ss:$2 sm:$0xff] %v201
      %s790 = scalar_lea.vmem [#allocation1], 32
      %791 = vst [vmem:[%s790] ss:$2 sm:$0xff] %v202
      %s792 = scalar_lea.vmem [#allocation1], 48
      %793 = vst [vmem:[%s792] ss:$2 sm:$0xff] %v203
      %v794 = vld.sshfl [vmem:[#allocation1] sm:$0xff pattern:$0x75316420]
      %v795 = vld.sshfl [vmem:[#allocation1 + $0x8] sm:$0xff pattern:$0x75316420]
      %v796 = vld.sshfl [vmem:[#allocation1 + $0x10] sm:$0xff pattern:$0x75316420]
      %v797 = vld.sshfl [vmem:[#allocation1 + $0x18] sm:$0xff pattern:$0x75316420]
      %v798 = vld.sshfl [vmem:[#allocation1 + $0x20] sm:$0xff pattern:$0x75316420]
      %v799 = vld.sshfl [vmem:[#allocation1 + $0x28] sm:$0xff pattern:$0x75316420]
      %v800 = vld.sshfl [vmem:[#allocation1 + $0x30] sm:$0xff pattern:$0x75316420]
      %v801 = vld.sshfl [vmem:[#allocation1 + $0x38] sm:$0xff pattern:$0x75316420]
      %802 = vst [vmem:[#allocation1] ss:$2 sm:$0xff] %v204
      %v803 = vld.sshfl [vmem:[#allocation1] sm:$0xff pattern:$0x75316420]
      %v804 = vrot.slane %v794, 3
      %v805 = vrot.slane %v795, 3
      %v806 = vrot.slane %v796, 3
      %v807 = vrot.slane %v797, 3
      %v808 = vrot.slane %v798, 3
      %v809 = vrot.slane %v799, 3
      %v810 = vrot.slane %v800, 3
      %v811 = vrot.slane %v801, 3
      %v812 = vrot.slane %v803, 3
      %813 = vrot.lane.b32.xlu0 %v804, 63
      %v814 = vpop.permute.xlu0 %813
      %815 = vrot.lane.b32.xlu0 %v805, 63
      %v816 = vpop.permute.xlu0 %815
      %817 = vrot.lane.b32.xlu0 %v806, 63
      %v818 = vpop.permute.xlu0 %817
      %819 = vrot.lane.b32.xlu0 %v807, 63
      %v820 = vpop.permute.xlu0 %819
      %821 = vrot.lane.b32.xlu0 %v808, 63
      %v822 = vpop.permute.xlu0 %821
      %823 = vrot.lane.b32.xlu0 %v809, 63
      %v824 = vpop.permute.xlu0 %823
      %825 = vrot.lane.b32.xlu0 %v810, 63
      %v826 = vpop.permute.xlu0 %825
      %827 = vrot.lane.b32.xlu0 %v811, 63
      %v828 = vpop.permute.xlu0 %827
      %829 = vrot.lane.b32.xlu0 %v812, 63
      %v830 = vpop.permute.xlu0 %829
      %vm831 = vcmask 515072
      %v832 = vsel %vm831, %v814, %v816
      %v833 = vsel %vm831, %v816, %v818
      %v834 = vsel %vm831, %v818, %v820
      %v835 = vsel %vm831, %v820, %v822
      %v836 = vsel %vm831, %v822, %v824
      %v837 = vsel %vm831, %v824, %v826
      %v838 = vsel %vm831, %v826, %v828
      %v839 = vsel %vm831, %v828, %v830
      %vm848 = vcmask 1042432
      %v849 = vsel %vm848, %v250, %v622
      %v850 = vsel %vm848, %v251, %v623
      %v851 = vsel %vm848, %v252, %v624
      %v852 = vsel %vm848, %v253, %v625
      %v853 = vsel %vm848, %v254, %v626
      %v854 = vsel %vm848, %v255, %v627
      %v855 = vsel %vm848, %v256, %v628
      %v856 = vsel %vm848, %v257, %v629
      %vm857 = vcmask 1045504
      %v858 = vsel %vm857, %v849, %v646
      %v859 = vsel %vm857, %v850, %v647
      %v860 = vsel %vm857, %v851, %v648
      %v861 = vsel %vm857, %v852, %v649
      %v862 = vsel %vm857, %v853, %v650
      %v863 = vsel %vm857, %v854, %v651
      %v864 = vsel %vm857, %v855, %v652
      %v865 = vsel %vm857, %v856, %v653
      %vm866 = vcmask 1040384
      %v867 = vsel %vm866, %v646, %v670
      %v868 = vsel %vm866, %v647, %v671
      %v869 = vsel %vm866, %v648, %v672
      %v870 = vsel %vm866, %v649, %v673
      %v871 = vsel %vm866, %v650, %v674
      %v872 = vsel %vm866, %v651, %v675
      %v873 = vsel %vm866, %v652, %v676
      %v874 = vsel %vm866, %v653, %v677
      %vm875 = vcmask 1043456
      %v876 = vsel %vm875, %v867, %v723
      %v877 = vsel %vm875, %v868, %v724
      %v878 = vsel %vm875, %v869, %v725
      %v879 = vsel %vm875, %v870, %v726
      %v880 = vsel %vm875, %v871, %v727
      %v881 = vsel %vm875, %v872, %v728
      %v882 = vsel %vm875, %v873, %v729
      %v883 = vsel %vm875, %v874, %v730
      %vm884 = vcmask 1046528
      %v885 = vsel %vm884, %v876, %v747
      %v886 = vsel %vm884, %v877, %v748
      %v887 = vsel %vm884, %v878, %v749
      %v888 = vsel %vm884, %v879, %v750
      %v889 = vsel %vm884, %v880, %v751
      %v890 = vsel %vm884, %v881, %v752
      %v891 = vsel %vm884, %v882, %v753
      %v892 = vsel %vm884, %v883, %v754
      %vm893 = vcmask 1041408
      %v894 = vsel %vm893, %v747, %v771
      %v895 = vsel %vm893, %v748, %v772
      %v896 = vsel %vm893, %v749, %v773
      %v897 = vsel %vm893, %v750, %v774
      %v898 = vsel %vm893, %v751, %v775
      %v899 = vsel %vm893, %v752, %v776
      %v900 = vsel %vm893, %v753, %v777
      %v901 = vsel %vm893, %v754, %v778
      %vm902 = vcmask 1044480
      %v903 = vsel %vm902, %v894, %v832
      %v904 = vsel %vm902, %v895, %v833
      %v905 = vsel %vm902, %v896, %v834
      %v906 = vsel %vm902, %v897, %v835
      %v907 = vsel %vm902, %v898, %v836
      %v908 = vsel %vm902, %v899, %v837
      %v909 = vsel %vm902, %v900, %v838
      %v910 = vsel %vm902, %v901, %v839
      %v911 = vpack.c.bf16 %v885, %v858
      %v912 = vpack.c.bf16 %v886, %v859
      %v913 = vpack.c.bf16 %v887, %v860
      %v914 = vpack.c.bf16 %v888, %v861
      %v915 = vpack.c.bf16 %v889, %v862
      %v916 = vpack.c.bf16 %v890, %v863
      %v917 = vpack.c.bf16 %v891, %v864
      %v918 = vpack.c.bf16 %v892, %v865
      %v919 = vpack.c.bf16 %v569, %v903
      %v920 = vpack.c.bf16 %v570, %v904
      %v921 = vpack.c.bf16 %v571, %v905
      %v922 = vpack.c.bf16 %v572, %v906
      %v923 = vpack.c.bf16 %v573, %v907
      %v924 = vpack.c.bf16 %v574, %v908
      %v925 = vpack.c.bf16 %v575, %v909
      %v926 = vpack.c.bf16 %v576, %v910
      %v927 = vld [vmem:[%s2] sm:$0xf]
      %v928 = vld [vmem:[%s3] sm:$0xff]
      %930 = vset.pattern.permute.xlu0 0
      %931 = vperm.xlu0 %930, %v928
      %v932 = vpop.permute.xlu0 %931
      %vm934 = vcmask 220160
      %v936 = vsel %vm934, %v927, 0
      %v938 = vsel %vm902, 4294967295, 65535
      %v939 = vsel %vm857, %v938, 0
      %v941 = vand.u32 %v919, %v939
      %v944 = vand.u32 %v920, %v939
      %v947 = vand.u32 %v921, %v939
      %v950 = vand.u32 %v922, %v939
      %v953 = vand.u32 %v923, %v939
      %v956 = vand.u32 %v924, %v939
      %v959 = vand.u32 %v925, %v939
      %v962 = vand.u32 %v926, %v939
      %964 = vmatpush.bf16.msra.mxu0 0
      %965 = vmatpush.bf16.msra.mxu0 0
      %966 = vmatpush.bf16.msra.mxu0 0
      %967 = vmatpush.bf16.msra.mxu0 0
      %968 = vmatpush.bf16.msra.mxu0 0
      %969 = vmatpush.bf16.msra.mxu0 0
      %970 = vmatpush.bf16.msra.mxu0 %v941
      %971 = vmatpush.bf16.msra.mxu0 %v911
      %972 = vmatmul.bf16.gmra.mxu0 %v936
      %v973 = vpop.f32.mrf.mxu0
      %v974 = vadd.f32 %v932, %v973
      %v975 = vpop.f32.mrf.mxu0
      %976 = vdwg.mxu0
      %977 = vmatpush.bf16.msra.mxu0 0
      %978 = vmatpush.bf16.msra.mxu0 0
      %979 = vmatpush.bf16.msra.mxu0 0
      %980 = vmatpush.bf16.msra.mxu0 0
      %981 = vmatpush.bf16.msra.mxu0 0
      %982 = vmatpush.bf16.msra.mxu0 0
      %983 = vmatpush.bf16.msra.mxu0 %v944
      %984 = vmatpush.bf16.msra.mxu0 %v912
      %985 = vmatmul.bf16.gmra.mxu0 %v936
      %v986 = vpop.f32.mrf.mxu0
      %v987 = vadd.f32 %v932, %v986
      %v988 = vpop.f32.mrf.mxu0
      %989 = vdwg.mxu0
      %990 = vmatpush.bf16.msra.mxu0 0
      %991 = vmatpush.bf16.msra.mxu0 0
      %992 = vmatpush.bf16.msra.mxu0 0
      %993 = vmatpush.bf16.msra.mxu0 0
      %994 = vmatpush.bf16.msra.mxu0 0
      %995 = vmatpush.bf16.msra.mxu0 0
      %996 = vmatpush.bf16.msra.mxu0 %v947
      %997 = vmatpush.bf16.msra.mxu0 %v913
      %998 = vmatmul.bf16.gmra.mxu0 %v936
      %v999 = vpop.f32.mrf.mxu0
      %v1000 = vadd.f32 %v932, %v999
      %v1001 = vpop.f32.mrf.mxu0
      %1002 = vdwg.mxu0
      %1003 = vmatpush.bf16.msra.mxu0 0
      %1004 = vmatpush.bf16.msra.mxu0 0
      %1005 = vmatpush.bf16.msra.mxu0 0
      %1006 = vmatpush.bf16.msra.mxu0 0
      %1007 = vmatpush.bf16.msra.mxu0 0
      %1008 = vmatpush.bf16.msra.mxu0 0
      %1009 = vmatpush.bf16.msra.mxu0 %v950
      %1010 = vmatpush.bf16.msra.mxu0 %v914
      %1011 = vmatmul.bf16.gmra.mxu0 %v936
      %v1012 = vpop.f32.mrf.mxu0
      %v1013 = vadd.f32 %v932, %v1012
      %v1014 = vpop.f32.mrf.mxu0
      %1015 = vdwg.mxu0
      %1016 = vmatpush.bf16.msra.mxu0 0
      %1017 = vmatpush.bf16.msra.mxu0 0
      %1018 = vmatpush.bf16.msra.mxu0 0
      %1019 = vmatpush.bf16.msra.mxu0 0
      %1020 = vmatpush.bf16.msra.mxu0 0
      %1021 = vmatpush.bf16.msra.mxu0 0
      %1022 = vmatpush.bf16.msra.mxu0 %v953
      %1023 = vmatpush.bf16.msra.mxu0 %v915
      %1024 = vmatmul.bf16.gmra.mxu0 %v936
      %v1025 = vpop.f32.mrf.mxu0
      %v1026 = vadd.f32 %v932, %v1025
      %v1027 = vpop.f32.mrf.mxu0
      %1028 = vdwg.mxu0
      %1029 = vmatpush.bf16.msra.mxu0 0
      %1030 = vmatpush.bf16.msra.mxu0 0
      %1031 = vmatpush.bf16.msra.mxu0 0
      %1032 = vmatpush.bf16.msra.mxu0 0
      %1033 = vmatpush.bf16.msra.mxu0 0
      %1034 = vmatpush.bf16.msra.mxu0 0
      %1035 = vmatpush.bf16.msra.mxu0 %v956
      %1036 = vmatpush.bf16.msra.mxu0 %v916
      %1037 = vmatmul.bf16.gmra.mxu0 %v936
      %v1038 = vpop.f32.mrf.mxu0
      %v1039 = vadd.f32 %v932, %v1038
      %v1040 = vpop.f32.mrf.mxu0
      %1041 = vdwg.mxu0
      %1042 = vmatpush.bf16.msra.mxu0 0
      %1043 = vmatpush.bf16.msra.mxu0 0
      %1044 = vmatpush.bf16.msra.mxu0 0
      %1045 = vmatpush.bf16.msra.mxu0 0
      %1046 = vmatpush.bf16.msra.mxu0 0
      %1047 = vmatpush.bf16.msra.mxu0 0
      %1048 = vmatpush.bf16.msra.mxu0 %v959
      %1049 = vmatpush.bf16.msra.mxu0 %v917
      %1050 = vmatmul.bf16.gmra.mxu0 %v936
      %v1051 = vpop.f32.mrf.mxu0
      %v1052 = vadd.f32 %v932, %v1051
      %v1053 = vpop.f32.mrf.mxu0
      %1054 = vdwg.mxu0
      %1055 = vmatpush.bf16.msra.mxu0 0
      %1056 = vmatpush.bf16.msra.mxu0 0
      %1057 = vmatpush.bf16.msra.mxu0 0
      %1058 = vmatpush.bf16.msra.mxu0 0
      %1059 = vmatpush.bf16.msra.mxu0 0
      %1060 = vmatpush.bf16.msra.mxu0 0
      %1061 = vmatpush.bf16.msra.mxu0 %v962
      %1062 = vmatpush.bf16.msra.mxu0 %v918
      %1063 = vmatmul.bf16.gmra.mxu0 %v936
      %v1064 = vpop.f32.mrf.mxu0
      %v1065 = vadd.f32 %v932, %v1064
      %v1066 = vpop.f32.mrf.mxu0
      %1067 = vdwg.mxu0
      %vm1068 = vcmp.ge.f32.partialorder %v974, 0.0
      %vm1069 = vcmp.ge.f32.partialorder %v987, 0.0
      %vm1070 = vcmp.ge.f32.partialorder %v1000, 0.0
      %vm1071 = vcmp.ge.f32.partialorder %v1013, 0.0
      %vm1072 = vcmp.ge.f32.partialorder %v1026, 0.0
      %vm1073 = vcmp.ge.f32.partialorder %v1039, 0.0
      %vm1074 = vcmp.ge.f32.partialorder %v1052, 0.0
      %vm1075 = vcmp.ge.f32.partialorder %v1065, 0.0
      %v1076 = vmul.f32 %v974, 0.01
      %v1077 = vmul.f32 %v987, 0.01
      %v1078 = vmul.f32 %v1000, 0.01
      %v1079 = vmul.f32 %v1013, 0.01
      %v1080 = vmul.f32 %v1026, 0.01
      %v1081 = vmul.f32 %v1039, 0.01
      %v1082 = vmul.f32 %v1052, 0.01
      %v1083 = vmul.f32 %v1065, 0.01
      %v1084 = vsel %vm1068, %v974, %v1076
      %v1085 = vsel %vm1069, %v987, %v1077
      %v1086 = vsel %vm1070, %v1000, %v1078
      %v1087 = vsel %vm1071, %v1013, %v1079
      %v1088 = vsel %vm1072, %v1026, %v1080
      %v1089 = vsel %vm1073, %v1039, %v1081
      %v1090 = vsel %vm1074, %v1052, %v1082
      %v1091 = vsel %vm1075, %v1065, %v1083
      %1092 = vst [vmem:[%s197] sm:$0xff] %v1084
      %1093 = vst [vmem:[%s197 + $0x8] sm:$0xff] %v1085
      %1094 = vst [vmem:[%s197 + $0x10] sm:$0xff] %v1086
      %1095 = vst [vmem:[%s197 + $0x18] sm:$0xff] %v1087
      %1096 = vst [vmem:[%s197 + $0x20] sm:$0xff] %v1088
      %1097 = vst [vmem:[%s197 + $0x28] sm:$0xff] %v1089
      %1098 = vst [vmem:[%s197 + $0x30] sm:$0xff] %v1090
      %1099 = vst [vmem:[%s197 + $0x38] sm:$0xff] %v1091
      %p1100 = scmp.lt.s32.totalorder %s15, 1
      %s1101 = scalar_select %p1100, %s15, 1
      %s1102 = smul.addr %s1101, 8
      %s1103 = smul.addr %s1102, 8
      %s1104 = scalar_lea.vmem %s4, %s1103
      // Predicated region
      $region37: #{encoder_apply.10} parent=35 // pred_check
        %p1105 = pneg %p122
      $region38: #{encoder_apply.10} parent=35 // pred_check_branch
        %1107 = sbr.rel (%p1105) target = $region40
      $region39: #{encoder_apply.10} parent=35 // pred_region
        _
      $region40: #{encoder_apply.10} parent=35 // pred_fallthru
        _
    $region36: #{encoder_apply.10} parent=5 // pred_fallthru
      _
    %p1108 = scmp.le.s32.totalorder 2, %s10
    // Predicated region
    $region41: #{encoder_apply.10} parent=5 // pred_check
      %p1109 = pneg %p1108
    $region42: #{encoder_apply.10} parent=5 // pred_check_branch
      %1111 = sbr.rel (%p1109) target = $region44
    $region43: #{encoder_apply.10} parent=5 // pred_region
      %s1112 = ssub.s32 %s10, 2
      // Predicated region
      $region45: #{encoder_apply.10} parent=43 // pred_check
        %p1113 = pneg %p128
      $region46: #{encoder_apply.10} parent=43 // pred_check_branch
        %1115 = sbr.rel (%p1113) target = $region48
      $region47: #{encoder_apply.10} parent=43 // pred_region
        %p1116 = scmp.lt.s32.totalorder %s16, 1
        %s1117 = scalar_select %p1116, %s16, 1
        %s1118 = smul.addr %s1117, 8
        %s1119 = smul.addr %s1118, 8
        %s1120 = scalar_lea.vmem %s4, %s1119
      $region48: #{encoder_apply.10} parent=43 // pred_fallthru
        _
    $region44: #{encoder_apply.10} parent=5 // pred_fallthru
      _
  $region6: #{encoder_apply.10} parent=0 // loop_footer
    %s14 = sadd.s32 1, %s10
  $region7: #{encoder_apply.10} parent=0 // loop_footer_branch
    %9 = sbr.rel target = $region3
  $region8: #{encoder_apply.10} parent=0 // loop_exit
    _

// kernel: encoder_apply.12
$region0: #{encoder_apply.12}
  #allocation0 [shape = 'u32[]', space=smem, size = 0x4, offset = 0x4, fixed_abs, tag = 'smem constant byte address 0x4 - core index']
  #allocation1 [shape = 'u32[72,128]{1,0:T(1,128)}', space=vmem, size = 0x9000, scoped, tag = 'internal scratch']
  %s0 = inlined_call_operand.vmem [shape: s32[1,256], index: 0, kind: input, shape index: {}]
  %s1 = inlined_call_operand.vmem [shape: f32[2,8,290], index: 1, kind: input, shape index: {}]
  %s2 = inlined_call_operand.vmem [shape: bf16[8,72], index: 2, kind: input, shape index: {}]
  %s3 = inlined_call_operand.vmem [shape: f32[8,1], index: 3, kind: input, shape index: {}]
  %s4 = inlined_call_operand.vmem [shape: f32[2,8,256], index: 4, kind: output, shape index: {}]
  %s5 = sld [smem:[#allocation0]]
  $region49: #{encoder_apply.12} parent=0
    _
  %s7 = ssub.s32 1, %s5
  %s8 = scalar_select 0, %s7, %s5
  loop: start=0, step=1, limit=4
  $region2: #{encoder_apply.12} parent=0 // loop_pre_header
    _
  $region3: #{encoder_apply.12} parent=0 // loop_header
    %s10 = sphi 0, %s14
    %p11 = scmp.ge.s32.totalorder %s10, 4
    %s18 = sphi 0, %s18
    %s20 = sphi 0, %s18
    %s21 = sphi 0, %s20
    %s35 = sphi 0, %s21
    %s41 = sphi 0, %s43
    %s44 = sphi 0, %s41
    %s45 = sphi 0, %s44
    %s61 = sphi 0, %s45
    %s65 = sphi 0, %s65
    %s67 = sphi 0, %s65
    %s68 = sphi 0, %s67
    %s82 = sphi 0, %s68
    %s86 = sphi 0, %s86
    %s88 = sphi 0, %s86
    %s89 = sphi 0, %s88
    %s103 = sphi 0, %s89
    %s109 = sphi 0, %s111
    %s112 = sphi 0, %s109
    %s113 = sphi 0, %s112
    %s129 = sphi 0, %s113
  $region4: #{encoder_apply.12} parent=0 // loop_header_branch
    %13 = sbr.rel (%p11) target = $region8
  $region5: #{encoder_apply.12} parent=0 // loop_body
    %s15 = ssub.s32 %s10, 1
    %s16 = ssub.s32 %s10, 2
    %s17 = sadd.s32 %s10, 1
    %s19 = sadd.s32 %s18, 1
    %p22 = scmp.eq.s32.totalorder %s10, 1
    %p23 = scmp.ne.s32.totalorder %s18, %s20
    %p24 = scmp.eq.s32.totalorder %s10, 0
    %p25 = por %p23, %p24
    %p26 = scmp.ne.s32.totalorder %s18, %s20
    %p27 = scmp.eq.s32.totalorder %s15, 1
    %p28 = por %p26, %p27
    %p29 = scmp.ne.s32.totalorder %s20, %s21
    %p30 = scmp.eq.s32.totalorder %s15, 0
    %p31 = por %p29, %p30
    %p32 = scmp.ne.s32.totalorder %s20, %s21
    %p33 = scmp.eq.s32.totalorder %s16, 1
    %p34 = por %p32, %p33
    %p36 = scmp.ne.s32.totalorder %s21, %s35
    %p37 = scmp.eq.s32.totalorder %s16, 0
    %p38 = por %p36, %p37
    %s39 = ssub.s32 %s10, %s17
    %p40 = scmp.eq.s32.totalorder %s39, 0
    %s42 = sadd.s32 %s41, 1
    %s43 = scalar_select %p40, %s41, %s42
    %p46 = pneg %p40
    %p47 = scmp.eq.s32.totalorder %s10, 1
    %p48 = por %p46, %p47
    %p49 = scmp.ne.s32.totalorder %s41, %s44
    %p50 = scmp.eq.s32.totalorder %s10, 0
    %p51 = por %p49, %p50
    %p52 = scmp.ne.s32.totalorder %s41, %s44
    %p53 = scmp.eq.s32.totalorder %s15, 1
    %p54 = por %p52, %p53
    %p55 = scmp.ne.s32.totalorder %s44, %s45
    %p56 = scmp.eq.s32.totalorder %s15, 0
    %p57 = por %p55, %p56
    %p58 = scmp.ne.s32.totalorder %s44, %s45
    %p59 = scmp.eq.s32.totalorder %s16, 1
    %p60 = por %p58, %p59
    %p62 = scmp.ne.s32.totalorder %s45, %s61
    %p63 = scmp.eq.s32.totalorder %s16, 0
    %p64 = por %p62, %p63
    %s66 = sadd.s32 %s65, 1
    %p69 = scmp.eq.s32.totalorder %s10, 1
    %p70 = scmp.ne.s32.totalorder %s65, %s67
    %p71 = scmp.eq.s32.totalorder %s10, 0
    %p72 = por %p70, %p71
    %p73 = scmp.ne.s32.totalorder %s65, %s67
    %p74 = scmp.eq.s32.totalorder %s15, 1
    %p75 = por %p73, %p74
    %p76 = scmp.ne.s32.totalorder %s67, %s68
    %p77 = scmp.eq.s32.totalorder %s15, 0
    %p78 = por %p76, %p77
    %p79 = scmp.ne.s32.totalorder %s67, %s68
    %p80 = scmp.eq.s32.totalorder %s16, 1
    %p81 = por %p79, %p80
    %p83 = scmp.ne.s32.totalorder %s68, %s82
    %p84 = scmp.eq.s32.totalorder %s16, 0
    %p85 = por %p83, %p84
    %s87 = sadd.s32 %s86, 1
    %p90 = scmp.eq.s32.totalorder %s10, 1
    %p91 = scmp.ne.s32.totalorder %s86, %s88
    %p92 = scmp.eq.s32.totalorder %s10, 0
    %p93 = por %p91, %p92
    %p94 = scmp.ne.s32.totalorder %s86, %s88
    %p95 = scmp.eq.s32.totalorder %s15, 1
    %p96 = por %p94, %p95
    %p97 = scmp.ne.s32.totalorder %s88, %s89
    %p98 = scmp.eq.s32.totalorder %s15, 0
    %p99 = por %p97, %p98
    %p100 = scmp.ne.s32.totalorder %s88, %s89
    %p101 = scmp.eq.s32.totalorder %s16, 1
    %p102 = por %p100, %p101
    %p104 = scmp.ne.s32.totalorder %s89, %s103
    %p105 = scmp.eq.s32.totalorder %s16, 0
    %p106 = por %p104, %p105
    %s107 = ssub.s32 %s10, %s17
    %p108 = scmp.eq.s32.totalorder %s107, 0
    %s110 = sadd.s32 %s109, 1
    %s111 = scalar_select %p108, %s109, %s110
    %p114 = pneg %p108
    %p115 = scmp.eq.s32.totalorder %s10, 1
    %p116 = por %p114, %p115
    %p117 = scmp.ne.s32.totalorder %s109, %s112
    %p118 = scmp.eq.s32.totalorder %s10, 0
    %p119 = por %p117, %p118
    %p120 = scmp.ne.s32.totalorder %s109, %s112
    %p121 = scmp.eq.s32.totalorder %s15, 1
    %p122 = por %p120, %p121
    %p123 = scmp.ne.s32.totalorder %s112, %s113
    %p124 = scmp.eq.s32.totalorder %s15, 0
    %p125 = por %p123, %p124
    %p126 = scmp.ne.s32.totalorder %s112, %s113
    %p127 = scmp.eq.s32.totalorder %s16, 1
    %p128 = por %p126, %p127
    %p130 = scmp.ne.s32.totalorder %s113, %s129
    %p131 = scmp.eq.s32.totalorder %s16, 0
    %p132 = por %p130, %p131
    %p133 = scmp.le.s32.totalorder 1, %s10
    %p134 = scmp.lt.s32.totalorder %s10, 3
    %p135 = pnand %p133, %p134
    %p136 = pneg %p135
    // Predicated region
    $region9: #{encoder_apply.12} parent=5 // pred_check
      _
    $region10: #{encoder_apply.12} parent=5 // pred_check_branch
      %138 = sbr.rel (%p135) target = $region12
    $region11: #{encoder_apply.12} parent=5 // pred_region
      %s139 = ssub.s32 %s10, 1
      // Predicated region
      $region13: #{encoder_apply.12} parent=11 // pred_check
        %p140 = pneg %p31
      $region14: #{encoder_apply.12} parent=11 // pred_check_branch
        %142 = sbr.rel (%p140) target = $region16
      $region15: #{encoder_apply.12} parent=11 // pred_region
        _
      $region16: #{encoder_apply.12} parent=11 // pred_fallthru
        _
      // Predicated region
      $region17: #{encoder_apply.12} parent=11 // pred_check
        %p143 = pneg %p78
      $region18: #{encoder_apply.12} parent=11 // pred_check_branch
        %145 = sbr.rel (%p143) target = $region20
      $region19: #{encoder_apply.12} parent=11 // pred_region
        _
      $region20: #{encoder_apply.12} parent=11 // pred_fallthru
        _
      // Predicated region
      $region21: #{encoder_apply.12} parent=11 // pred_check
        %p146 = pneg %p99
      $region22: #{encoder_apply.12} parent=11 // pred_check_branch
        %148 = sbr.rel (%p146) target = $region24
      $region23: #{encoder_apply.12} parent=11 // pred_region
        _
      $region24: #{encoder_apply.12} parent=11 // pred_fallthru
        _
    $region12: #{encoder_apply.12} parent=5 // pred_fallthru
      _
    %p149 = scmp.lt.s32.totalorder %s10, 2
    // Predicated region
    $region25: #{encoder_apply.12} parent=5 // pred_check
      %p150 = pneg %p149
    $region26: #{encoder_apply.12} parent=5 // pred_check_branch
      %152 = sbr.rel (%p150) target = $region28
    $region27: #{encoder_apply.12} parent=5 // pred_region
      // Predicated region
      $region29: #{encoder_apply.12} parent=27 // pred_check
        %p153 = pneg %p51
      $region30: #{encoder_apply.12} parent=27 // pred_check_branch
        %155 = sbr.rel (%p153) target = $region32
      $region31: #{encoder_apply.12} parent=27 // pred_region
        %p156 = scmp.lt.s32.totalorder %s10, 1
        %s157 = scalar_select %p156, %s10, 1
        %s158 = smul.addr %s157, 3
        %s159 = smul.addr %s158, 8
        %s160 = scalar_lea.vmem %s1, %s159
      $region32: #{encoder_apply.12} parent=27 // pred_fallthru
        _
    $region28: #{encoder_apply.12} parent=5 // pred_fallthru
      _
    %p161 = scmp.le.s32.totalorder 1, %s10
    %p162 = scmp.lt.s32.totalorder %s10, 3
    %p163 = pnand %p161, %p162
    %p164 = pneg %p163
    // Predicated region
    $region33: #{encoder_apply.12} parent=5 // pred_check
      _
    $region34: #{encoder_apply.12} parent=5 // pred_check_branch
      %166 = sbr.rel (%p163) target = $region36
    $region35: #{encoder_apply.12} parent=5 // pred_region
      %s167 = ssub.s32 %s10, 1
      %p168 = pneg %p31
      %p169 = pneg %p28
      %p170 = scmp.lt.s32.totalorder %s15, 1
      %s171 = scalar_select %p170, %s15, 1
      %s172 = smul.addr %s171, 3
      %s173 = smul.addr %s172, 8
      %s174 = scalar_lea.vmem %s1, %s173
      %p175 = pneg %p57
      %p176 = pneg %p54
      %p177 = pneg %p78
      %p178 = pneg %p75
      %p179 = pneg %p99
      %p180 = pneg %p96
      %p181 = pneg %p125
      %p182 = pneg %p122
      %p183 = scmp.lt.s32.totalorder %s15, 1
      %s184 = scalar_select %p183, %s15, 1
      %s185 = smul.addr %s184, 2
      %s186 = smul.addr %s185, 8
      %s187 = scalar_lea.vmem %s4, %s186
      %p188 = scmp.lt.s32.totalorder %s15, 1
      %s189 = scalar_select %p188, %s15, 1
      %s190 = smul.addr %s189, 3
      %s191 = smul.addr %s190, 8
      %s192 = scalar_lea.vmem %s1, %s191
      %p193 = scmp.lt.s32.totalorder %s15, 1
      %s194 = scalar_select %p193, %s15, 1
      %s195 = smul.addr %s194, 2
      %s196 = smul.addr %s195, 8
      %s197 = scalar_lea.vmem %s4, %s196
      %v199 = vld [vmem:[%s0] sm:$0x3]
      %v200 = vld [vmem:[%s192] sm:$0xff]
      %v201 = vld [vmem:[%s192 + $0x8] sm:$0xff]
      %v202 = vld [vmem:[%s192 + $0x10] sm:$0xff]
      %vm203 = vcmp.gt.s32.totalorder %v199, 0
      %v204 = vsel %vm203, 1, 0
      %v205 = vperm.slane %v204, 0
      %v206 = vperm.slane %v204, 1
      %vm207 = vcmp.eq.s32.totalorder %v205, 1
      %vm208 = vcmp.eq.s32.totalorder %v206, 1
      %v209 = vsel %vm207, %v200, 0.0
      %v210 = vsel %vm208, %v201, 0.0
      %vm211 = vcmp.lt.s32.totalorder %v199, 15
      %v212 = vsel %vm211, 1, 0
      %v213 = vperm.slane %v212, 0
      %v214 = vperm.slane %v212, 1
      %vm215 = vcmp.eq.s32.totalorder %v213, 1
      %vm216 = vcmp.eq.s32.totalorder %v214, 1
      %220 = vrot.lane.b32.xlu0 %v200, 126
      %v221 = vpop.permute.xlu0 %220
      %222 = vrot.lane.b32.xlu0 %v201, 126
      %v223 = vpop.permute.xlu0 %222
      %224 = vrot.lane.b32.xlu0 %v202, 126
      %v225 = vpop.permute.xlu0 %224
      %vm226 = vcmask 1031168
      %v227 = vsel %vm226, %v221, %v223
      %v228 = vsel %vm226, %v223, %v225
      %v231 = vsel %vm215, %v227, 0.0
      %v232 = vsel %vm216, %v228, 0.0
      %233 = vrot.lane.b32.xlu0 %v200, 112
      %v234 = vpop.permute.xlu0 %233
      %235 = vrot.lane.b32.xlu0 %v201, 112
      %v236 = vpop.permute.xlu0 %235
      %237 = vrot.lane.b32.xlu0 %v202, 112
      %v238 = vpop.permute.xlu0 %237
      %vm239 = vcmask 916480
      %v240 = vsel %vm239, %v234, %v236
      %v241 = vsel %vm239, %v236, %v238
      %v244 = vsel %vm207, %v240, 0.0
      %v245 = vsel %vm208, %v241, 0.0
      %246 = vrot.lane.b32.xlu0 %v200, 110
      %v247 = vpop.permute.xlu0 %246
      %248 = vrot.lane.b32.xlu0 %v201, 110
      %v249 = vpop.permute.xlu0 %248
      %250 = vrot.lane.b32.xlu0 %v202, 110
      %v251 = vpop.permute.xlu0 %250
      %vm252 = vcmask 900096
      %v253 = vsel %vm252, %v247, %v249
      %v254 = vsel %vm252, %v249, %v251
      %v257 = vsel %vm215, %v253, 0.0
      %v258 = vsel %vm216, %v254, 0.0
      %259 = vrot.lane.b32.xlu0 %v200, 96
      %v260 = vpop.permute.xlu0 %259
      %261 = vrot.lane.b32.xlu0 %v201, 96
      %v262 = vpop.permute.xlu0 %261
      %263 = vrot.lane.b32.xlu0 %v202, 96
      %v264 = vpop.permute.xlu0 %263
      %vm265 = vcmask 785408
      %v266 = vsel %vm265, %v260, %v262
      %v267 = vsel %vm265, %v262, %v264
      %v270 = vsel %vm207, %v266, 0.0
      %v271 = vsel %vm208, %v267, 0.0
      %272 = vrot.lane.b32.xlu0 %v200, 94
      %v273 = vpop.permute.xlu0 %272
      %274 = vrot.lane.b32.xlu0 %v201, 94
      %v275 = vpop.permute.xlu0 %274
      %276 = vrot.lane.b32.xlu0 %v202, 94
      %v277 = vpop.permute.xlu0 %276
      %vm278 = vcmask 769024
      %v279 = vsel %vm278, %v273, %v275
      %v280 = vsel %vm278, %v275, %v277
      %v283 = vsel %vm215, %v279, 0.0
      %v284 = vsel %vm216, %v280, 0.0
      %285 = vrot.lane.b32.xlu0 %v200, 127
      %v286 = vpop.permute.xlu0 %285
      %287 = vrot.lane.b32.xlu0 %v201, 127
      %v288 = vpop.permute.xlu0 %287
      %289 = vrot.lane.b32.xlu0 %v202, 127
      %v290 = vpop.permute.xlu0 %289
      %vm291 = vcmask 1039360
      %v292 = vsel %vm291, %v286, %v288
      %v293 = vsel %vm291, %v288, %v290
      %296 = vrot.lane.b32.xlu0 %v200, 111
      %v297 = vpop.permute.xlu0 %296
      %298 = vrot.lane.b32.xlu0 %v201, 111
      %v299 = vpop.permute.xlu0 %298
      %300 = vrot.lane.b32.xlu0 %v202, 111
      %v301 = vpop.permute.xlu0 %300
      %vm302 = vcmask 908288
      %v303 = vsel %vm302, %v297, %v299
      %v304 = vsel %vm302, %v299, %v301
      %307 = vrot.lane.b32.xlu0 %v200, 95
      %v308 = vpop.permute.xlu0 %307
      %309 = vrot.lane.b32.xlu0 %v201, 95
      %v310 = vpop.permute.xlu0 %309
      %311 = vrot.lane.b32.xlu0 %v202, 95
      %v312 = vpop.permute.xlu0 %311
      %vm313 = vcmask 777216
      %v314 = vsel %vm313, %v308, %v310
      %v315 = vsel %vm313, %v310, %v312
      %v318 = vpack.c.bf16 %v292, %v209
      %v319 = vpack.c.bf16 %v293, %v210
      %v320 = vpack.c.bf16 %v244, %v231
      %v321 = vpack.c.bf16 %v245, %v232
      %v322 = vpack.c.bf16 %v257, %v303
      %v323 = vpack.c.bf16 %v258, %v304
      %v324 = vpack.c.bf16 %v314, %v270
      %v325 = vpack.c.bf16 %v315, %v271
      %v326 = vpack.c.bf16 %v283, %v283
      %v327 = vpack.c.bf16 %v284, %v284
      %v328 = vld [vmem:[%s2] sm:$0xf]
      %v329 = vld [vmem:[%s3] sm:$0xff]
      %331 = vset.pattern.permute.xlu0 0
      %332 = vperm.xlu0 %331, %v329
      %v333 = vpop.permute.xlu0 %332
      %vm335 = vcmask 588800
      %v337 = vsel %vm335, %v328, 0
      %vm339 = vcmask 1043456
      %v341 = vsel %vm339, %v326, 0
      %v344 = vsel %vm339, %v327, 0
      %346 = vmatpush.bf16.msra.mxu0 0
      %347 = vmatpush.bf16.msra.mxu0 0
      %348 = vmatpush.bf16.msra.mxu0 0
      %349 = vmatpush.bf16.msra.mxu0 %v341
      %350 = vmatpush.bf16.msra.mxu0 %v324
      %351 = vmatpush.bf16.msra.mxu0 %v322
      %352 = vmatpush.bf16.msra.mxu0 %v320
      %353 = vmatpush.bf16.msra.mxu0 %v318
      %354 = vmatmul.bf16.gmra.mxu0 %v337
      %v355 = vpop.f32.mrf.mxu0
      %v356 = vadd.f32 %v333, %v355
      %v357 = vpop.f32.mrf.mxu0
      %358 = vdwg.mxu0
      %359 = vmatpush.bf16.msra.mxu0 0
      %360 = vmatpush.bf16.msra.mxu0 0
      %361 = vmatpush.bf16.msra.mxu0 0
      %362 = vmatpush.bf16.msra.mxu0 %v344
      %363 = vmatpush.bf16.msra.mxu0 %v325
      %364 = vmatpush.bf16.msra.mxu0 %v323
      %365 = vmatpush.bf16.msra.mxu0 %v321
      %366 = vmatpush.bf16.msra.mxu0 %v319
      %367 = vmatmul.bf16.gmra.mxu0 %v337
      %v368 = vpop.f32.mrf.mxu0
      %v369 = vadd.f32 %v333, %v368
      %v370 = vpop.f32.mrf.mxu0
      %371 = vdwg.mxu0
      %vm372 = vcmp.ge.f32.partialorder %v356, 0.0
      %vm373 = vcmp.ge.f32.partialorder %v369, 0.0
      %v374 = vmul.f32 %v356, 0.01
      %v375 = vmul.f32 %v369, 0.01
      %v376 = vsel %vm372, %v356, %v374
      %v377 = vsel %vm373, %v369, %v375
      %378 = vst [vmem:[%s197] sm:$0xff] %v376
      %379 = vst [vmem:[%s197 + $0x8] sm:$0xff] %v377
      %p380 = scmp.lt.s32.totalorder %s15, 1
      %s381 = scalar_select %p380, %s15, 1
      %s382 = smul.addr %s381, 2
      %s383 = smul.addr %s382, 8
      %s384 = scalar_lea.vmem %s4, %s383
      // Predicated region
      $region37: #{encoder_apply.12} parent=35 // pred_check
        %p385 = pneg %p122
      $region38: #{encoder_apply.12} parent=35 // pred_check_branch
        %387 = sbr.rel (%p385) target = $region40
      $region39: #{encoder_apply.12} parent=35 // pred_region
        _
      $region40: #{encoder_apply.12} parent=35 // pred_fallthru
        _
    $region36: #{encoder_apply.12} parent=5 // pred_fallthru
      _
    %p388 = scmp.le.s32.totalorder 2, %s10
    // Predicated region
    $region41: #{encoder_apply.12} parent=5 // pred_check
      %p389 = pneg %p388
    $region42: #{encoder_apply.12} parent=5 // pred_check_branch
      %391 = sbr.rel (%p389) target = $region44
    $region43: #{encoder_apply.12} parent=5 // pred_region
      %s392 = ssub.s32 %s10, 2
      // Predicated region
      $region45: #{encoder_apply.12} parent=43 // pred_check
        %p393 = pneg %p128
      $region46: #{encoder_apply.12} parent=43 // pred_check_branch
        %395 = sbr.rel (%p393) target = $region48
      $region47: #{encoder_apply.12} parent=43 // pred_region
        %p396 = scmp.lt.s32.totalorder %s16, 1
        %s397 = scalar_select %p396, %s16, 1
        %s398 = smul.addr %s397, 2
        %s399 = smul.addr %s398, 8
        %s400 = scalar_lea.vmem %s4, %s399
      $region48: #{encoder_apply.12} parent=43 // pred_fallthru
        _
    $region44: #{encoder_apply.12} parent=5 // pred_fallthru
      _
  $region6: #{encoder_apply.12} parent=0 // loop_footer
    %s14 = sadd.s32 1, %s10
  $region7: #{encoder_apply.12} parent=0 // loop_footer_branch
    %9 = sbr.rel target = $region3
  $region8: #{encoder_apply.12} parent=0 // loop_exit
    _

// kernel: encoder_apply.13
$region0: #{encoder_apply.13}
  #allocation0 [shape = 'u32[]', space=smem, size = 0x4, offset = 0x4, fixed_abs, tag = 'smem constant byte address 0x4 - core index']
  #allocation1 [shape = 'u32[72,128]{1,0:T(1,128)}', space=vmem, size = 0x9000, scoped, tag = 'internal scratch']
  %s0 = inlined_call_operand.vmem [shape: f32[2,32,64], index: 0, kind: input, shape index: {}]
  %s1 = inlined_call_operand.vmem [shape: bf16[8,32], index: 1, kind: input, shape index: {}]
  %s2 = inlined_call_operand.vmem [shape: f32[8,1], index: 2, kind: input, shape index: {}]
  %s3 = inlined_call_operand.vmem [shape: f32[2,8,64], index: 3, kind: output, shape index: {}]
  %s4 = sld [smem:[#allocation0]]
  $region45: #{encoder_apply.13} parent=0
    _
  %s6 = ssub.s32 1, %s4
  %s7 = scalar_select 0, %s6, %s4
  loop: start=0, step=1, limit=4
  $region2: #{encoder_apply.13} parent=0 // loop_pre_header
    _
  $region3: #{encoder_apply.13} parent=0 // loop_header
    %s9 = sphi 0, %s13
    %p10 = scmp.ge.s32.totalorder %s9, 4
    %s16 = sphi 0, %s28
    %s17 = sphi 0, %s24
    %s18 = sphi 0, %s16
    %s19 = sphi 0, %s17
    %s20 = sphi 0, %s18
    %s21 = sphi 0, %s19
    %s33 = sphi 0, %s35
    %s36 = sphi 0, %s33
    %s37 = sphi 0, %s36
    %s53 = sphi 0, %s37
    %s57 = sphi 0, %s57
    %s59 = sphi 0, %s57
    %s60 = sphi 0, %s59
    %s74 = sphi 0, %s60
    %s78 = sphi 0, %s78
    %s80 = sphi 0, %s78
    %s81 = sphi 0, %s80
    %s95 = sphi 0, %s81
    %s103 = sphi 0, %s105
    %s106 = sphi 0, %s103
    %s107 = sphi 0, %s106
    %s123 = sphi 0, %s107
  $region4: #{encoder_apply.13} parent=0 // loop_header_branch
    %12 = sbr.rel (%p10) target = $region8
  $region5: #{encoder_apply.13} parent=0 // loop_body
    %s14 = ssub.s32 %s9, 1
    %s15 = ssub.s32 %s9, 2
    %s22 = sadd.s32 1, %s17
    %p23 = scmp.ge.s32.totalorder %s22, 1
    %s24 = scalar_select %p23, 0, %s22
    %s25 = sadd.s32 1, %s16
    %s26 = scalar_select %p23, %s25, %s16
    %p27 = scmp.ge.s32.totalorder %s26, 2
    %s28 = scalar_select %p27, 0, %s26
    %s29 = ssub.s32 %s16, %s28
    %s30 = ssub.s32 %s17, %s24
    %s31 = sor.u32 %s29, %s30
    %p32 = scmp.eq.s32.totalorder %s31, 0
    %s34 = sadd.s32 %s33, 1
    %s35 = scalar_select %p32, %s33, %s34
    %p38 = pneg %p32
    %p39 = scmp.eq.s32.totalorder %s9, 1
    %p40 = por %p38, %p39
    %p41 = scmp.ne.s32.totalorder %s33, %s36
    %p42 = scmp.eq.s32.totalorder %s9, 0
    %p43 = por %p41, %p42
    %p44 = scmp.ne.s32.totalorder %s33, %s36
    %p45 = scmp.eq.s32.totalorder %s14, 1
    %p46 = por %p44, %p45
    %p47 = scmp.ne.s32.totalorder %s36, %s37
    %p48 = scmp.eq.s32.totalorder %s14, 0
    %p49 = por %p47, %p48
    %p50 = scmp.ne.s32.totalorder %s36, %s37
    %p51 = scmp.eq.s32.totalorder %s15, 1
    %p52 = por %p50, %p51
    %p54 = scmp.ne.s32.totalorder %s37, %s53
    %p55 = scmp.eq.s32.totalorder %s15, 0
    %p56 = por %p54, %p55
    %s58 = sadd.s32 %s57, 1
    %p61 = scmp.eq.s32.totalorder %s9, 1
    %p62 = scmp.ne.s32.totalorder %s57, %s59
    %p63 = scmp.eq.s32.totalorder %s9, 0
    %p64 = por %p62, %p63
    %p65 = scmp.ne.s32.totalorder %s57, %s59
    %p66 = scmp.eq.s32.totalorder %s14, 1
    %p67 = por %p65, %p66
    %p68 = scmp.ne.s32.totalorder %s59, %s60
    %p69 = scmp.eq.s32.totalorder %s14, 0
    %p70 = por %p68, %p69
    %p71 = scmp.ne.s32.totalorder %s59, %s60
    %p72 = scmp.eq.s32.totalorder %s15, 1
    %p73 = por %p71, %p72
    %p75 = scmp.ne.s32.totalorder %s60, %s74
    %p76 = scmp.eq.s32.totalorder %s15, 0
    %p77 = por %p75, %p76
    %s79 = sadd.s32 %s78, 1
    %p82 = scmp.eq.s32.totalorder %s9, 1
    %p83 = scmp.ne.s32.totalorder %s78, %s80
    %p84 = scmp.eq.s32.totalorder %s9, 0
    %p85 = por %p83, %p84
    %p86 = scmp.ne.s32.totalorder %s78, %s80
    %p87 = scmp.eq.s32.totalorder %s14, 1
    %p88 = por %p86, %p87
    %p89 = scmp.ne.s32.totalorder %s80, %s81
    %p90 = scmp.eq.s32.totalorder %s14, 0
    %p91 = por %p89, %p90
    %p92 = scmp.ne.s32.totalorder %s80, %s81
    %p93 = scmp.eq.s32.totalorder %s15, 1
    %p94 = por %p92, %p93
    %p96 = scmp.ne.s32.totalorder %s81, %s95
    %p97 = scmp.eq.s32.totalorder %s15, 0
    %p98 = por %p96, %p97
    %s99 = ssub.s32 %s16, %s28
    %s100 = ssub.s32 %s17, %s24
    %s101 = sor.u32 %s99, %s100
    %p102 = scmp.eq.s32.totalorder %s101, 0
    %s104 = sadd.s32 %s103, 1
    %s105 = scalar_select %p102, %s103, %s104
    %p108 = pneg %p102
    %p109 = scmp.eq.s32.totalorder %s9, 1
    %p110 = por %p108, %p109
    %p111 = scmp.ne.s32.totalorder %s103, %s106
    %p112 = scmp.eq.s32.totalorder %s9, 0
    %p113 = por %p111, %p112
    %p114 = scmp.ne.s32.totalorder %s103, %s106
    %p115 = scmp.eq.s32.totalorder %s14, 1
    %p116 = por %p114, %p115
    %p117 = scmp.ne.s32.totalorder %s106, %s107
    %p118 = scmp.eq.s32.totalorder %s14, 0
    %p119 = por %p117, %p118
    %p120 = scmp.ne.s32.totalorder %s106, %s107
    %p121 = scmp.eq.s32.totalorder %s15, 1
    %p122 = por %p120, %p121
    %p124 = scmp.ne.s32.totalorder %s107, %s123
    %p125 = scmp.eq.s32.totalorder %s15, 0
    %p126 = por %p124, %p125
    %p127 = scmp.le.s32.totalorder 1, %s9
    %p128 = scmp.lt.s32.totalorder %s9, 3
    %p129 = pnand %p127, %p128
    %p130 = pneg %p129
    // Predicated region
    $region9: #{encoder_apply.13} parent=5 // pred_check
      _
    $region10: #{encoder_apply.13} parent=5 // pred_check_branch
      %132 = sbr.rel (%p129) target = $region12
    $region11: #{encoder_apply.13} parent=5 // pred_region
      %s133 = ssub.s32 %s9, 1
      // Predicated region
      $region13: #{encoder_apply.13} parent=11 // pred_check
        %p134 = pneg %p70
      $region14: #{encoder_apply.13} parent=11 // pred_check_branch
        %136 = sbr.rel (%p134) target = $region16
      $region15: #{encoder_apply.13} parent=11 // pred_region
        _
      $region16: #{encoder_apply.13} parent=11 // pred_fallthru
        _
      // Predicated region
      $region17: #{encoder_apply.13} parent=11 // pred_check
        %p137 = pneg %p91
      $region18: #{encoder_apply.13} parent=11 // pred_check_branch
        %139 = sbr.rel (%p137) target = $region20
      $region19: #{encoder_apply.13} parent=11 // pred_region
        _
      $region20: #{encoder_apply.13} parent=11 // pred_fallthru
        _
    $region12: #{encoder_apply.13} parent=5 // pred_fallthru
      _
    %p140 = scmp.lt.s32.totalorder %s9, 2
    // Predicated region
    $region21: #{encoder_apply.13} parent=5 // pred_check
      %p141 = pneg %p140
    $region22: #{encoder_apply.13} parent=5 // pred_check_branch
      %143 = sbr.rel (%p141) target = $region24
    $region23: #{encoder_apply.13} parent=5 // pred_region
      // Predicated region
      $region25: #{encoder_apply.13} parent=23 // pred_check
        %p144 = pneg %p43
      $region26: #{encoder_apply.13} parent=23 // pred_check_branch
        %146 = sbr.rel (%p144) target = $region28
      $region27: #{encoder_apply.13} parent=23 // pred_region
        %p147 = scmp.lt.s32.totalorder %s16, 1
        %s148 = scalar_select %p147, %s16, 1
        %p149 = scmp.lt.s32.totalorder %s17, 0
        %s150 = scalar_select %p149, %s17, 0
        %s151 = smul.addr %s148, 4
        %s152 = sadd.s32 %s150, %s151
        %s153 = smul.addr %s152, 8
        %s154 = scalar_lea.vmem %s0, %s153
      $region28: #{encoder_apply.13} parent=23 // pred_fallthru
        _
    $region24: #{encoder_apply.13} parent=5 // pred_fallthru
      _
    %p155 = scmp.le.s32.totalorder 1, %s9
    %p156 = scmp.lt.s32.totalorder %s9, 3
    %p157 = pnand %p155, %p156
    %p158 = pneg %p157
    // Predicated region
    $region29: #{encoder_apply.13} parent=5 // pred_check
      _
    $region30: #{encoder_apply.13} parent=5 // pred_check_branch
      %160 = sbr.rel (%p157) target = $region32
    $region31: #{encoder_apply.13} parent=5 // pred_region
      %s161 = ssub.s32 %s9, 1
      %p162 = scmp.lt.s32.totalorder %s18, 1
      %s163 = scalar_select %p162, %s18, 1
      %p164 = scmp.lt.s32.totalorder %s19, 0
      %s165 = scalar_select %p164, %s19, 0
      %s166 = smul.addr %s163, 4
      %s167 = sadd.s32 %s165, %s166
      %s168 = smul.addr %s167, 8
      %s169 = scalar_lea.vmem %s0, %s168
      %p170 = pneg %p49
      %p171 = pneg %p46
      %p172 = pneg %p70
      %p173 = pneg %p67
      %p174 = pneg %p91
      %p175 = pneg %p88
      %p176 = pneg %p119
      %p177 = pneg %p116
      %p178 = scmp.lt.s32.totalorder %s18, 1
      %s179 = scalar_select %p178, %s18, 1
      %p180 = scmp.lt.s32.totalorder %s19, 0
      %s181 = scalar_select %p180, %s19, 0
      %s182 = sadd.s32 %s181, %s179
      %s183 = smul.addr %s182, 8
      %s184 = scalar_lea.vmem %s3, %s183
      %p185 = scmp.lt.s32.totalorder %s18, 1
      %s186 = scalar_select %p185, %s18, 1
      %p187 = scmp.lt.s32.totalorder %s19, 0
      %s188 = scalar_select %p187, %s19, 0
      %s189 = smul.addr %s186, 4
      %s190 = sadd.s32 %s188, %s189
      %s191 = smul.addr %s190, 8
      %s192 = scalar_lea.vmem %s0, %s191
      %p193 = scmp.lt.s32.totalorder %s18, 1
      %s194 = scalar_select %p193, %s18, 1
      %p195 = scmp.lt.s32.totalorder %s19, 0
      %s196 = scalar_select %p195, %s19, 0
      %s197 = sadd.s32 %s196, %s194
      %s198 = smul.addr %s197, 8
      %s199 = scalar_lea.vmem %s3, %s198
      %v201 = vld [vmem:[%s192] sm:$0xff]
      %v202 = vld [vmem:[%s192 + $0x8] sm:$0xff]
      %v203 = vld [vmem:[%s192 + $0x10] sm:$0xff]
      %v204 = vld [vmem:[%s192 + $0x18] sm:$0xff]
      %v205 = vpack.c.bf16 %v202, %v201
      %v206 = vpack.c.bf16 %v204, %v203
      %v207 = vld [vmem:[%s1] sm:$0xf]
      %v208 = vld [vmem:[%s2] sm:$0xff]
      %210 = vset.pattern.permute.xlu0 0
      %211 = vperm.xlu0 %210, %v208
      %v212 = vpop.permute.xlu0 %211
      %vm214 = vcmask 261120
      %v216 = vsel %vm214, %v207, 0
      %218 = vmatpush.bf16.msra.mxu0 0
      %219 = vmatpush.bf16.msra.mxu0 0
      %220 = vmatpush.bf16.msra.mxu0 0
      %221 = vmatpush.bf16.msra.mxu0 0
      %222 = vmatpush.bf16.msra.mxu0 0
      %223 = vmatpush.bf16.msra.mxu0 0
      %224 = vmatpush.bf16.msra.mxu0 %v206
      %225 = vmatpush.bf16.msra.mxu0 %v205
      %226 = vmatmul.bf16.gmra.mxu0 %v216
      %v227 = vpop.f32.mrf.mxu0
      %v228 = vadd.f32 %v212, %v227
      %v229 = vpop.f32.mrf.mxu0
      %230 = vdwg.mxu0
      %vm231 = vcmp.ge.f32.partialorder %v228, 0.0
      %v232 = vmul.f32 %v228, 0.01
      %v233 = vsel %vm231, %v228, %v232
      %vm234 = vcmask 523264
      %235 = vst.msk [vmem:[%s199] sm:$0xff] %vm234, %v233
      %p236 = scmp.lt.s32.totalorder %s18, 1
      %s237 = scalar_select %p236, %s18, 1
      %p238 = scmp.lt.s32.totalorder %s19, 0
      %s239 = scalar_select %p238, %s19, 0
      %s240 = sadd.s32 %s239, %s237
      %s241 = smul.addr %s240, 8
      %s242 = scalar_lea.vmem %s3, %s241
      // Predicated region
      $region33: #{encoder_apply.13} parent=31 // pred_check
        %p243 = pneg %p116
      $region34: #{encoder_apply.13} parent=31 // pred_check_branch
        %245 = sbr.rel (%p243) target = $region36
      $region35: #{encoder_apply.13} parent=31 // pred_region
        _
      $region36: #{encoder_apply.13} parent=31 // pred_fallthru
        _
    $region32: #{encoder_apply.13} parent=5 // pred_fallthru
      _
    %p246 = scmp.le.s32.totalorder 2, %s9
    // Predicated region
    $region37: #{encoder_apply.13} parent=5 // pred_check
      %p247 = pneg %p246
    $region38: #{encoder_apply.13} parent=5 // pred_check_branch
      %249 = sbr.rel (%p247) target = $region40
    $region39: #{encoder_apply.13} parent=5 // pred_region
      %s250 = ssub.s32 %s9, 2
      // Predicated region
      $region41: #{encoder_apply.13} parent=39 // pred_check
        %p251 = pneg %p122
      $region42: #{encoder_apply.13} parent=39 // pred_check_branch
        %253 = sbr.rel (%p251) target = $region44
      $region43: #{encoder_apply.13} parent=39 // pred_region
        %p254 = scmp.lt.s32.totalorder %s20, 1
        %s255 = scalar_select %p254, %s20, 1
        %p256 = scmp.lt.s32.totalorder %s21, 0
        %s257 = scalar_select %p256, %s21, 0
        %s258 = sadd.s32 %s257, %s255
        %s259 = smul.addr %s258, 8
        %s260 = scalar_lea.vmem %s3, %s259
      $region44: #{encoder_apply.13} parent=39 // pred_fallthru
        _
    $region40: #{encoder_apply.13} parent=5 // pred_fallthru
      _
  $region6: #{encoder_apply.13} parent=0 // loop_footer
    %s13 = sadd.s32 1, %s9
  $region7: #{encoder_apply.13} parent=0 // loop_footer_branch
    %8 = sbr.rel target = $region3
  $region8: #{encoder_apply.13} parent=0 // loop_exit
    _

// kernel: encoder_apply.14
$region0: #{encoder_apply.14}
  #allocation0 [shape = 'u32[]', space=smem, size = 0x4, offset = 0x4, fixed_abs, tag = 'smem constant byte address 0x4 - core index']
  #allocation1 [shape = 'u32[72,128]{1,0:T(1,128)}', space=vmem, size = 0x9000, scoped, tag = 'internal scratch']
  %s0 = inlined_call_operand.vmem [shape: s32[1,64], index: 0, kind: input, shape index: {}]
  %s1 = inlined_call_operand.vmem [shape: f32[2,8,82], index: 1, kind: input, shape index: {}]
  %s2 = inlined_call_operand.vmem [shape: bf16[8,72], index: 2, kind: input, shape index: {}]
  %s3 = inlined_call_operand.vmem [shape: f32[8,1], index: 3, kind: input, shape index: {}]
  %s4 = inlined_call_operand.vmem [shape: f32[2,8,64], index: 4, kind: output, shape index: {}]
  %s5 = sld [smem:[#allocation0]]
  $region49: #{encoder_apply.14} parent=0
    _
  %s7 = ssub.s32 1, %s5
  %s8 = scalar_select 0, %s7, %s5
  loop: start=0, step=1, limit=4
  $region2: #{encoder_apply.14} parent=0 // loop_pre_header
    _
  $region3: #{encoder_apply.14} parent=0 // loop_header
    %s10 = sphi 0, %s14
    %p11 = scmp.ge.s32.totalorder %s10, 4
    %s18 = sphi 0, %s18
    %s20 = sphi 0, %s18
    %s21 = sphi 0, %s20
    %s35 = sphi 0, %s21
    %s41 = sphi 0, %s43
    %s44 = sphi 0, %s41
    %s45 = sphi 0, %s44
    %s61 = sphi 0, %s45
    %s65 = sphi 0, %s65
    %s67 = sphi 0, %s65
    %s68 = sphi 0, %s67
    %s82 = sphi 0, %s68
    %s86 = sphi 0, %s86
    %s88 = sphi 0, %s86
    %s89 = sphi 0, %s88
    %s103 = sphi 0, %s89
    %s109 = sphi 0, %s111
    %s112 = sphi 0, %s109
    %s113 = sphi 0, %s112
    %s129 = sphi 0, %s113
  $region4: #{encoder_apply.14} parent=0 // loop_header_branch
    %13 = sbr.rel (%p11) target = $region8
  $region5: #{encoder_apply.14} parent=0 // loop_body
    %s15 = ssub.s32 %s10, 1
    %s16 = ssub.s32 %s10, 2
    %s17 = sadd.s32 %s10, 1
    %s19 = sadd.s32 %s18, 1
    %p22 = scmp.eq.s32.totalorder %s10, 1
    %p23 = scmp.ne.s32.totalorder %s18, %s20
    %p24 = scmp.eq.s32.totalorder %s10, 0
    %p25 = por %p23, %p24
    %p26 = scmp.ne.s32.totalorder %s18, %s20
    %p27 = scmp.eq.s32.totalorder %s15, 1
    %p28 = por %p26, %p27
    %p29 = scmp.ne.s32.totalorder %s20, %s21
    %p30 = scmp.eq.s32.totalorder %s15, 0
    %p31 = por %p29, %p30
    %p32 = scmp.ne.s32.totalorder %s20, %s21
    %p33 = scmp.eq.s32.totalorder %s16, 1
    %p34 = por %p32, %p33
    %p36 = scmp.ne.s32.totalorder %s21, %s35
    %p37 = scmp.eq.s32.totalorder %s16, 0
    %p38 = por %p36, %p37
    %s39 = ssub.s32 %s10, %s17
    %p40 = scmp.eq.s32.totalorder %s39, 0
    %s42 = sadd.s32 %s41, 1
    %s43 = scalar_select %p40, %s41, %s42
    %p46 = pneg %p40
    %p47 = scmp.eq.s32.totalorder %s10, 1
    %p48 = por %p46, %p47
    %p49 = scmp.ne.s32.totalorder %s41, %s44
    %p50 = scmp.eq.s32.totalorder %s10, 0
    %p51 = por %p49, %p50
    %p52 = scmp.ne.s32.totalorder %s41, %s44
    %p53 = scmp.eq.s32.totalorder %s15, 1
    %p54 = por %p52, %p53
    %p55 = scmp.ne.s32.totalorder %s44, %s45
    %p56 = scmp.eq.s32.totalorder %s15, 0
    %p57 = por %p55, %p56
    %p58 = scmp.ne.s32.totalorder %s44, %s45
    %p59 = scmp.eq.s32.totalorder %s16, 1
    %p60 = por %p58, %p59
    %p62 = scmp.ne.s32.totalorder %s45, %s61
    %p63 = scmp.eq.s32.totalorder %s16, 0
    %p64 = por %p62, %p63
    %s66 = sadd.s32 %s65, 1
    %p69 = scmp.eq.s32.totalorder %s10, 1
    %p70 = scmp.ne.s32.totalorder %s65, %s67
    %p71 = scmp.eq.s32.totalorder %s10, 0
    %p72 = por %p70, %p71
    %p73 = scmp.ne.s32.totalorder %s65, %s67
    %p74 = scmp.eq.s32.totalorder %s15, 1
    %p75 = por %p73, %p74
    %p76 = scmp.ne.s32.totalorder %s67, %s68
    %p77 = scmp.eq.s32.totalorder %s15, 0
    %p78 = por %p76, %p77
    %p79 = scmp.ne.s32.totalorder %s67, %s68
    %p80 = scmp.eq.s32.totalorder %s16, 1
    %p81 = por %p79, %p80
    %p83 = scmp.ne.s32.totalorder %s68, %s82
    %p84 = scmp.eq.s32.totalorder %s16, 0
    %p85 = por %p83, %p84
    %s87 = sadd.s32 %s86, 1
    %p90 = scmp.eq.s32.totalorder %s10, 1
    %p91 = scmp.ne.s32.totalorder %s86, %s88
    %p92 = scmp.eq.s32.totalorder %s10, 0
    %p93 = por %p91, %p92
    %p94 = scmp.ne.s32.totalorder %s86, %s88
    %p95 = scmp.eq.s32.totalorder %s15, 1
    %p96 = por %p94, %p95
    %p97 = scmp.ne.s32.totalorder %s88, %s89
    %p98 = scmp.eq.s32.totalorder %s15, 0
    %p99 = por %p97, %p98
    %p100 = scmp.ne.s32.totalorder %s88, %s89
    %p101 = scmp.eq.s32.totalorder %s16, 1
    %p102 = por %p100, %p101
    %p104 = scmp.ne.s32.totalorder %s89, %s103
    %p105 = scmp.eq.s32.totalorder %s16, 0
    %p106 = por %p104, %p105
    %s107 = ssub.s32 %s10, %s17
    %p108 = scmp.eq.s32.totalorder %s107, 0
    %s110 = sadd.s32 %s109, 1
    %s111 = scalar_select %p108, %s109, %s110
    %p114 = pneg %p108
    %p115 = scmp.eq.s32.totalorder %s10, 1
    %p116 = por %p114, %p115
    %p117 = scmp.ne.s32.totalorder %s109, %s112
    %p118 = scmp.eq.s32.totalorder %s10, 0
    %p119 = por %p117, %p118
    %p120 = scmp.ne.s32.totalorder %s109, %s112
    %p121 = scmp.eq.s32.totalorder %s15, 1
    %p122 = por %p120, %p121
    %p123 = scmp.ne.s32.totalorder %s112, %s113
    %p124 = scmp.eq.s32.totalorder %s15, 0
    %p125 = por %p123, %p124
    %p126 = scmp.ne.s32.totalorder %s112, %s113
    %p127 = scmp.eq.s32.totalorder %s16, 1
    %p128 = por %p126, %p127
    %p130 = scmp.ne.s32.totalorder %s113, %s129
    %p131 = scmp.eq.s32.totalorder %s16, 0
    %p132 = por %p130, %p131
    %p133 = scmp.le.s32.totalorder 1, %s10
    %p134 = scmp.lt.s32.totalorder %s10, 3
    %p135 = pnand %p133, %p134
    %p136 = pneg %p135
    // Predicated region
    $region9: #{encoder_apply.14} parent=5 // pred_check
      _
    $region10: #{encoder_apply.14} parent=5 // pred_check_branch
      %138 = sbr.rel (%p135) target = $region12
    $region11: #{encoder_apply.14} parent=5 // pred_region
      %s139 = ssub.s32 %s10, 1
      // Predicated region
      $region13: #{encoder_apply.14} parent=11 // pred_check
        %p140 = pneg %p31
      $region14: #{encoder_apply.14} parent=11 // pred_check_branch
        %142 = sbr.rel (%p140) target = $region16
      $region15: #{encoder_apply.14} parent=11 // pred_region
        _
      $region16: #{encoder_apply.14} parent=11 // pred_fallthru
        _
      // Predicated region
      $region17: #{encoder_apply.14} parent=11 // pred_check
        %p143 = pneg %p78
      $region18: #{encoder_apply.14} parent=11 // pred_check_branch
        %145 = sbr.rel (%p143) target = $region20
      $region19: #{encoder_apply.14} parent=11 // pred_region
        _
      $region20: #{encoder_apply.14} parent=11 // pred_fallthru
        _
      // Predicated region
      $region21: #{encoder_apply.14} parent=11 // pred_check
        %p146 = pneg %p99
      $region22: #{encoder_apply.14} parent=11 // pred_check_branch
        %148 = sbr.rel (%p146) target = $region24
      $region23: #{encoder_apply.14} parent=11 // pred_region
        _
      $region24: #{encoder_apply.14} parent=11 // pred_fallthru
        _
    $region12: #{encoder_apply.14} parent=5 // pred_fallthru
      _
    %p149 = scmp.lt.s32.totalorder %s10, 2
    // Predicated region
    $region25: #{encoder_apply.14} parent=5 // pred_check
      %p150 = pneg %p149
    $region26: #{encoder_apply.14} parent=5 // pred_check_branch
      %152 = sbr.rel (%p150) target = $region28
    $region27: #{encoder_apply.14} parent=5 // pred_region
      // Predicated region
      $region29: #{encoder_apply.14} parent=27 // pred_check
        %p153 = pneg %p51
      $region30: #{encoder_apply.14} parent=27 // pred_check_branch
        %155 = sbr.rel (%p153) target = $region32
      $region31: #{encoder_apply.14} parent=27 // pred_region
        %p156 = scmp.lt.s32.totalorder %s10, 1
        %s157 = scalar_select %p156, %s10, 1
        %s158 = smul.addr %s157, 8
        %s159 = scalar_lea.vmem %s1, %s158
      $region32: #{encoder_apply.14} parent=27 // pred_fallthru
        _
    $region28: #{encoder_apply.14} parent=5 // pred_fallthru
      _
    %p160 = scmp.le.s32.totalorder 1, %s10
    %p161 = scmp.lt.s32.totalorder %s10, 3
    %p162 = pnand %p160, %p161
    %p163 = pneg %p162
    // Predicated region
    $region33: #{encoder_apply.14} parent=5 // pred_check
      _
    $region34: #{encoder_apply.14} parent=5 // pred_check_branch
      %165 = sbr.rel (%p162) target = $region36
    $region35: #{encoder_apply.14} parent=5 // pred_region
      %s166 = ssub.s32 %s10, 1
      %p167 = pneg %p31
      %p168 = pneg %p28
      %p169 = scmp.lt.s32.totalorder %s15, 1
      %s170 = scalar_select %p169, %s15, 1
      %s171 = smul.addr %s170, 8
      %s172 = scalar_lea.vmem %s1, %s171
      %p173 = pneg %p57
      %p174 = pneg %p54
      %p175 = pneg %p78
      %p176 = pneg %p75
      %p177 = pneg %p99
      %p178 = pneg %p96
      %p179 = pneg %p125
      %p180 = pneg %p122
      %p181 = scmp.lt.s32.totalorder %s15, 1
      %s182 = scalar_select %p181, %s15, 1
      %s183 = smul.addr %s182, 8
      %s184 = scalar_lea.vmem %s4, %s183
      %p185 = scmp.lt.s32.totalorder %s15, 1
      %s186 = scalar_select %p185, %s15, 1
      %s187 = smul.addr %s186, 8
      %s188 = scalar_lea.vmem %s1, %s187
      %p189 = scmp.lt.s32.totalorder %s15, 1
      %s190 = scalar_select %p189, %s15, 1
      %s191 = smul.addr %s190, 8
      %s192 = scalar_lea.vmem %s4, %s191
      %v194 = vld [vmem:[%s0] sm:$0x1]
      %v195 = vld [vmem:[%s188] sm:$0xff]
      %vm196 = vcmp.gt.s32.totalorder %v194, 0
      %v197 = vsel %vm196, 1, 0
      %v198 = vperm.slane %v197, 0
      %vm199 = vcmp.eq.s32.totalorder %v198, 1
      %v200 = vsel %vm199, %v195, 0.0
      %vm201 = vcmp.lt.s32.totalorder %v194, 7
      %v202 = vsel %vm201, 1, 0
      %v203 = vperm.slane %v202, 0
      %vm204 = vcmp.eq.s32.totalorder %v203, 1
      %206 = vrot.lane.b32.xlu0 %v195, 126
      %v207 = vpop.permute.xlu0 %206
      %v209 = vsel %vm204, %v207, 0.0
      %210 = vrot.lane.b32.xlu0 %v195, 120
      %v211 = vpop.permute.xlu0 %210
      %v213 = vsel %vm199, %v211, 0.0
      %214 = vrot.lane.b32.xlu0 %v195, 118
      %v215 = vpop.permute.xlu0 %214
      %v217 = vsel %vm204, %v215, 0.0
      %218 = vrot.lane.b32.xlu0 %v195, 112
      %v219 = vpop.permute.xlu0 %218
      %v221 = vsel %vm199, %v219, 0.0
      %222 = vrot.lane.b32.xlu0 %v195, 110
      %v223 = vpop.permute.xlu0 %222
      %v225 = vsel %vm204, %v223, 0.0
      %226 = vrot.lane.b32.xlu0 %v195, 127
      %v227 = vpop.permute.xlu0 %226
      %229 = vrot.lane.b32.xlu0 %v195, 119
      %v230 = vpop.permute.xlu0 %229
      %232 = vrot.lane.b32.xlu0 %v195, 111
      %v233 = vpop.permute.xlu0 %232
      %v235 = vpack.c.bf16 %v227, %v200
      %v236 = vpack.c.bf16 %v213, %v209
      %v237 = vpack.c.bf16 %v217, %v230
      %v238 = vpack.c.bf16 %v233, %v221
      %v239 = vpack.c.bf16 %v225, %v225
      %v240 = vld [vmem:[%s2] sm:$0xf]
      %v241 = vld [vmem:[%s3] sm:$0xff]
      %243 = vset.pattern.permute.xlu0 0
      %244 = vperm.xlu0 %243, %v241
      %v245 = vpop.permute.xlu0 %244
      %vm247 = vcmask 588800
      %v249 = vsel %vm247, %v240, 0
      %vm251 = vcmask 1043456
      %v253 = vsel %vm251, %v239, 0
      %255 = vmatpush.bf16.msra.mxu0 0
      %256 = vmatpush.bf16.msra.mxu0 0
      %257 = vmatpush.bf16.msra.mxu0 0
      %258 = vmatpush.bf16.msra.mxu0 %v253
      %259 = vmatpush.bf16.msra.mxu0 %v238
      %260 = vmatpush.bf16.msra.mxu0 %v237
      %261 = vmatpush.bf16.msra.mxu0 %v236
      %262 = vmatpush.bf16.msra.mxu0 %v235
      %263 = vmatmul.bf16.gmra.mxu0 %v249
      %v264 = vpop.f32.mrf.mxu0
      %v265 = vadd.f32 %v245, %v264
      %v266 = vpop.f32.mrf.mxu0
      %267 = vdwg.mxu0
      %vm268 = vcmp.ge.f32.partialorder %v265, 0.0
      %v269 = vmul.f32 %v265, 0.01
      %v270 = vsel %vm268, %v265, %v269
      %vm271 = vcmask 523264
      %272 = vst.msk [vmem:[%s192] sm:$0xff] %vm271, %v270
      %p273 = scmp.lt.s32.totalorder %s15, 1
      %s274 = scalar_select %p273, %s15, 1
      %s275 = smul.addr %s274, 8
      %s276 = scalar_lea.vmem %s4, %s275
      // Predicated region
      $region37: #{encoder_apply.14} parent=35 // pred_check
        %p277 = pneg %p122
      $region38: #{encoder_apply.14} parent=35 // pred_check_branch
        %279 = sbr.rel (%p277) target = $region40
      $region39: #{encoder_apply.14} parent=35 // pred_region
        _
      $region40: #{encoder_apply.14} parent=35 // pred_fallthru
        _
    $region36: #{encoder_apply.14} parent=5 // pred_fallthru
      _
    %p280 = scmp.le.s32.totalorder 2, %s10
    // Predicated region
    $region41: #{encoder_apply.14} parent=5 // pred_check
      %p281 = pneg %p280
    $region42: #{encoder_apply.14} parent=5 // pred_check_branch
      %283 = sbr.rel (%p281) target = $region44
    $region43: #{encoder_apply.14} parent=5 // pred_region
      %s284 = ssub.s32 %s10, 2
      // Predicated region
      $region45: #{encoder_apply.14} parent=43 // pred_check
        %p285 = pneg %p128
      $region46: #{encoder_apply.14} parent=43 // pred_check_branch
        %287 = sbr.rel (%p285) target = $region48
      $region47: #{encoder_apply.14} parent=43 // pred_region
        %p288 = scmp.lt.s32.totalorder %s16, 1
        %s289 = scalar_select %p288, %s16, 1
        %s290 = smul.addr %s289, 8
        %s291 = scalar_lea.vmem %s4, %s290
      $region48: #{encoder_apply.14} parent=43 // pred_fallthru
        _
    $region44: #{encoder_apply.14} parent=5 // pred_fallthru
      _
  $region6: #{encoder_apply.14} parent=0 // loop_footer
    %s14 = sadd.s32 1, %s10
  $region7: #{encoder_apply.14} parent=0 // loop_footer_branch
    %9 = sbr.rel target = $region3
  $region8: #{encoder_apply.14} parent=0 // loop_exit
    _

// kernel: encoder_apply.15
$region0: #{encoder_apply.15}
  #allocation0 [shape = 'u32[]', space=smem, size = 0x4, offset = 0x4, fixed_abs, tag = 'smem constant byte address 0x4 - core index']
  #allocation1 [shape = 'u32[72,128]{1,0:T(1,128)}', space=vmem, size = 0x9000, scoped, tag = 'internal scratch']
  %s0 = inlined_call_operand.vmem [shape: f32[2,32,16], index: 0, kind: input, shape index: {}]
  %s1 = inlined_call_operand.vmem [shape: bf16[8,32], index: 1, kind: input, shape index: {}]
  %s2 = inlined_call_operand.vmem [shape: f32[8,1], index: 2, kind: input, shape index: {}]
  %s3 = inlined_call_operand.vmem [shape: f32[2,8,16], index: 3, kind: output, shape index: {}]
  %s4 = sld [smem:[#allocation0]]
  $region45: #{encoder_apply.15} parent=0
    _
  %s6 = ssub.s32 1, %s4
  %s7 = scalar_select 0, %s6, %s4
  loop: start=0, step=1, limit=4
  $region2: #{encoder_apply.15} parent=0 // loop_pre_header
    _
  $region3: #{encoder_apply.15} parent=0 // loop_header
    %s9 = sphi 0, %s13
    %p10 = scmp.ge.s32.totalorder %s9, 4
    %s16 = sphi 0, %s28
    %s17 = sphi 0, %s24
    %s18 = sphi 0, %s16
    %s19 = sphi 0, %s17
    %s20 = sphi 0, %s18
    %s21 = sphi 0, %s19
    %s33 = sphi 0, %s35
    %s36 = sphi 0, %s33
    %s37 = sphi 0, %s36
    %s53 = sphi 0, %s37
    %s57 = sphi 0, %s57
    %s59 = sphi 0, %s57
    %s60 = sphi 0, %s59
    %s74 = sphi 0, %s60
    %s78 = sphi 0, %s78
    %s80 = sphi 0, %s78
    %s81 = sphi 0, %s80
    %s95 = sphi 0, %s81
    %s103 = sphi 0, %s105
    %s106 = sphi 0, %s103
    %s107 = sphi 0, %s106
    %s123 = sphi 0, %s107
  $region4: #{encoder_apply.15} parent=0 // loop_header_branch
    %12 = sbr.rel (%p10) target = $region8
  $region5: #{encoder_apply.15} parent=0 // loop_body
    %s14 = ssub.s32 %s9, 1
    %s15 = ssub.s32 %s9, 2
    %s22 = sadd.s32 1, %s17
    %p23 = scmp.ge.s32.totalorder %s22, 1
    %s24 = scalar_select %p23, 0, %s22
    %s25 = sadd.s32 1, %s16
    %s26 = scalar_select %p23, %s25, %s16
    %p27 = scmp.ge.s32.totalorder %s26, 2
    %s28 = scalar_select %p27, 0, %s26
    %s29 = ssub.s32 %s16, %s28
    %s30 = ssub.s32 %s17, %s24
    %s31 = sor.u32 %s29, %s30
    %p32 = scmp.eq.s32.totalorder %s31, 0
    %s34 = sadd.s32 %s33, 1
    %s35 = scalar_select %p32, %s33, %s34
    %p38 = pneg %p32
    %p39 = scmp.eq.s32.totalorder %s9, 1
    %p40 = por %p38, %p39
    %p41 = scmp.ne.s32.totalorder %s33, %s36
    %p42 = scmp.eq.s32.totalorder %s9, 0
    %p43 = por %p41, %p42
    %p44 = scmp.ne.s32.totalorder %s33, %s36
    %p45 = scmp.eq.s32.totalorder %s14, 1
    %p46 = por %p44, %p45
    %p47 = scmp.ne.s32.totalorder %s36, %s37
    %p48 = scmp.eq.s32.totalorder %s14, 0
    %p49 = por %p47, %p48
    %p50 = scmp.ne.s32.totalorder %s36, %s37
    %p51 = scmp.eq.s32.totalorder %s15, 1
    %p52 = por %p50, %p51
    %p54 = scmp.ne.s32.totalorder %s37, %s53
    %p55 = scmp.eq.s32.totalorder %s15, 0
    %p56 = por %p54, %p55
    %s58 = sadd.s32 %s57, 1
    %p61 = scmp.eq.s32.totalorder %s9, 1
    %p62 = scmp.ne.s32.totalorder %s57, %s59
    %p63 = scmp.eq.s32.totalorder %s9, 0
    %p64 = por %p62, %p63
    %p65 = scmp.ne.s32.totalorder %s57, %s59
    %p66 = scmp.eq.s32.totalorder %s14, 1
    %p67 = por %p65, %p66
    %p68 = scmp.ne.s32.totalorder %s59, %s60
    %p69 = scmp.eq.s32.totalorder %s14, 0
    %p70 = por %p68, %p69
    %p71 = scmp.ne.s32.totalorder %s59, %s60
    %p72 = scmp.eq.s32.totalorder %s15, 1
    %p73 = por %p71, %p72
    %p75 = scmp.ne.s32.totalorder %s60, %s74
    %p76 = scmp.eq.s32.totalorder %s15, 0
    %p77 = por %p75, %p76
    %s79 = sadd.s32 %s78, 1
    %p82 = scmp.eq.s32.totalorder %s9, 1
    %p83 = scmp.ne.s32.totalorder %s78, %s80
    %p84 = scmp.eq.s32.totalorder %s9, 0
    %p85 = por %p83, %p84
    %p86 = scmp.ne.s32.totalorder %s78, %s80
    %p87 = scmp.eq.s32.totalorder %s14, 1
    %p88 = por %p86, %p87
    %p89 = scmp.ne.s32.totalorder %s80, %s81
    %p90 = scmp.eq.s32.totalorder %s14, 0
    %p91 = por %p89, %p90
    %p92 = scmp.ne.s32.totalorder %s80, %s81
    %p93 = scmp.eq.s32.totalorder %s15, 1
    %p94 = por %p92, %p93
    %p96 = scmp.ne.s32.totalorder %s81, %s95
    %p97 = scmp.eq.s32.totalorder %s15, 0
    %p98 = por %p96, %p97
    %s99 = ssub.s32 %s16, %s28
    %s100 = ssub.s32 %s17, %s24
    %s101 = sor.u32 %s99, %s100
    %p102 = scmp.eq.s32.totalorder %s101, 0
    %s104 = sadd.s32 %s103, 1
    %s105 = scalar_select %p102, %s103, %s104
    %p108 = pneg %p102
    %p109 = scmp.eq.s32.totalorder %s9, 1
    %p110 = por %p108, %p109
    %p111 = scmp.ne.s32.totalorder %s103, %s106
    %p112 = scmp.eq.s32.totalorder %s9, 0
    %p113 = por %p111, %p112
    %p114 = scmp.ne.s32.totalorder %s103, %s106
    %p115 = scmp.eq.s32.totalorder %s14, 1
    %p116 = por %p114, %p115
    %p117 = scmp.ne.s32.totalorder %s106, %s107
    %p118 = scmp.eq.s32.totalorder %s14, 0
    %p119 = por %p117, %p118
    %p120 = scmp.ne.s32.totalorder %s106, %s107
    %p121 = scmp.eq.s32.totalorder %s15, 1
    %p122 = por %p120, %p121
    %p124 = scmp.ne.s32.totalorder %s107, %s123
    %p125 = scmp.eq.s32.totalorder %s15, 0
    %p126 = por %p124, %p125
    %p127 = scmp.le.s32.totalorder 1, %s9
    %p128 = scmp.lt.s32.totalorder %s9, 3
    %p129 = pnand %p127, %p128
    %p130 = pneg %p129
    // Predicated region
    $region9: #{encoder_apply.15} parent=5 // pred_check
      _
    $region10: #{encoder_apply.15} parent=5 // pred_check_branch
      %132 = sbr.rel (%p129) target = $region12
    $region11: #{encoder_apply.15} parent=5 // pred_region
      %s133 = ssub.s32 %s9, 1
      // Predicated region
      $region13: #{encoder_apply.15} parent=11 // pred_check
        %p134 = pneg %p70
      $region14: #{encoder_apply.15} parent=11 // pred_check_branch
        %136 = sbr.rel (%p134) target = $region16
      $region15: #{encoder_apply.15} parent=11 // pred_region
        _
      $region16: #{encoder_apply.15} parent=11 // pred_fallthru
        _
      // Predicated region
      $region17: #{encoder_apply.15} parent=11 // pred_check
        %p137 = pneg %p91
      $region18: #{encoder_apply.15} parent=11 // pred_check_branch
        %139 = sbr.rel (%p137) target = $region20
      $region19: #{encoder_apply.15} parent=11 // pred_region
        _
      $region20: #{encoder_apply.15} parent=11 // pred_fallthru
        _
    $region12: #{encoder_apply.15} parent=5 // pred_fallthru
      _
    %p140 = scmp.lt.s32.totalorder %s9, 2
    // Predicated region
    $region21: #{encoder_apply.15} parent=5 // pred_check
      %p141 = pneg %p140
    $region22: #{encoder_apply.15} parent=5 // pred_check_branch
      %143 = sbr.rel (%p141) target = $region24
    $region23: #{encoder_apply.15} parent=5 // pred_region
      // Predicated region
      $region25: #{encoder_apply.15} parent=23 // pred_check
        %p144 = pneg %p43
      $region26: #{encoder_apply.15} parent=23 // pred_check_branch
        %146 = sbr.rel (%p144) target = $region28
      $region27: #{encoder_apply.15} parent=23 // pred_region
        %p147 = scmp.lt.s32.totalorder %s16, 1
        %s148 = scalar_select %p147, %s16, 1
        %p149 = scmp.lt.s32.totalorder %s17, 0
        %s150 = scalar_select %p149, %s17, 0
        %s151 = smul.addr %s148, 4
        %s152 = sadd.s32 %s150, %s151
        %s153 = smul.addr %s152, 8
        %s154 = scalar_lea.vmem %s0, %s153
      $region28: #{encoder_apply.15} parent=23 // pred_fallthru
        _
    $region24: #{encoder_apply.15} parent=5 // pred_fallthru
      _
    %p155 = scmp.le.s32.totalorder 1, %s9
    %p156 = scmp.lt.s32.totalorder %s9, 3
    %p157 = pnand %p155, %p156
    %p158 = pneg %p157
    // Predicated region
    $region29: #{encoder_apply.15} parent=5 // pred_check
      _
    $region30: #{encoder_apply.15} parent=5 // pred_check_branch
      %160 = sbr.rel (%p157) target = $region32
    $region31: #{encoder_apply.15} parent=5 // pred_region
      %s161 = ssub.s32 %s9, 1
      %p162 = scmp.lt.s32.totalorder %s18, 1
      %s163 = scalar_select %p162, %s18, 1
      %p164 = scmp.lt.s32.totalorder %s19, 0
      %s165 = scalar_select %p164, %s19, 0
      %s166 = smul.addr %s163, 4
      %s167 = sadd.s32 %s165, %s166
      %s168 = smul.addr %s167, 8
      %s169 = scalar_lea.vmem %s0, %s168
      %p170 = pneg %p49
      %p171 = pneg %p46
      %p172 = pneg %p70
      %p173 = pneg %p67
      %p174 = pneg %p91
      %p175 = pneg %p88
      %p176 = pneg %p119
      %p177 = pneg %p116
      %p178 = scmp.lt.s32.totalorder %s18, 1
      %s179 = scalar_select %p178, %s18, 1
      %p180 = scmp.lt.s32.totalorder %s19, 0
      %s181 = scalar_select %p180, %s19, 0
      %s182 = sadd.s32 %s181, %s179
      %s183 = smul.addr %s182, 8
      %s184 = scalar_lea.vmem %s3, %s183
      %p185 = scmp.lt.s32.totalorder %s18, 1
      %s186 = scalar_select %p185, %s18, 1
      %p187 = scmp.lt.s32.totalorder %s19, 0
      %s188 = scalar_select %p187, %s19, 0
      %s189 = smul.addr %s186, 4
      %s190 = sadd.s32 %s188, %s189
      %s191 = smul.addr %s190, 8
      %s192 = scalar_lea.vmem %s0, %s191
      %p193 = scmp.lt.s32.totalorder %s18, 1
      %s194 = scalar_select %p193, %s18, 1
      %p195 = scmp.lt.s32.totalorder %s19, 0
      %s196 = scalar_select %p195, %s19, 0
      %s197 = sadd.s32 %s196, %s194
      %s198 = smul.addr %s197, 8
      %s199 = scalar_lea.vmem %s3, %s198
      %v201 = vld [vmem:[%s192] sm:$0xff]
      %v202 = vld [vmem:[%s192 + $0x8] sm:$0xff]
      %v203 = vld [vmem:[%s192 + $0x10] sm:$0xff]
      %v204 = vld [vmem:[%s192 + $0x18] sm:$0xff]
      %v205 = vpack.c.bf16 %v202, %v201
      %v206 = vpack.c.bf16 %v204, %v203
      %v207 = vld [vmem:[%s1] sm:$0xf]
      %v208 = vld [vmem:[%s2] sm:$0xff]
      %210 = vset.pattern.permute.xlu0 0
      %211 = vperm.xlu0 %210, %v208
      %v212 = vpop.permute.xlu0 %211
      %vm214 = vcmask 261120
      %v216 = vsel %vm214, %v207, 0
      %218 = vmatpush.bf16.msra.mxu0 0
      %219 = vmatpush.bf16.msra.mxu0 0
      %220 = vmatpush.bf16.msra.mxu0 0
      %221 = vmatpush.bf16.msra.mxu0 0
      %222 = vmatpush.bf16.msra.mxu0 0
      %223 = vmatpush.bf16.msra.mxu0 0
      %224 = vmatpush.bf16.msra.mxu0 %v206
      %225 = vmatpush.bf16.msra.mxu0 %v205
      %226 = vmatmul.bf16.gmra.mxu0 %v216
      %v227 = vpop.f32.mrf.mxu0
      %v228 = vadd.f32 %v212, %v227
      %v229 = vpop.f32.mrf.mxu0
      %230 = vdwg.mxu0
      %vm231 = vcmp.ge.f32.partialorder %v228, 0.0
      %v232 = vmul.f32 %v228, 0.01
      %v233 = vsel %vm231, %v228, %v232
      %vm234 = vcmask 130048
      %235 = vst.msk [vmem:[%s199] sm:$0xff] %vm234, %v233
      %p236 = scmp.lt.s32.totalorder %s18, 1
      %s237 = scalar_select %p236, %s18, 1
      %p238 = scmp.lt.s32.totalorder %s19, 0
      %s239 = scalar_select %p238, %s19, 0
      %s240 = sadd.s32 %s239, %s237
      %s241 = smul.addr %s240, 8
      %s242 = scalar_lea.vmem %s3, %s241
      // Predicated region
      $region33: #{encoder_apply.15} parent=31 // pred_check
        %p243 = pneg %p116
      $region34: #{encoder_apply.15} parent=31 // pred_check_branch
        %245 = sbr.rel (%p243) target = $region36
      $region35: #{encoder_apply.15} parent=31 // pred_region
        _
      $region36: #{encoder_apply.15} parent=31 // pred_fallthru
        _
    $region32: #{encoder_apply.15} parent=5 // pred_fallthru
      _
    %p246 = scmp.le.s32.totalorder 2, %s9
    // Predicated region
    $region37: #{encoder_apply.15} parent=5 // pred_check
      %p247 = pneg %p246
    $region38: #{encoder_apply.15} parent=5 // pred_check_branch
      %249 = sbr.rel (%p247) target = $region40
    $region39: #{encoder_apply.15} parent=5 // pred_region
      %s250 = ssub.s32 %s9, 2
      // Predicated region
      $region41: #{encoder_apply.15} parent=39 // pred_check
        %p251 = pneg %p122
      $region42: #{encoder_apply.15} parent=39 // pred_check_branch
        %253 = sbr.rel (%p251) target = $region44
      $region43: #{encoder_apply.15} parent=39 // pred_region
        %p254 = scmp.lt.s32.totalorder %s20, 1
        %s255 = scalar_select %p254, %s20, 1
        %p256 = scmp.lt.s32.totalorder %s21, 0
        %s257 = scalar_select %p256, %s21, 0
        %s258 = sadd.s32 %s257, %s255
        %s259 = smul.addr %s258, 8
        %s260 = scalar_lea.vmem %s3, %s259
      $region44: #{encoder_apply.15} parent=39 // pred_fallthru
        _
    $region40: #{encoder_apply.15} parent=5 // pred_fallthru
      _
  $region6: #{encoder_apply.15} parent=0 // loop_footer
    %s13 = sadd.s32 1, %s9
  $region7: #{encoder_apply.15} parent=0 // loop_footer_branch
    %8 = sbr.rel target = $region3
  $region8: #{encoder_apply.15} parent=0 // loop_exit
    _

// kernel: encoder_apply.16
$region0: #{encoder_apply.16}
  #allocation0 [shape = 'u32[]', space=smem, size = 0x4, offset = 0x4, fixed_abs, tag = 'smem constant byte address 0x4 - core index']
  #allocation1 [shape = 'u32[72,128]{1,0:T(1,128)}', space=vmem, size = 0x9000, scoped, tag = 'internal scratch']
  %s0 = inlined_call_operand.vmem [shape: s32[1,16], index: 0, kind: input, shape index: {}]
  %s1 = inlined_call_operand.vmem [shape: f32[2,8,26], index: 1, kind: input, shape index: {}]
  %s2 = inlined_call_operand.vmem [shape: bf16[8,72], index: 2, kind: input, shape index: {}]
  %s3 = inlined_call_operand.vmem [shape: f32[8,1], index: 3, kind: input, shape index: {}]
  %s4 = inlined_call_operand.vmem [shape: f32[2,8,16], index: 4, kind: output, shape index: {}]
  %s5 = sld [smem:[#allocation0]]
  $region49: #{encoder_apply.16} parent=0
    _
  %s7 = ssub.s32 1, %s5
  %s8 = scalar_select 0, %s7, %s5
  loop: start=0, step=1, limit=4
  $region2: #{encoder_apply.16} parent=0 // loop_pre_header
    _
  $region3: #{encoder_apply.16} parent=0 // loop_header
    %s10 = sphi 0, %s14
    %p11 = scmp.ge.s32.totalorder %s10, 4
    %s18 = sphi 0, %s18
    %s20 = sphi 0, %s18
    %s21 = sphi 0, %s20
    %s35 = sphi 0, %s21
    %s41 = sphi 0, %s43
    %s44 = sphi 0, %s41
    %s45 = sphi 0, %s44
    %s61 = sphi 0, %s45
    %s65 = sphi 0, %s65
    %s67 = sphi 0, %s65
    %s68 = sphi 0, %s67
    %s82 = sphi 0, %s68
    %s86 = sphi 0, %s86
    %s88 = sphi 0, %s86
    %s89 = sphi 0, %s88
    %s103 = sphi 0, %s89
    %s109 = sphi 0, %s111
    %s112 = sphi 0, %s109
    %s113 = sphi 0, %s112
    %s129 = sphi 0, %s113
  $region4: #{encoder_apply.16} parent=0 // loop_header_branch
    %13 = sbr.rel (%p11) target = $region8
  $region5: #{encoder_apply.16} parent=0 // loop_body
    %s15 = ssub.s32 %s10, 1
    %s16 = ssub.s32 %s10, 2
    %s17 = sadd.s32 %s10, 1
    %s19 = sadd.s32 %s18, 1
    %p22 = scmp.eq.s32.totalorder %s10, 1
    %p23 = scmp.ne.s32.totalorder %s18, %s20
    %p24 = scmp.eq.s32.totalorder %s10, 0
    %p25 = por %p23, %p24
    %p26 = scmp.ne.s32.totalorder %s18, %s20
    %p27 = scmp.eq.s32.totalorder %s15, 1
    %p28 = por %p26, %p27
    %p29 = scmp.ne.s32.totalorder %s20, %s21
    %p30 = scmp.eq.s32.totalorder %s15, 0
    %p31 = por %p29, %p30
    %p32 = scmp.ne.s32.totalorder %s20, %s21
    %p33 = scmp.eq.s32.totalorder %s16, 1
    %p34 = por %p32, %p33
    %p36 = scmp.ne.s32.totalorder %s21, %s35
    %p37 = scmp.eq.s32.totalorder %s16, 0
    %p38 = por %p36, %p37
    %s39 = ssub.s32 %s10, %s17
    %p40 = scmp.eq.s32.totalorder %s39, 0
    %s42 = sadd.s32 %s41, 1
    %s43 = scalar_select %p40, %s41, %s42
    %p46 = pneg %p40
    %p47 = scmp.eq.s32.totalorder %s10, 1
    %p48 = por %p46, %p47
    %p49 = scmp.ne.s32.totalorder %s41, %s44
    %p50 = scmp.eq.s32.totalorder %s10, 0
    %p51 = por %p49, %p50
    %p52 = scmp.ne.s32.totalorder %s41, %s44
    %p53 = scmp.eq.s32.totalorder %s15, 1
    %p54 = por %p52, %p53
    %p55 = scmp.ne.s32.totalorder %s44, %s45
    %p56 = scmp.eq.s32.totalorder %s15, 0
    %p57 = por %p55, %p56
    %p58 = scmp.ne.s32.totalorder %s44, %s45
    %p59 = scmp.eq.s32.totalorder %s16, 1
    %p60 = por %p58, %p59
    %p62 = scmp.ne.s32.totalorder %s45, %s61
    %p63 = scmp.eq.s32.totalorder %s16, 0
    %p64 = por %p62, %p63
    %s66 = sadd.s32 %s65, 1
    %p69 = scmp.eq.s32.totalorder %s10, 1
    %p70 = scmp.ne.s32.totalorder %s65, %s67
    %p71 = scmp.eq.s32.totalorder %s10, 0
    %p72 = por %p70, %p71
    %p73 = scmp.ne.s32.totalorder %s65, %s67
    %p74 = scmp.eq.s32.totalorder %s15, 1
    %p75 = por %p73, %p74
    %p76 = scmp.ne.s32.totalorder %s67, %s68
    %p77 = scmp.eq.s32.totalorder %s15, 0
    %p78 = por %p76, %p77
    %p79 = scmp.ne.s32.totalorder %s67, %s68
    %p80 = scmp.eq.s32.totalorder %s16, 1
    %p81 = por %p79, %p80
    %p83 = scmp.ne.s32.totalorder %s68, %s82
    %p84 = scmp.eq.s32.totalorder %s16, 0
    %p85 = por %p83, %p84
    %s87 = sadd.s32 %s86, 1
    %p90 = scmp.eq.s32.totalorder %s10, 1
    %p91 = scmp.ne.s32.totalorder %s86, %s88
    %p92 = scmp.eq.s32.totalorder %s10, 0
    %p93 = por %p91, %p92
    %p94 = scmp.ne.s32.totalorder %s86, %s88
    %p95 = scmp.eq.s32.totalorder %s15, 1
    %p96 = por %p94, %p95
    %p97 = scmp.ne.s32.totalorder %s88, %s89
    %p98 = scmp.eq.s32.totalorder %s15, 0
    %p99 = por %p97, %p98
    %p100 = scmp.ne.s32.totalorder %s88, %s89
    %p101 = scmp.eq.s32.totalorder %s16, 1
    %p102 = por %p100, %p101
    %p104 = scmp.ne.s32.totalorder %s89, %s103
    %p105 = scmp.eq.s32.totalorder %s16, 0
    %p106 = por %p104, %p105
    %s107 = ssub.s32 %s10, %s17
    %p108 = scmp.eq.s32.totalorder %s107, 0
    %s110 = sadd.s32 %s109, 1
    %s111 = scalar_select %p108, %s109, %s110
    %p114 = pneg %p108
    %p115 = scmp.eq.s32.totalorder %s10, 1
    %p116 = por %p114, %p115
    %p117 = scmp.ne.s32.totalorder %s109, %s112
    %p118 = scmp.eq.s32.totalorder %s10, 0
    %p119 = por %p117, %p118
    %p120 = scmp.ne.s32.totalorder %s109, %s112
    %p121 = scmp.eq.s32.totalorder %s15, 1
    %p122 = por %p120, %p121
    %p123 = scmp.ne.s32.totalorder %s112, %s113
    %p124 = scmp.eq.s32.totalorder %s15, 0
    %p125 = por %p123, %p124
    %p126 = scmp.ne.s32.totalorder %s112, %s113
    %p127 = scmp.eq.s32.totalorder %s16, 1
    %p128 = por %p126, %p127
    %p130 = scmp.ne.s32.totalorder %s113, %s129
    %p131 = scmp.eq.s32.totalorder %s16, 0
    %p132 = por %p130, %p131
    %p133 = scmp.le.s32.totalorder 1, %s10
    %p134 = scmp.lt.s32.totalorder %s10, 3
    %p135 = pnand %p133, %p134
    %p136 = pneg %p135
    // Predicated region
    $region9: #{encoder_apply.16} parent=5 // pred_check
      _
    $region10: #{encoder_apply.16} parent=5 // pred_check_branch
      %138 = sbr.rel (%p135) target = $region12
    $region11: #{encoder_apply.16} parent=5 // pred_region
      %s139 = ssub.s32 %s10, 1
      // Predicated region
      $region13: #{encoder_apply.16} parent=11 // pred_check
        %p140 = pneg %p31
      $region14: #{encoder_apply.16} parent=11 // pred_check_branch
        %142 = sbr.rel (%p140) target = $region16
      $region15: #{encoder_apply.16} parent=11 // pred_region
        _
      $region16: #{encoder_apply.16} parent=11 // pred_fallthru
        _
      // Predicated region
      $region17: #{encoder_apply.16} parent=11 // pred_check
        %p143 = pneg %p78
      $region18: #{encoder_apply.16} parent=11 // pred_check_branch
        %145 = sbr.rel (%p143) target = $region20
      $region19: #{encoder_apply.16} parent=11 // pred_region
        _
      $region20: #{encoder_apply.16} parent=11 // pred_fallthru
        _
      // Predicated region
      $region21: #{encoder_apply.16} parent=11 // pred_check
        %p146 = pneg %p99
      $region22: #{encoder_apply.16} parent=11 // pred_check_branch
        %148 = sbr.rel (%p146) target = $region24
      $region23: #{encoder_apply.16} parent=11 // pred_region
        _
      $region24: #{encoder_apply.16} parent=11 // pred_fallthru
        _
    $region12: #{encoder_apply.16} parent=5 // pred_fallthru
      _
    %p149 = scmp.lt.s32.totalorder %s10, 2
    // Predicated region
    $region25: #{encoder_apply.16} parent=5 // pred_check
      %p150 = pneg %p149
    $region26: #{encoder_apply.16} parent=5 // pred_check_branch
      %152 = sbr.rel (%p150) target = $region28
    $region27: #{encoder_apply.16} parent=5 // pred_region
      // Predicated region
      $region29: #{encoder_apply.16} parent=27 // pred_check
        %p153 = pneg %p51
      $region30: #{encoder_apply.16} parent=27 // pred_check_branch
        %155 = sbr.rel (%p153) target = $region32
      $region31: #{encoder_apply.16} parent=27 // pred_region
        %p156 = scmp.lt.s32.totalorder %s10, 1
        %s157 = scalar_select %p156, %s10, 1
        %s158 = smul.addr %s157, 8
        %s159 = scalar_lea.vmem %s1, %s158
      $region32: #{encoder_apply.16} parent=27 // pred_fallthru
        _
    $region28: #{encoder_apply.16} parent=5 // pred_fallthru
      _
    %p160 = scmp.le.s32.totalorder 1, %s10
    %p161 = scmp.lt.s32.totalorder %s10, 3
    %p162 = pnand %p160, %p161
    %p163 = pneg %p162
    // Predicated region
    $region33: #{encoder_apply.16} parent=5 // pred_check
      _
    $region34: #{encoder_apply.16} parent=5 // pred_check_branch
      %165 = sbr.rel (%p162) target = $region36
    $region35: #{encoder_apply.16} parent=5 // pred_region
      %s166 = ssub.s32 %s10, 1
      %p167 = pneg %p31
      %p168 = pneg %p28
      %p169 = scmp.lt.s32.totalorder %s15, 1
      %s170 = scalar_select %p169, %s15, 1
      %s171 = smul.addr %s170, 8
      %s172 = scalar_lea.vmem %s1, %s171
      %p173 = pneg %p57
      %p174 = pneg %p54
      %p175 = pneg %p78
      %p176 = pneg %p75
      %p177 = pneg %p99
      %p178 = pneg %p96
      %p179 = pneg %p125
      %p180 = pneg %p122
      %p181 = scmp.lt.s32.totalorder %s15, 1
      %s182 = scalar_select %p181, %s15, 1
      %s183 = smul.addr %s182, 8
      %s184 = scalar_lea.vmem %s4, %s183
      %p185 = scmp.lt.s32.totalorder %s15, 1
      %s186 = scalar_select %p185, %s15, 1
      %s187 = smul.addr %s186, 8
      %s188 = scalar_lea.vmem %s1, %s187
      %p189 = scmp.lt.s32.totalorder %s15, 1
      %s190 = scalar_select %p189, %s15, 1
      %s191 = smul.addr %s190, 8
      %s192 = scalar_lea.vmem %s4, %s191
      %v194 = vld [vmem:[%s0] sm:$0x1]
      %v195 = vld [vmem:[%s188] sm:$0xff]
      %vm196 = vcmp.gt.s32.totalorder %v194, 0
      %v197 = vsel %vm196, 1, 0
      %v198 = vperm.slane %v197, 0
      %vm199 = vcmp.eq.s32.totalorder %v198, 1
      %v200 = vsel %vm199, %v195, 0.0
      %vm201 = vcmp.lt.s32.totalorder %v194, 3
      %v202 = vsel %vm201, 1, 0
      %v203 = vperm.slane %v202, 0
      %vm204 = vcmp.eq.s32.totalorder %v203, 1
      %206 = vrot.lane.b32.xlu0 %v195, 126
      %v207 = vpop.permute.xlu0 %206
      %v209 = vsel %vm204, %v207, 0.0
      %210 = vrot.lane.b32.xlu0 %v195, 124
      %v211 = vpop.permute.xlu0 %210
      %v213 = vsel %vm199, %v211, 0.0
      %214 = vrot.lane.b32.xlu0 %v195, 122
      %v215 = vpop.permute.xlu0 %214
      %v217 = vsel %vm204, %v215, 0.0
      %218 = vrot.lane.b32.xlu0 %v195, 120
      %v219 = vpop.permute.xlu0 %218
      %v221 = vsel %vm199, %v219, 0.0
      %222 = vrot.lane.b32.xlu0 %v195, 118
      %v223 = vpop.permute.xlu0 %222
      %v225 = vsel %vm204, %v223, 0.0
      %226 = vrot.lane.b32.xlu0 %v195, 127
      %v227 = vpop.permute.xlu0 %226
      %229 = vrot.lane.b32.xlu0 %v195, 123
      %v230 = vpop.permute.xlu0 %229
      %232 = vrot.lane.b32.xlu0 %v195, 119
      %v233 = vpop.permute.xlu0 %232
      %v235 = vpack.c.bf16 %v227, %v200
      %v236 = vpack.c.bf16 %v213, %v209
      %v237 = vpack.c.bf16 %v217, %v230
      %v238 = vpack.c.bf16 %v233, %v221
      %v239 = vpack.c.bf16 %v225, %v225
      %v240 = vld [vmem:[%s2] sm:$0xf]
      %v241 = vld [vmem:[%s3] sm:$0xff]
      %243 = vset.pattern.permute.xlu0 0
      %244 = vperm.xlu0 %243, %v241
      %v245 = vpop.permute.xlu0 %244
      %vm247 = vcmask 588800
      %v249 = vsel %vm247, %v240, 0
      %vm251 = vcmask 1043456
      %v253 = vsel %vm251, %v239, 0
      %255 = vmatpush.bf16.msra.mxu0 0
      %256 = vmatpush.bf16.msra.mxu0 0
      %257 = vmatpush.bf16.msra.mxu0 0
      %258 = vmatpush.bf16.msra.mxu0 %v253
      %259 = vmatpush.bf16.msra.mxu0 %v238
      %260 = vmatpush.bf16.msra.mxu0 %v237
      %261 = vmatpush.bf16.msra.mxu0 %v236
      %262 = vmatpush.bf16.msra.mxu0 %v235
      %263 = vmatmul.bf16.gmra.mxu0 %v249
      %v264 = vpop.f32.mrf.mxu0
      %v265 = vadd.f32 %v245, %v264
      %v266 = vpop.f32.mrf.mxu0
      %267 = vdwg.mxu0
      %vm268 = vcmp.ge.f32.partialorder %v265, 0.0
      %v269 = vmul.f32 %v265, 0.01
      %v270 = vsel %vm268, %v265, %v269
      %vm271 = vcmask 130048
      %272 = vst.msk [vmem:[%s192] sm:$0xff] %vm271, %v270
      %p273 = scmp.lt.s32.totalorder %s15, 1
      %s274 = scalar_select %p273, %s15, 1
      %s275 = smul.addr %s274, 8
      %s276 = scalar_lea.vmem %s4, %s275
      // Predicated region
      $region37: #{encoder_apply.16} parent=35 // pred_check
        %p277 = pneg %p122
      $region38: #{encoder_apply.16} parent=35 // pred_check_branch
        %279 = sbr.rel (%p277) target = $region40
      $region39: #{encoder_apply.16} parent=35 // pred_region
        _
      $region40: #{encoder_apply.16} parent=35 // pred_fallthru
        _
    $region36: #{encoder_apply.16} parent=5 // pred_fallthru
      _
    %p280 = scmp.le.s32.totalorder 2, %s10
    // Predicated region
    $region41: #{encoder_apply.16} parent=5 // pred_check
      %p281 = pneg %p280
    $region42: #{encoder_apply.16} parent=5 // pred_check_branch
      %283 = sbr.rel (%p281) target = $region44
    $region43: #{encoder_apply.16} parent=5 // pred_region
      %s284 = ssub.s32 %s10, 2
      // Predicated region
      $region45: #{encoder_apply.16} parent=43 // pred_check
        %p285 = pneg %p128
      $region46: #{encoder_apply.16} parent=43 // pred_check_branch
        %287 = sbr.rel (%p285) target = $region48
      $region47: #{encoder_apply.16} parent=43 // pred_region
        %p288 = scmp.lt.s32.totalorder %s16, 1
        %s289 = scalar_select %p288, %s16, 1
        %s290 = smul.addr %s289, 8
        %s291 = scalar_lea.vmem %s4, %s290
      $region48: #{encoder_apply.16} parent=43 // pred_fallthru
        _
    $region44: #{encoder_apply.16} parent=5 // pred_fallthru
      _
  $region6: #{encoder_apply.16} parent=0 // loop_footer
    %s14 = sadd.s32 1, %s10
  $region7: #{encoder_apply.16} parent=0 // loop_footer_branch
    %9 = sbr.rel target = $region3
  $region8: #{encoder_apply.16} parent=0 // loop_exit
    _

// kernel: encoder_apply.17
$region0: #{encoder_apply.17}
  #allocation0 [shape = 'u32[]', space=smem, size = 0x4, offset = 0x4, fixed_abs, tag = 'smem constant byte address 0x4 - core index']
  #allocation1 [shape = 'u32[72,128]{1,0:T(1,128)}', space=vmem, size = 0x9000, scoped, tag = 'internal scratch']
  %s0 = inlined_call_operand.vmem [shape: f32[2,32,4], index: 0, kind: input, shape index: {}]
  %s1 = inlined_call_operand.vmem [shape: bf16[8,32], index: 1, kind: input, shape index: {}]
  %s2 = inlined_call_operand.vmem [shape: f32[8,1], index: 2, kind: input, shape index: {}]
  %s3 = inlined_call_operand.vmem [shape: f32[2,8,4], index: 3, kind: output, shape index: {}]
  %s4 = sld [smem:[#allocation0]]
  $region45: #{encoder_apply.17} parent=0
    _
  %s6 = ssub.s32 1, %s4
  %s7 = scalar_select 0, %s6, %s4
  loop: start=0, step=1, limit=4
  $region2: #{encoder_apply.17} parent=0 // loop_pre_header
    _
  $region3: #{encoder_apply.17} parent=0 // loop_header
    %s9 = sphi 0, %s13
    %p10 = scmp.ge.s32.totalorder %s9, 4
    %s16 = sphi 0, %s28
    %s17 = sphi 0, %s24
    %s18 = sphi 0, %s16
    %s19 = sphi 0, %s17
    %s20 = sphi 0, %s18
    %s21 = sphi 0, %s19
    %s33 = sphi 0, %s35
    %s36 = sphi 0, %s33
    %s37 = sphi 0, %s36
    %s53 = sphi 0, %s37
    %s57 = sphi 0, %s57
    %s59 = sphi 0, %s57
    %s60 = sphi 0, %s59
    %s74 = sphi 0, %s60
    %s78 = sphi 0, %s78
    %s80 = sphi 0, %s78
    %s81 = sphi 0, %s80
    %s95 = sphi 0, %s81
    %s103 = sphi 0, %s105
    %s106 = sphi 0, %s103
    %s107 = sphi 0, %s106
    %s123 = sphi 0, %s107
  $region4: #{encoder_apply.17} parent=0 // loop_header_branch
    %12 = sbr.rel (%p10) target = $region8
  $region5: #{encoder_apply.17} parent=0 // loop_body
    %s14 = ssub.s32 %s9, 1
    %s15 = ssub.s32 %s9, 2
    %s22 = sadd.s32 1, %s17
    %p23 = scmp.ge.s32.totalorder %s22, 1
    %s24 = scalar_select %p23, 0, %s22
    %s25 = sadd.s32 1, %s16
    %s26 = scalar_select %p23, %s25, %s16
    %p27 = scmp.ge.s32.totalorder %s26, 2
    %s28 = scalar_select %p27, 0, %s26
    %s29 = ssub.s32 %s16, %s28
    %s30 = ssub.s32 %s17, %s24
    %s31 = sor.u32 %s29, %s30
    %p32 = scmp.eq.s32.totalorder %s31, 0
    %s34 = sadd.s32 %s33, 1
    %s35 = scalar_select %p32, %s33, %s34
    %p38 = pneg %p32
    %p39 = scmp.eq.s32.totalorder %s9, 1
    %p40 = por %p38, %p39
    %p41 = scmp.ne.s32.totalorder %s33, %s36
    %p42 = scmp.eq.s32.totalorder %s9, 0
    %p43 = por %p41, %p42
    %p44 = scmp.ne.s32.totalorder %s33, %s36
    %p45 = scmp.eq.s32.totalorder %s14, 1
    %p46 = por %p44, %p45
    %p47 = scmp.ne.s32.totalorder %s36, %s37
    %p48 = scmp.eq.s32.totalorder %s14, 0
    %p49 = por %p47, %p48
    %p50 = scmp.ne.s32.totalorder %s36, %s37
    %p51 = scmp.eq.s32.totalorder %s15, 1
    %p52 = por %p50, %p51
    %p54 = scmp.ne.s32.totalorder %s37, %s53
    %p55 = scmp.eq.s32.totalorder %s15, 0
    %p56 = por %p54, %p55
    %s58 = sadd.s32 %s57, 1
    %p61 = scmp.eq.s32.totalorder %s9, 1
    %p62 = scmp.ne.s32.totalorder %s57, %s59
    %p63 = scmp.eq.s32.totalorder %s9, 0
    %p64 = por %p62, %p63
    %p65 = scmp.ne.s32.totalorder %s57, %s59
    %p66 = scmp.eq.s32.totalorder %s14, 1
    %p67 = por %p65, %p66
    %p68 = scmp.ne.s32.totalorder %s59, %s60
    %p69 = scmp.eq.s32.totalorder %s14, 0
    %p70 = por %p68, %p69
    %p71 = scmp.ne.s32.totalorder %s59, %s60
    %p72 = scmp.eq.s32.totalorder %s15, 1
    %p73 = por %p71, %p72
    %p75 = scmp.ne.s32.totalorder %s60, %s74
    %p76 = scmp.eq.s32.totalorder %s15, 0
    %p77 = por %p75, %p76
    %s79 = sadd.s32 %s78, 1
    %p82 = scmp.eq.s32.totalorder %s9, 1
    %p83 = scmp.ne.s32.totalorder %s78, %s80
    %p84 = scmp.eq.s32.totalorder %s9, 0
    %p85 = por %p83, %p84
    %p86 = scmp.ne.s32.totalorder %s78, %s80
    %p87 = scmp.eq.s32.totalorder %s14, 1
    %p88 = por %p86, %p87
    %p89 = scmp.ne.s32.totalorder %s80, %s81
    %p90 = scmp.eq.s32.totalorder %s14, 0
    %p91 = por %p89, %p90
    %p92 = scmp.ne.s32.totalorder %s80, %s81
    %p93 = scmp.eq.s32.totalorder %s15, 1
    %p94 = por %p92, %p93
    %p96 = scmp.ne.s32.totalorder %s81, %s95
    %p97 = scmp.eq.s32.totalorder %s15, 0
    %p98 = por %p96, %p97
    %s99 = ssub.s32 %s16, %s28
    %s100 = ssub.s32 %s17, %s24
    %s101 = sor.u32 %s99, %s100
    %p102 = scmp.eq.s32.totalorder %s101, 0
    %s104 = sadd.s32 %s103, 1
    %s105 = scalar_select %p102, %s103, %s104
    %p108 = pneg %p102
    %p109 = scmp.eq.s32.totalorder %s9, 1
    %p110 = por %p108, %p109
    %p111 = scmp.ne.s32.totalorder %s103, %s106
    %p112 = scmp.eq.s32.totalorder %s9, 0
    %p113 = por %p111, %p112
    %p114 = scmp.ne.s32.totalorder %s103, %s106
    %p115 = scmp.eq.s32.totalorder %s14, 1
    %p116 = por %p114, %p115
    %p117 = scmp.ne.s32.totalorder %s106, %s107
    %p118 = scmp.eq.s32.totalorder %s14, 0
    %p119 = por %p117, %p118
    %p120 = scmp.ne.s32.totalorder %s106, %s107
    %p121 = scmp.eq.s32.totalorder %s15, 1
    %p122 = por %p120, %p121
    %p124 = scmp.ne.s32.totalorder %s107, %s123
    %p125 = scmp.eq.s32.totalorder %s15, 0
    %p126 = por %p124, %p125
    %p127 = scmp.le.s32.totalorder 1, %s9
    %p128 = scmp.lt.s32.totalorder %s9, 3
    %p129 = pnand %p127, %p128
    %p130 = pneg %p129
    // Predicated region
    $region9: #{encoder_apply.17} parent=5 // pred_check
      _
    $region10: #{encoder_apply.17} parent=5 // pred_check_branch
      %132 = sbr.rel (%p129) target = $region12
    $region11: #{encoder_apply.17} parent=5 // pred_region
      %s133 = ssub.s32 %s9, 1
      // Predicated region
      $region13: #{encoder_apply.17} parent=11 // pred_check
        %p134 = pneg %p70
      $region14: #{encoder_apply.17} parent=11 // pred_check_branch
        %136 = sbr.rel (%p134) target = $region16
      $region15: #{encoder_apply.17} parent=11 // pred_region
        _
      $region16: #{encoder_apply.17} parent=11 // pred_fallthru
        _
      // Predicated region
      $region17: #{encoder_apply.17} parent=11 // pred_check
        %p137 = pneg %p91
      $region18: #{encoder_apply.17} parent=11 // pred_check_branch
        %139 = sbr.rel (%p137) target = $region20
      $region19: #{encoder_apply.17} parent=11 // pred_region
        _
      $region20: #{encoder_apply.17} parent=11 // pred_fallthru
        _
    $region12: #{encoder_apply.17} parent=5 // pred_fallthru
      _
    %p140 = scmp.lt.s32.totalorder %s9, 2
    // Predicated region
    $region21: #{encoder_apply.17} parent=5 // pred_check
      %p141 = pneg %p140
    $region22: #{encoder_apply.17} parent=5 // pred_check_branch
      %143 = sbr.rel (%p141) target = $region24
    $region23: #{encoder_apply.17} parent=5 // pred_region
      // Predicated region
      $region25: #{encoder_apply.17} parent=23 // pred_check
        %p144 = pneg %p43
      $region26: #{encoder_apply.17} parent=23 // pred_check_branch
        %146 = sbr.rel (%p144) target = $region28
      $region27: #{encoder_apply.17} parent=23 // pred_region
        %p147 = scmp.lt.s32.totalorder %s16, 1
        %s148 = scalar_select %p147, %s16, 1
        %p149 = scmp.lt.s32.totalorder %s17, 0
        %s150 = scalar_select %p149, %s17, 0
        %s151 = smul.addr %s148, 4
        %s152 = sadd.s32 %s150, %s151
        %s153 = smul.addr %s152, 8
        %s154 = scalar_lea.vmem %s0, %s153
      $region28: #{encoder_apply.17} parent=23 // pred_fallthru
        _
    $region24: #{encoder_apply.17} parent=5 // pred_fallthru
      _
    %p155 = scmp.le.s32.totalorder 1, %s9
    %p156 = scmp.lt.s32.totalorder %s9, 3
    %p157 = pnand %p155, %p156
    %p158 = pneg %p157
    // Predicated region
    $region29: #{encoder_apply.17} parent=5 // pred_check
      _
    $region30: #{encoder_apply.17} parent=5 // pred_check_branch
      %160 = sbr.rel (%p157) target = $region32
    $region31: #{encoder_apply.17} parent=5 // pred_region
      %s161 = ssub.s32 %s9, 1
      %p162 = scmp.lt.s32.totalorder %s18, 1
      %s163 = scalar_select %p162, %s18, 1
      %p164 = scmp.lt.s32.totalorder %s19, 0
      %s165 = scalar_select %p164, %s19, 0
      %s166 = smul.addr %s163, 4
      %s167 = sadd.s32 %s165, %s166
      %s168 = smul.addr %s167, 8
      %s169 = scalar_lea.vmem %s0, %s168
      %p170 = pneg %p49
      %p171 = pneg %p46
      %p172 = pneg %p70
      %p173 = pneg %p67
      %p174 = pneg %p91
      %p175 = pneg %p88
      %p176 = pneg %p119
      %p177 = pneg %p116
      %p178 = scmp.lt.s32.totalorder %s18, 1
      %s179 = scalar_select %p178, %s18, 1
      %p180 = scmp.lt.s32.totalorder %s19, 0
      %s181 = scalar_select %p180, %s19, 0
      %s182 = sadd.s32 %s181, %s179
      %s183 = smul.addr %s182, 8
      %s184 = scalar_lea.vmem %s3, %s183
      %p185 = scmp.lt.s32.totalorder %s18, 1
      %s186 = scalar_select %p185, %s18, 1
      %p187 = scmp.lt.s32.totalorder %s19, 0
      %s188 = scalar_select %p187, %s19, 0
      %s189 = smul.addr %s186, 4
      %s190 = sadd.s32 %s188, %s189
      %s191 = smul.addr %s190, 8
      %s192 = scalar_lea.vmem %s0, %s191
      %p193 = scmp.lt.s32.totalorder %s18, 1
      %s194 = scalar_select %p193, %s18, 1
      %p195 = scmp.lt.s32.totalorder %s19, 0
      %s196 = scalar_select %p195, %s19, 0
      %s197 = sadd.s32 %s196, %s194
      %s198 = smul.addr %s197, 8
      %s199 = scalar_lea.vmem %s3, %s198
      %v201 = vld [vmem:[%s192] sm:$0xff]
      %v202 = vld [vmem:[%s192 + $0x8] sm:$0xff]
      %v203 = vld [vmem:[%s192 + $0x10] sm:$0xff]
      %v204 = vld [vmem:[%s192 + $0x18] sm:$0xff]
      %v205 = vpack.c.bf16 %v202, %v201
      %v206 = vpack.c.bf16 %v204, %v203
      %v207 = vld [vmem:[%s1] sm:$0xf]
      %v208 = vld [vmem:[%s2] sm:$0xff]
      %210 = vset.pattern.permute.xlu0 0
      %211 = vperm.xlu0 %210, %v208
      %v212 = vpop.permute.xlu0 %211
      %vm214 = vcmask 261120
      %v216 = vsel %vm214, %v207, 0
      %218 = vmatpush.bf16.msra.mxu0 0
      %219 = vmatpush.bf16.msra.mxu0 0
      %220 = vmatpush.bf16.msra.mxu0 0
      %221 = vmatpush.bf16.msra.mxu0 0
      %222 = vmatpush.bf16.msra.mxu0 0
      %223 = vmatpush.bf16.msra.mxu0 0
      %224 = vmatpush.bf16.msra.mxu0 %v206
      %225 = vmatpush.bf16.msra.mxu0 %v205
      %226 = vmatmul.bf16.gmra.mxu0 %v216
      %v227 = vpop.f32.mrf.mxu0
      %v228 = vadd.f32 %v212, %v227
      %v229 = vpop.f32.mrf.mxu0
      %230 = vdwg.mxu0
      %vm231 = vcmp.ge.f32.partialorder %v228, 0.0
      %v232 = vmul.f32 %v228, 0.01
      %v233 = vsel %vm231, %v228, %v232
      %vm234 = vcmask 31744
      %235 = vst.msk [vmem:[%s199] sm:$0xff] %vm234, %v233
      %p236 = scmp.lt.s32.totalorder %s18, 1
      %s237 = scalar_select %p236, %s18, 1
      %p238 = scmp.lt.s32.totalorder %s19, 0
      %s239 = scalar_select %p238, %s19, 0
      %s240 = sadd.s32 %s239, %s237
      %s241 = smul.addr %s240, 8
      %s242 = scalar_lea.vmem %s3, %s241
      // Predicated region
      $region33: #{encoder_apply.17} parent=31 // pred_check
        %p243 = pneg %p116
      $region34: #{encoder_apply.17} parent=31 // pred_check_branch
        %245 = sbr.rel (%p243) target = $region36
      $region35: #{encoder_apply.17} parent=31 // pred_region
        _
      $region36: #{encoder_apply.17} parent=31 // pred_fallthru
        _
    $region32: #{encoder_apply.17} parent=5 // pred_fallthru
      _
    %p246 = scmp.le.s32.totalorder 2, %s9
    // Predicated region
    $region37: #{encoder_apply.17} parent=5 // pred_check
      %p247 = pneg %p246
    $region38: #{encoder_apply.17} parent=5 // pred_check_branch
      %249 = sbr.rel (%p247) target = $region40
    $region39: #{encoder_apply.17} parent=5 // pred_region
      %s250 = ssub.s32 %s9, 2
      // Predicated region
      $region41: #{encoder_apply.17} parent=39 // pred_check
        %p251 = pneg %p122
      $region42: #{encoder_apply.17} parent=39 // pred_check_branch
        %253 = sbr.rel (%p251) target = $region44
      $region43: #{encoder_apply.17} parent=39 // pred_region
        %p254 = scmp.lt.s32.totalorder %s20, 1
        %s255 = scalar_select %p254, %s20, 1
        %p256 = scmp.lt.s32.totalorder %s21, 0
        %s257 = scalar_select %p256, %s21, 0
        %s258 = sadd.s32 %s257, %s255
        %s259 = smul.addr %s258, 8
        %s260 = scalar_lea.vmem %s3, %s259
      $region44: #{encoder_apply.17} parent=39 // pred_fallthru
        _
    $region40: #{encoder_apply.17} parent=5 // pred_fallthru
      _
  $region6: #{encoder_apply.17} parent=0 // loop_footer
    %s13 = sadd.s32 1, %s9
  $region7: #{encoder_apply.17} parent=0 // loop_footer_branch
    %8 = sbr.rel target = $region3
  $region8: #{encoder_apply.17} parent=0 // loop_exit
    _

// kernel: encoder_apply.19
$region0: #{encoder_apply.19}
  #allocation0 [shape = 'u32[]', space=smem, size = 0x4, offset = 0x4, fixed_abs, tag = 'smem constant byte address 0x4 - core index']
  #allocation1 [shape = 'u32[72,128]{1,0:T(1,128)}', space=vmem, size = 0x9000, scoped, tag = 'internal scratch']
  %s0 = inlined_call_operand.vmem [shape: f32[2,32,1], index: 0, kind: input, shape index: {}]
  %s1 = inlined_call_operand.vmem [shape: bf16[8,32], index: 1, kind: input, shape index: {}]
  %s2 = inlined_call_operand.vmem [shape: f32[8,1], index: 2, kind: input, shape index: {}]
  %s3 = inlined_call_operand.vmem [shape: f32[2,8,1], index: 3, kind: output, shape index: {}]
  %s4 = sld [smem:[#allocation0]]
  $region45: #{encoder_apply.19} parent=0
    _
  %s6 = ssub.s32 1, %s4
  %s7 = scalar_select 0, %s6, %s4
  loop: start=0, step=1, limit=4
  $region2: #{encoder_apply.19} parent=0 // loop_pre_header
    _
  $region3: #{encoder_apply.19} parent=0 // loop_header
    %s9 = sphi 0, %s13
    %p10 = scmp.ge.s32.totalorder %s9, 4
    %s16 = sphi 0, %s28
    %s17 = sphi 0, %s24
    %s18 = sphi 0, %s16
    %s19 = sphi 0, %s17
    %s20 = sphi 0, %s18
    %s21 = sphi 0, %s19
    %s33 = sphi 0, %s35
    %s36 = sphi 0, %s33
    %s37 = sphi 0, %s36
    %s53 = sphi 0, %s37
    %s57 = sphi 0, %s57
    %s59 = sphi 0, %s57
    %s60 = sphi 0, %s59
    %s74 = sphi 0, %s60
    %s78 = sphi 0, %s78
    %s80 = sphi 0, %s78
    %s81 = sphi 0, %s80
    %s95 = sphi 0, %s81
    %s103 = sphi 0, %s105
    %s106 = sphi 0, %s103
    %s107 = sphi 0, %s106
    %s123 = sphi 0, %s107
  $region4: #{encoder_apply.19} parent=0 // loop_header_branch
    %12 = sbr.rel (%p10) target = $region8
  $region5: #{encoder_apply.19} parent=0 // loop_body
    %s14 = ssub.s32 %s9, 1
    %s15 = ssub.s32 %s9, 2
    %s22 = sadd.s32 1, %s17
    %p23 = scmp.ge.s32.totalorder %s22, 1
    %s24 = scalar_select %p23, 0, %s22
    %s25 = sadd.s32 1, %s16
    %s26 = scalar_select %p23, %s25, %s16
    %p27 = scmp.ge.s32.totalorder %s26, 2
    %s28 = scalar_select %p27, 0, %s26
    %s29 = ssub.s32 %s16, %s28
    %s30 = ssub.s32 %s17, %s24
    %s31 = sor.u32 %s29, %s30
    %p32 = scmp.eq.s32.totalorder %s31, 0
    %s34 = sadd.s32 %s33, 1
    %s35 = scalar_select %p32, %s33, %s34
    %p38 = pneg %p32
    %p39 = scmp.eq.s32.totalorder %s9, 1
    %p40 = por %p38, %p39
    %p41 = scmp.ne.s32.totalorder %s33, %s36
    %p42 = scmp.eq.s32.totalorder %s9, 0
    %p43 = por %p41, %p42
    %p44 = scmp.ne.s32.totalorder %s33, %s36
    %p45 = scmp.eq.s32.totalorder %s14, 1
    %p46 = por %p44, %p45
    %p47 = scmp.ne.s32.totalorder %s36, %s37
    %p48 = scmp.eq.s32.totalorder %s14, 0
    %p49 = por %p47, %p48
    %p50 = scmp.ne.s32.totalorder %s36, %s37
    %p51 = scmp.eq.s32.totalorder %s15, 1
    %p52 = por %p50, %p51
    %p54 = scmp.ne.s32.totalorder %s37, %s53
    %p55 = scmp.eq.s32.totalorder %s15, 0
    %p56 = por %p54, %p55
    %s58 = sadd.s32 %s57, 1
    %p61 = scmp.eq.s32.totalorder %s9, 1
    %p62 = scmp.ne.s32.totalorder %s57, %s59
    %p63 = scmp.eq.s32.totalorder %s9, 0
    %p64 = por %p62, %p63
    %p65 = scmp.ne.s32.totalorder %s57, %s59
    %p66 = scmp.eq.s32.totalorder %s14, 1
    %p67 = por %p65, %p66
    %p68 = scmp.ne.s32.totalorder %s59, %s60
    %p69 = scmp.eq.s32.totalorder %s14, 0
    %p70 = por %p68, %p69
    %p71 = scmp.ne.s32.totalorder %s59, %s60
    %p72 = scmp.eq.s32.totalorder %s15, 1
    %p73 = por %p71, %p72
    %p75 = scmp.ne.s32.totalorder %s60, %s74
    %p76 = scmp.eq.s32.totalorder %s15, 0
    %p77 = por %p75, %p76
    %s79 = sadd.s32 %s78, 1
    %p82 = scmp.eq.s32.totalorder %s9, 1
    %p83 = scmp.ne.s32.totalorder %s78, %s80
    %p84 = scmp.eq.s32.totalorder %s9, 0
    %p85 = por %p83, %p84
    %p86 = scmp.ne.s32.totalorder %s78, %s80
    %p87 = scmp.eq.s32.totalorder %s14, 1
    %p88 = por %p86, %p87
    %p89 = scmp.ne.s32.totalorder %s80, %s81
    %p90 = scmp.eq.s32.totalorder %s14, 0
    %p91 = por %p89, %p90
    %p92 = scmp.ne.s32.totalorder %s80, %s81
    %p93 = scmp.eq.s32.totalorder %s15, 1
    %p94 = por %p92, %p93
    %p96 = scmp.ne.s32.totalorder %s81, %s95
    %p97 = scmp.eq.s32.totalorder %s15, 0
    %p98 = por %p96, %p97
    %s99 = ssub.s32 %s16, %s28
    %s100 = ssub.s32 %s17, %s24
    %s101 = sor.u32 %s99, %s100
    %p102 = scmp.eq.s32.totalorder %s101, 0
    %s104 = sadd.s32 %s103, 1
    %s105 = scalar_select %p102, %s103, %s104
    %p108 = pneg %p102
    %p109 = scmp.eq.s32.totalorder %s9, 1
    %p110 = por %p108, %p109
    %p111 = scmp.ne.s32.totalorder %s103, %s106
    %p112 = scmp.eq.s32.totalorder %s9, 0
    %p113 = por %p111, %p112
    %p114 = scmp.ne.s32.totalorder %s103, %s106
    %p115 = scmp.eq.s32.totalorder %s14, 1
    %p116 = por %p114, %p115
    %p117 = scmp.ne.s32.totalorder %s106, %s107
    %p118 = scmp.eq.s32.totalorder %s14, 0
    %p119 = por %p117, %p118
    %p120 = scmp.ne.s32.totalorder %s106, %s107
    %p121 = scmp.eq.s32.totalorder %s15, 1
    %p122 = por %p120, %p121
    %p124 = scmp.ne.s32.totalorder %s107, %s123
    %p125 = scmp.eq.s32.totalorder %s15, 0
    %p126 = por %p124, %p125
    %p127 = scmp.le.s32.totalorder 1, %s9
    %p128 = scmp.lt.s32.totalorder %s9, 3
    %p129 = pnand %p127, %p128
    %p130 = pneg %p129
    // Predicated region
    $region9: #{encoder_apply.19} parent=5 // pred_check
      _
    $region10: #{encoder_apply.19} parent=5 // pred_check_branch
      %132 = sbr.rel (%p129) target = $region12
    $region11: #{encoder_apply.19} parent=5 // pred_region
      %s133 = ssub.s32 %s9, 1
      // Predicated region
      $region13: #{encoder_apply.19} parent=11 // pred_check
        %p134 = pneg %p70
      $region14: #{encoder_apply.19} parent=11 // pred_check_branch
        %136 = sbr.rel (%p134) target = $region16
      $region15: #{encoder_apply.19} parent=11 // pred_region
        _
      $region16: #{encoder_apply.19} parent=11 // pred_fallthru
        _
      // Predicated region
      $region17: #{encoder_apply.19} parent=11 // pred_check
        %p137 = pneg %p91
      $region18: #{encoder_apply.19} parent=11 // pred_check_branch
        %139 = sbr.rel (%p137) target = $region20
      $region19: #{encoder_apply.19} parent=11 // pred_region
        _
      $region20: #{encoder_apply.19} parent=11 // pred_fallthru
        _
    $region12: #{encoder_apply.19} parent=5 // pred_fallthru
      _
    %p140 = scmp.lt.s32.totalorder %s9, 2
    // Predicated region
    $region21: #{encoder_apply.19} parent=5 // pred_check
      %p141 = pneg %p140
    $region22: #{encoder_apply.19} parent=5 // pred_check_branch
      %143 = sbr.rel (%p141) target = $region24
    $region23: #{encoder_apply.19} parent=5 // pred_region
      // Predicated region
      $region25: #{encoder_apply.19} parent=23 // pred_check
        %p144 = pneg %p43
      $region26: #{encoder_apply.19} parent=23 // pred_check_branch
        %146 = sbr.rel (%p144) target = $region28
      $region27: #{encoder_apply.19} parent=23 // pred_region
        %p147 = scmp.lt.s32.totalorder %s16, 1
        %s148 = scalar_select %p147, %s16, 1
        %p149 = scmp.lt.s32.totalorder %s17, 0
        %s150 = scalar_select %p149, %s17, 0
        %s151 = smul.addr %s148, 4
        %s152 = sadd.s32 %s150, %s151
        %s153 = smul.addr %s152, 8
        %s154 = scalar_lea.vmem %s0, %s153
      $region28: #{encoder_apply.19} parent=23 // pred_fallthru
        _
    $region24: #{encoder_apply.19} parent=5 // pred_fallthru
      _
    %p155 = scmp.le.s32.totalorder 1, %s9
    %p156 = scmp.lt.s32.totalorder %s9, 3
    %p157 = pnand %p155, %p156
    %p158 = pneg %p157
    // Predicated region
    $region29: #{encoder_apply.19} parent=5 // pred_check
      _
    $region30: #{encoder_apply.19} parent=5 // pred_check_branch
      %160 = sbr.rel (%p157) target = $region32
    $region31: #{encoder_apply.19} parent=5 // pred_region
      %s161 = ssub.s32 %s9, 1
      %p162 = scmp.lt.s32.totalorder %s18, 1
      %s163 = scalar_select %p162, %s18, 1
      %p164 = scmp.lt.s32.totalorder %s19, 0
      %s165 = scalar_select %p164, %s19, 0
      %s166 = smul.addr %s163, 4
      %s167 = sadd.s32 %s165, %s166
      %s168 = smul.addr %s167, 8
      %s169 = scalar_lea.vmem %s0, %s168
      %p170 = pneg %p49
      %p171 = pneg %p46
      %p172 = pneg %p70
      %p173 = pneg %p67
      %p174 = pneg %p91
      %p175 = pneg %p88
      %p176 = pneg %p119
      %p177 = pneg %p116
      %p178 = scmp.lt.s32.totalorder %s18, 1
      %s179 = scalar_select %p178, %s18, 1
      %p180 = scmp.lt.s32.totalorder %s19, 0
      %s181 = scalar_select %p180, %s19, 0
      %s182 = sadd.s32 %s181, %s179
      %s183 = smul.addr %s182, 8
      %s184 = scalar_lea.vmem %s3, %s183
      %p185 = scmp.lt.s32.totalorder %s18, 1
      %s186 = scalar_select %p185, %s18, 1
      %p187 = scmp.lt.s32.totalorder %s19, 0
      %s188 = scalar_select %p187, %s19, 0
      %s189 = smul.addr %s186, 4
      %s190 = sadd.s32 %s188, %s189
      %s191 = smul.addr %s190, 8
      %s192 = scalar_lea.vmem %s0, %s191
      %p193 = scmp.lt.s32.totalorder %s18, 1
      %s194 = scalar_select %p193, %s18, 1
      %p195 = scmp.lt.s32.totalorder %s19, 0
      %s196 = scalar_select %p195, %s19, 0
      %s197 = sadd.s32 %s196, %s194
      %s198 = smul.addr %s197, 8
      %s199 = scalar_lea.vmem %s3, %s198
      %v201 = vld [vmem:[%s192] sm:$0xff]
      %v202 = vld [vmem:[%s192 + $0x8] sm:$0xff]
      %v203 = vld [vmem:[%s192 + $0x10] sm:$0xff]
      %v204 = vld [vmem:[%s192 + $0x18] sm:$0xff]
      %v205 = vpack.c.bf16 %v202, %v201
      %v206 = vpack.c.bf16 %v204, %v203
      %v207 = vld [vmem:[%s1] sm:$0xf]
      %v208 = vld [vmem:[%s2] sm:$0xff]
      %vm209 = vcmask 261120
      %v211 = vsel %vm209, %v207, 0
      %213 = vmatpush.bf16.msra.mxu0 0
      %214 = vmatpush.bf16.msra.mxu0 0
      %215 = vmatpush.bf16.msra.mxu0 0
      %216 = vmatpush.bf16.msra.mxu0 0
      %217 = vmatpush.bf16.msra.mxu0 0
      %218 = vmatpush.bf16.msra.mxu0 0
      %219 = vmatpush.bf16.msra.mxu0 %v206
      %220 = vmatpush.bf16.msra.mxu0 %v205
      %221 = vmatmul.bf16.gmra.mxu0 %v211
      %v222 = vpop.f32.mrf.mxu0
      %v223 = vadd.f32 %v208, %v222
      %v224 = vpop.f32.mrf.mxu0
      %225 = vdwg.mxu0
      %vm226 = vcmp.ge.f32.partialorder %v223, 0.0
      %v227 = vmul.f32 %v223, 0.01
      %v228 = vsel %vm226, %v223, %v227
      %vm229 = vcmask 7168
      %230 = vst.msk [vmem:[%s199] sm:$0xff] %vm229, %v228
      %p231 = scmp.lt.s32.totalorder %s18, 1
      %s232 = scalar_select %p231, %s18, 1
      %p233 = scmp.lt.s32.totalorder %s19, 0
      %s234 = scalar_select %p233, %s19, 0
      %s235 = sadd.s32 %s234, %s232
      %s236 = smul.addr %s235, 8
      %s237 = scalar_lea.vmem %s3, %s236
      // Predicated region
      $region33: #{encoder_apply.19} parent=31 // pred_check
        %p238 = pneg %p116
      $region34: #{encoder_apply.19} parent=31 // pred_check_branch
        %240 = sbr.rel (%p238) target = $region36
      $region35: #{encoder_apply.19} parent=31 // pred_region
        _
      $region36: #{encoder_apply.19} parent=31 // pred_fallthru
        _
    $region32: #{encoder_apply.19} parent=5 // pred_fallthru
      _
    %p241 = scmp.le.s32.totalorder 2, %s9
    // Predicated region
    $region37: #{encoder_apply.19} parent=5 // pred_check
      %p242 = pneg %p241
    $region38: #{encoder_apply.19} parent=5 // pred_check_branch
      %244 = sbr.rel (%p242) target = $region40
    $region39: #{encoder_apply.19} parent=5 // pred_region
      %s245 = ssub.s32 %s9, 2
      // Predicated region
      $region41: #{encoder_apply.19} parent=39 // pred_check
        %p246 = pneg %p122
      $region42: #{encoder_apply.19} parent=39 // pred_check_branch
        %248 = sbr.rel (%p246) target = $region44
      $region43: #{encoder_apply.19} parent=39 // pred_region
        %p249 = scmp.lt.s32.totalorder %s20, 1
        %s250 = scalar_select %p249, %s20, 1
        %p251 = scmp.lt.s32.totalorder %s21, 0
        %s252 = scalar_select %p251, %s21, 0
        %s253 = sadd.s32 %s252, %s250
        %s254 = smul.addr %s253, 8
        %s255 = scalar_lea.vmem %s3, %s254
      $region44: #{encoder_apply.19} parent=39 // pred_fallthru
        _
    $region40: #{encoder_apply.19} parent=5 // pred_fallthru
      _
  $region6: #{encoder_apply.19} parent=0 // loop_footer
    %s13 = sadd.s32 1, %s9
  $region7: #{encoder_apply.19} parent=0 // loop_footer_branch
    %8 = sbr.rel target = $region3
  $region8: #{encoder_apply.19} parent=0 // loop_exit
    _

// kernel: encoder_apply.18
$region0: #{encoder_apply.18}
  #allocation0 [shape = 'u32[]', space=smem, size = 0x4, offset = 0x4, fixed_abs, tag = 'smem constant byte address 0x4 - core index']
  #allocation1 [shape = 'u32[72,128]{1,0:T(1,128)}', space=vmem, size = 0x9000, scoped, tag = 'internal scratch']
  %s0 = inlined_call_operand.vmem [shape: s32[1,4], index: 0, kind: input, shape index: {}]
  %s1 = inlined_call_operand.vmem [shape: f32[2,8,10], index: 1, kind: input, shape index: {}]
  %s2 = inlined_call_operand.vmem [shape: bf16[8,72], index: 2, kind: input, shape index: {}]
  %s3 = inlined_call_operand.vmem [shape: f32[8,1], index: 3, kind: input, shape index: {}]
  %s4 = inlined_call_operand.vmem [shape: f32[2,8,4], index: 4, kind: output, shape index: {}]
  %s5 = sld [smem:[#allocation0]]
  $region49: #{encoder_apply.18} parent=0
    _
  %s7 = ssub.s32 1, %s5
  %s8 = scalar_select 0, %s7, %s5
  loop: start=0, step=1, limit=4
  $region2: #{encoder_apply.18} parent=0 // loop_pre_header
    _
  $region3: #{encoder_apply.18} parent=0 // loop_header
    %s10 = sphi 0, %s14
    %p11 = scmp.ge.s32.totalorder %s10, 4
    %s18 = sphi 0, %s18
    %s20 = sphi 0, %s18
    %s21 = sphi 0, %s20
    %s35 = sphi 0, %s21
    %s41 = sphi 0, %s43
    %s44 = sphi 0, %s41
    %s45 = sphi 0, %s44
    %s61 = sphi 0, %s45
    %s65 = sphi 0, %s65
    %s67 = sphi 0, %s65
    %s68 = sphi 0, %s67
    %s82 = sphi 0, %s68
    %s86 = sphi 0, %s86
    %s88 = sphi 0, %s86
    %s89 = sphi 0, %s88
    %s103 = sphi 0, %s89
    %s109 = sphi 0, %s111
    %s112 = sphi 0, %s109
    %s113 = sphi 0, %s112
    %s129 = sphi 0, %s113
  $region4: #{encoder_apply.18} parent=0 // loop_header_branch
    %13 = sbr.rel (%p11) target = $region8
  $region5: #{encoder_apply.18} parent=0 // loop_body
    %s15 = ssub.s32 %s10, 1
    %s16 = ssub.s32 %s10, 2
    %s17 = sadd.s32 %s10, 1
    %s19 = sadd.s32 %s18, 1
    %p22 = scmp.eq.s32.totalorder %s10, 1
    %p23 = scmp.ne.s32.totalorder %s18, %s20
    %p24 = scmp.eq.s32.totalorder %s10, 0
    %p25 = por %p23, %p24
    %p26 = scmp.ne.s32.totalorder %s18, %s20
    %p27 = scmp.eq.s32.totalorder %s15, 1
    %p28 = por %p26, %p27
    %p29 = scmp.ne.s32.totalorder %s20, %s21
    %p30 = scmp.eq.s32.totalorder %s15, 0
    %p31 = por %p29, %p30
    %p32 = scmp.ne.s32.totalorder %s20, %s21
    %p33 = scmp.eq.s32.totalorder %s16, 1
    %p34 = por %p32, %p33
    %p36 = scmp.ne.s32.totalorder %s21, %s35
    %p37 = scmp.eq.s32.totalorder %s16, 0
    %p38 = por %p36, %p37
    %s39 = ssub.s32 %s10, %s17
    %p40 = scmp.eq.s32.totalorder %s39, 0
    %s42 = sadd.s32 %s41, 1
    %s43 = scalar_select %p40, %s41, %s42
    %p46 = pneg %p40
    %p47 = scmp.eq.s32.totalorder %s10, 1
    %p48 = por %p46, %p47
    %p49 = scmp.ne.s32.totalorder %s41, %s44
    %p50 = scmp.eq.s32.totalorder %s10, 0
    %p51 = por %p49, %p50
    %p52 = scmp.ne.s32.totalorder %s41, %s44
    %p53 = scmp.eq.s32.totalorder %s15, 1
    %p54 = por %p52, %p53
    %p55 = scmp.ne.s32.totalorder %s44, %s45
    %p56 = scmp.eq.s32.totalorder %s15, 0
    %p57 = por %p55, %p56
    %p58 = scmp.ne.s32.totalorder %s44, %s45
    %p59 = scmp.eq.s32.totalorder %s16, 1
    %p60 = por %p58, %p59
    %p62 = scmp.ne.s32.totalorder %s45, %s61
    %p63 = scmp.eq.s32.totalorder %s16, 0
    %p64 = por %p62, %p63
    %s66 = sadd.s32 %s65, 1
    %p69 = scmp.eq.s32.totalorder %s10, 1
    %p70 = scmp.ne.s32.totalorder %s65, %s67
    %p71 = scmp.eq.s32.totalorder %s10, 0
    %p72 = por %p70, %p71
    %p73 = scmp.ne.s32.totalorder %s65, %s67
    %p74 = scmp.eq.s32.totalorder %s15, 1
    %p75 = por %p73, %p74
    %p76 = scmp.ne.s32.totalorder %s67, %s68
    %p77 = scmp.eq.s32.totalorder %s15, 0
    %p78 = por %p76, %p77
    %p79 = scmp.ne.s32.totalorder %s67, %s68
    %p80 = scmp.eq.s32.totalorder %s16, 1
    %p81 = por %p79, %p80
    %p83 = scmp.ne.s32.totalorder %s68, %s82
    %p84 = scmp.eq.s32.totalorder %s16, 0
    %p85 = por %p83, %p84
    %s87 = sadd.s32 %s86, 1
    %p90 = scmp.eq.s32.totalorder %s10, 1
    %p91 = scmp.ne.s32.totalorder %s86, %s88
    %p92 = scmp.eq.s32.totalorder %s10, 0
    %p93 = por %p91, %p92
    %p94 = scmp.ne.s32.totalorder %s86, %s88
    %p95 = scmp.eq.s32.totalorder %s15, 1
    %p96 = por %p94, %p95
    %p97 = scmp.ne.s32.totalorder %s88, %s89
    %p98 = scmp.eq.s32.totalorder %s15, 0
    %p99 = por %p97, %p98
    %p100 = scmp.ne.s32.totalorder %s88, %s89
    %p101 = scmp.eq.s32.totalorder %s16, 1
    %p102 = por %p100, %p101
    %p104 = scmp.ne.s32.totalorder %s89, %s103
    %p105 = scmp.eq.s32.totalorder %s16, 0
    %p106 = por %p104, %p105
    %s107 = ssub.s32 %s10, %s17
    %p108 = scmp.eq.s32.totalorder %s107, 0
    %s110 = sadd.s32 %s109, 1
    %s111 = scalar_select %p108, %s109, %s110
    %p114 = pneg %p108
    %p115 = scmp.eq.s32.totalorder %s10, 1
    %p116 = por %p114, %p115
    %p117 = scmp.ne.s32.totalorder %s109, %s112
    %p118 = scmp.eq.s32.totalorder %s10, 0
    %p119 = por %p117, %p118
    %p120 = scmp.ne.s32.totalorder %s109, %s112
    %p121 = scmp.eq.s32.totalorder %s15, 1
    %p122 = por %p120, %p121
    %p123 = scmp.ne.s32.totalorder %s112, %s113
    %p124 = scmp.eq.s32.totalorder %s15, 0
    %p125 = por %p123, %p124
    %p126 = scmp.ne.s32.totalorder %s112, %s113
    %p127 = scmp.eq.s32.totalorder %s16, 1
    %p128 = por %p126, %p127
    %p130 = scmp.ne.s32.totalorder %s113, %s129
    %p131 = scmp.eq.s32.totalorder %s16, 0
    %p132 = por %p130, %p131
    %p133 = scmp.le.s32.totalorder 1, %s10
    %p134 = scmp.lt.s32.totalorder %s10, 3
    %p135 = pnand %p133, %p134
    %p136 = pneg %p135
    // Predicated region
    $region9: #{encoder_apply.18} parent=5 // pred_check
      _
    $region10: #{encoder_apply.18} parent=5 // pred_check_branch
      %138 = sbr.rel (%p135) target = $region12
    $region11: #{encoder_apply.18} parent=5 // pred_region
      %s139 = ssub.s32 %s10, 1
      // Predicated region
      $region13: #{encoder_apply.18} parent=11 // pred_check
        %p140 = pneg %p31
      $region14: #{encoder_apply.18} parent=11 // pred_check_branch
        %142 = sbr.rel (%p140) target = $region16
      $region15: #{encoder_apply.18} parent=11 // pred_region
        _
      $region16: #{encoder_apply.18} parent=11 // pred_fallthru
        _
      // Predicated region
      $region17: #{encoder_apply.18} parent=11 // pred_check
        %p143 = pneg %p78
      $region18: #{encoder_apply.18} parent=11 // pred_check_branch
        %145 = sbr.rel (%p143) target = $region20
      $region19: #{encoder_apply.18} parent=11 // pred_region
        _
      $region20: #{encoder_apply.18} parent=11 // pred_fallthru
        _
      // Predicated region
      $region21: #{encoder_apply.18} parent=11 // pred_check
        %p146 = pneg %p99
      $region22: #{encoder_apply.18} parent=11 // pred_check_branch
        %148 = sbr.rel (%p146) target = $region24
      $region23: #{encoder_apply.18} parent=11 // pred_region
        _
      $region24: #{encoder_apply.18} parent=11 // pred_fallthru
        _
    $region12: #{encoder_apply.18} parent=5 // pred_fallthru
      _
    %p149 = scmp.lt.s32.totalorder %s10, 2
    // Predicated region
    $region25: #{encoder_apply.18} parent=5 // pred_check
      %p150 = pneg %p149
    $region26: #{encoder_apply.18} parent=5 // pred_check_branch
      %152 = sbr.rel (%p150) target = $region28
    $region27: #{encoder_apply.18} parent=5 // pred_region
      // Predicated region
      $region29: #{encoder_apply.18} parent=27 // pred_check
        %p153 = pneg %p51
      $region30: #{encoder_apply.18} parent=27 // pred_check_branch
        %155 = sbr.rel (%p153) target = $region32
      $region31: #{encoder_apply.18} parent=27 // pred_region
        %p156 = scmp.lt.s32.totalorder %s10, 1
        %s157 = scalar_select %p156, %s10, 1
        %s158 = smul.addr %s157, 8
        %s159 = scalar_lea.vmem %s1, %s158
      $region32: #{encoder_apply.18} parent=27 // pred_fallthru
        _
    $region28: #{encoder_apply.18} parent=5 // pred_fallthru
      _
    %p160 = scmp.le.s32.totalorder 1, %s10
    %p161 = scmp.lt.s32.totalorder %s10, 3
    %p162 = pnand %p160, %p161
    %p163 = pneg %p162
    // Predicated region
    $region33: #{encoder_apply.18} parent=5 // pred_check
      _
    $region34: #{encoder_apply.18} parent=5 // pred_check_branch
      %165 = sbr.rel (%p162) target = $region36
    $region35: #{encoder_apply.18} parent=5 // pred_region
      %s166 = ssub.s32 %s10, 1
      %p167 = pneg %p31
      %p168 = pneg %p28
      %p169 = scmp.lt.s32.totalorder %s15, 1
      %s170 = scalar_select %p169, %s15, 1
      %s171 = smul.addr %s170, 8
      %s172 = scalar_lea.vmem %s1, %s171
      %p173 = pneg %p57
      %p174 = pneg %p54
      %p175 = pneg %p78
      %p176 = pneg %p75
      %p177 = pneg %p99
      %p178 = pneg %p96
      %p179 = pneg %p125
      %p180 = pneg %p122
      %p181 = scmp.lt.s32.totalorder %s15, 1
      %s182 = scalar_select %p181, %s15, 1
      %s183 = smul.addr %s182, 8
      %s184 = scalar_lea.vmem %s4, %s183
      %p185 = scmp.lt.s32.totalorder %s15, 1
      %s186 = scalar_select %p185, %s15, 1
      %s187 = smul.addr %s186, 8
      %s188 = scalar_lea.vmem %s1, %s187
      %p189 = scmp.lt.s32.totalorder %s15, 1
      %s190 = scalar_select %p189, %s15, 1
      %s191 = smul.addr %s190, 8
      %s192 = scalar_lea.vmem %s4, %s191
      %v194 = vld [vmem:[%s0] sm:$0x1]
      %v195 = vld [vmem:[%s188] sm:$0xff]
      %vm196 = vcmp.gt.s32.totalorder %v194, 0
      %v197 = vsel %vm196, 1, 0
      %v198 = vperm.slane %v197, 0
      %vm199 = vcmp.eq.s32.totalorder %v198, 1
      %v200 = vsel %vm199, %v195, 0.0
      %vm201 = vcmp.lt.s32.totalorder %v194, 1
      %v202 = vsel %vm201, 1, 0
      %v203 = vperm.slane %v202, 0
      %vm204 = vcmp.eq.s32.totalorder %v203, 1
      %206 = vrot.lane.b32.xlu0 %v195, 126
      %v207 = vpop.permute.xlu0 %206
      %v209 = vsel %vm204, %v207, 0.0
      %v210 = vsel %vm199, %v207, 0.0
      %211 = vrot.lane.b32.xlu0 %v195, 124
      %v212 = vpop.permute.xlu0 %211
      %v214 = vsel %vm204, %v212, 0.0
      %v215 = vsel %vm199, %v212, 0.0
      %216 = vrot.lane.b32.xlu0 %v195, 122
      %v217 = vpop.permute.xlu0 %216
      %v219 = vsel %vm204, %v217, 0.0
      %220 = vrot.lane.b32.xlu0 %v195, 127
      %v221 = vpop.permute.xlu0 %220
      %223 = vrot.lane.b32.xlu0 %v195, 125
      %v224 = vpop.permute.xlu0 %223
      %226 = vrot.lane.b32.xlu0 %v195, 123
      %v227 = vpop.permute.xlu0 %226
      %v229 = vpack.c.bf16 %v221, %v200
      %v230 = vpack.c.bf16 %v210, %v209
      %v231 = vpack.c.bf16 %v214, %v224
      %v232 = vpack.c.bf16 %v227, %v215
      %v233 = vpack.c.bf16 %v219, %v219
      %v234 = vld [vmem:[%s2] sm:$0xf]
      %v235 = vld [vmem:[%s3] sm:$0xff]
      %237 = vset.pattern.permute.xlu0 0
      %238 = vperm.xlu0 %237, %v235
      %v239 = vpop.permute.xlu0 %238
      %vm241 = vcmask 588800
      %v243 = vsel %vm241, %v234, 0
      %vm245 = vcmask 1043456
      %v247 = vsel %vm245, %v233, 0
      %249 = vmatpush.bf16.msra.mxu0 0
      %250 = vmatpush.bf16.msra.mxu0 0
      %251 = vmatpush.bf16.msra.mxu0 0
      %252 = vmatpush.bf16.msra.mxu0 %v247
      %253 = vmatpush.bf16.msra.mxu0 %v232
      %254 = vmatpush.bf16.msra.mxu0 %v231
      %255 = vmatpush.bf16.msra.mxu0 %v230
      %256 = vmatpush.bf16.msra.mxu0 %v229
      %257 = vmatmul.bf16.gmra.mxu0 %v243
      %v258 = vpop.f32.mrf.mxu0
      %v259 = vadd.f32 %v239, %v258
      %v260 = vpop.f32.mrf.mxu0
      %261 = vdwg.mxu0
      %vm262 = vcmp.ge.f32.partialorder %v259, 0.0
      %v263 = vmul.f32 %v259, 0.01
      %v264 = vsel %vm262, %v259, %v263
      %vm265 = vcmask 31744
      %266 = vst.msk [vmem:[%s192] sm:$0xff] %vm265, %v264
      %p267 = scmp.lt.s32.totalorder %s15, 1
      %s268 = scalar_select %p267, %s15, 1
      %s269 = smul.addr %s268, 8
      %s270 = scalar_lea.vmem %s4, %s269
      // Predicated region
      $region37: #{encoder_apply.18} parent=35 // pred_check
        %p271 = pneg %p122
      $region38: #{encoder_apply.18} parent=35 // pred_check_branch
        %273 = sbr.rel (%p271) target = $region40
      $region39: #{encoder_apply.18} parent=35 // pred_region
        _
      $region40: #{encoder_apply.18} parent=35 // pred_fallthru
        _
    $region36: #{encoder_apply.18} parent=5 // pred_fallthru
      _
    %p274 = scmp.le.s32.totalorder 2, %s10
    // Predicated region
    $region41: #{encoder_apply.18} parent=5 // pred_check
      %p275 = pneg %p274
    $region42: #{encoder_apply.18} parent=5 // pred_check_branch
      %277 = sbr.rel (%p275) target = $region44
    $region43: #{encoder_apply.18} parent=5 // pred_region
      %s278 = ssub.s32 %s10, 2
      // Predicated region
      $region45: #{encoder_apply.18} parent=43 // pred_check
        %p279 = pneg %p128
      $region46: #{encoder_apply.18} parent=43 // pred_check_branch
        %281 = sbr.rel (%p279) target = $region48
      $region47: #{encoder_apply.18} parent=43 // pred_region
        %p282 = scmp.lt.s32.totalorder %s16, 1
        %s283 = scalar_select %p282, %s16, 1
        %s284 = smul.addr %s283, 8
        %s285 = scalar_lea.vmem %s4, %s284
      $region48: #{encoder_apply.18} parent=43 // pred_fallthru
        _
    $region44: #{encoder_apply.18} parent=5 // pred_fallthru
      _
  $region6: #{encoder_apply.18} parent=0 // loop_footer
    %s14 = sadd.s32 1, %s10
  $region7: #{encoder_apply.18} parent=0 // loop_footer_branch
    %9 = sbr.rel target = $region3
  $region8: #{encoder_apply.18} parent=0 // loop_exit
    _

</llo_original>
